<compile_context>
chip_gen: v6e
topology: v6e:2x2x1
jax: 0.10.0
libtpu: 0.0.40
codegen_flags: <defaults>
</compile_context>

<pallas_src>
import functools

import jax
import jax.numpy as jnp
from jax.experimental import pallas as pl
from jax.experimental.pallas import tpu as pltpu


# ----------------------------- fused Pallas kernel ------------------------------

def _simcse_encoder_kernel(x_ref, mask_ref, emb_g_ref, emb_b_ref,
                           wqkv_ref, bqkv_ref, wo_ref, bo_ref,
                           ln1g_ref, ln1b_ref, w1_ref, b1_ref,
                           w2_ref, b2_ref, ln2g_ref, ln2b_ref,
                           o_ref, ctx_ref, *, H, nh, dh, L, eps):
    """Full BERT encoder + CLS pooling for one sequence, entirely in VMEM."""

    def layernorm(y, g, b):
        mu = jnp.mean(y, axis=-1, keepdims=True)
        var = jnp.mean((y - mu) ** 2, axis=-1, keepdims=True)
        return (y - mu) * jax.lax.rsqrt(var + eps) * g + b

    # Embedding LayerNorm (no residual, no zero tensor streamed from HBM).
    x = layernorm(x_ref[...], emb_g_ref[...], emb_b_ref[...])

    # Additive attention-mask bias over key positions, built in-kernel: (1, S).
    bias = (1.0 - mask_ref[0]) * -1e9
    scale = 1.0 / float(dh) ** 0.5

    for l in range(L):  # static layer loop; weights stay resident in VMEM
        # ---- fused QKV projection: (S, H) @ (H, 3H) ----
        qkv = jnp.dot(x, wqkv_ref[l], preferred_element_type=jnp.float32) + bqkv_ref[l]
        q = qkv[:, 0 * H:1 * H] * scale
        k = qkv[:, 1 * H:2 * H]
        v = qkv[:, 2 * H:3 * H]

        # ---- merged-head attention: heads are static lane slices of H ----
        for h in range(nh):
            sl = slice(h * dh, (h + 1) * dh)
            s = jnp.dot(q[:, sl], k[:, sl].T,
                        preferred_element_type=jnp.float32) + bias        # (S, S)
            s = s - jnp.max(s, axis=-1, keepdims=True)
            p = jnp.exp(s)
            p = p * pl.reciprocal(jnp.sum(p, axis=-1, keepdims=True), approx=True)
            ctx_ref[:, sl] = jnp.dot(p, v[:, sl],
                                     preferred_element_type=jnp.float32)  # (S, dh)

        attn = jnp.dot(ctx_ref[...], wo_ref[l],
                       preferred_element_type=jnp.float32) + bo_ref[l]
        x = layernorm(attn + x, ln1g_ref[l], ln1b_ref[l])

        # ---- feed-forward ----
        ffn = jnp.dot(x, w1_ref[l], preferred_element_type=jnp.float32) + b1_ref[l]
        ffn = jax.nn.gelu(ffn, approximate=True)
        ffn = jnp.dot(ffn, w2_ref[l], preferred_element_type=jnp.float32) + b2_ref[l]
        x = layernorm(ffn + x, ln2g_ref[l], ln2b_ref[l])

    # CLS pooling: first token of this sequence.
    o_ref[0] = x[0:1, :].astype(o_ref.dtype)


# ------------------------------ Model config -------------------------------

class Cfg:
    vocab_size = 128
    hidden = 32
    heads = 4
    layers = 2
    intermediate = 64
    max_pos = 16
    type_vocab = 2


def init_params(key, cfg):
    H, I = cfg.hidden, cfg.intermediate

    def nrm(k, shape, scale=0.02):
        return scale * jax.random.normal(k, shape, dtype=jnp.float32)

    keys = jax.random.split(key, 8 + cfg.layers)
    params = {
        "word_emb": nrm(keys[0], (cfg.vocab_size, H)),
        "pos_emb": nrm(keys[1], (cfg.max_pos, H)),
        "type_emb": nrm(keys[2], (cfg.type_vocab, H)),
        "emb_ln_g": jnp.ones((H,), jnp.float32),
        "emb_ln_b": jnp.zeros((H,), jnp.float32),
        "layers": [],
    }
    for li in range(cfg.layers):
        lk = jax.random.split(keys[8 + li], 6)
        params["layers"].append({
            "wq": nrm(lk[0], (H, H)), "bq": jnp.zeros((H,), jnp.float32),
            "wk": nrm(lk[1], (H, H)), "bk": jnp.zeros((H,), jnp.float32),
            "wv": nrm(lk[2], (H, H)), "bv": jnp.zeros((H,), jnp.float32),
            "wo": nrm(lk[3], (H, H)), "bo": jnp.zeros((H,), jnp.float32),
            "ln1_g": jnp.ones((H,), jnp.float32), "ln1_b": jnp.zeros((H,), jnp.float32),
            "w1": nrm(lk[4], (H, I)), "b1": jnp.zeros((I,), jnp.float32),
            "w2": nrm(lk[5], (I, H)), "b2": jnp.zeros((H,), jnp.float32),
            "ln2_g": jnp.ones((H,), jnp.float32), "ln2_b": jnp.zeros((H,), jnp.float32),
        })
    return params


# ------------------------------ SimCSE forward ------------------------------

def simcse_forward(params, input_ids, attention_mask, token_type_ids, cfg):
    B, S = input_ids.shape
    H, nh, L, F = cfg.hidden, cfg.heads, cfg.layers, cfg.intermediate
    dh = H // nh
    layers = params["layers"]

    # BERT embeddings (gathers are plain-JAX glue).
    emb = (params["word_emb"][input_ids]
           + params["pos_emb"][:S][None, :, :]
           + params["type_emb"][token_type_ids]).astype(jnp.float32)
    x = emb.reshape(B * S, H)

    # One-time host-side packing of per-layer weights into stacked tensors.
    wqkv = jnp.stack([jnp.concatenate([l["wq"], l["wk"], l["wv"]], axis=1) for l in layers])
    bqkv = jnp.stack([jnp.concatenate([l["bq"], l["bk"], l["bv"]])[None, :] for l in layers])
    wo = jnp.stack([l["wo"] for l in layers])
    bo = jnp.stack([l["bo"][None, :] for l in layers])
    ln1g = jnp.stack([l["ln1_g"][None, :] for l in layers])
    ln1b = jnp.stack([l["ln1_b"][None, :] for l in layers])
    w1 = jnp.stack([l["w1"] for l in layers])
    b1 = jnp.stack([l["b1"][None, :] for l in layers])
    w2 = jnp.stack([l["w2"] for l in layers])
    b2 = jnp.stack([l["b2"][None, :] for l in layers])
    ln2g = jnp.stack([l["ln2_g"][None, :] for l in layers])
    ln2b = jnp.stack([l["ln2_b"][None, :] for l in layers])

    mask = attention_mask.astype(jnp.float32).reshape(B, 1, S)
    emb_g = params["emb_ln_g"].reshape(1, H)
    emb_b = params["emb_ln_b"].reshape(1, H)

    def full(shape):
        # whole-array block, same block for every grid point (DMA'd once).
        return pl.BlockSpec(shape, lambda b: (0,) * len(shape))

    out = pl.pallas_call(
        functools.partial(_simcse_encoder_kernel, H=H, nh=nh, dh=dh, L=L, eps=1e-12),
        out_shape=jax.ShapeDtypeStruct((B, 1, H), jnp.float32),
        grid=(B,),
        in_specs=[
            pl.BlockSpec((S, H), lambda b: (b, 0)),        # this sequence's token rows
            pl.BlockSpec((1, 1, S), lambda b: (b, 0, 0)),  # this sequence's attention mask
            full((1, H)), full((1, H)),                    # embedding LayerNorm gamma/beta
            full((L, H, 3 * H)), full((L, 1, 3 * H)),      # fused QKV weight/bias
            full((L, H, H)), full((L, 1, H)),              # attention output proj
            full((L, 1, H)), full((L, 1, H)),              # LN1 gamma/beta
            full((L, H, F)), full((L, 1, F)),              # FFN in
            full((L, F, H)), full((L, 1, H)),              # FFN out
            full((L, 1, H)), full((L, 1, H)),              # LN2 gamma/beta
        ],
        out_specs=pl.BlockSpec((1, 1, H), lambda b: (b, 0, 0)),
        scratch_shapes=[pltpu.VMEM((S, H), jnp.float32)],  # merged-head attention context
        compiler_params=pltpu.CompilerParams(dimension_semantics=("parallel",)),
    )(x, mask, emb_g, emb_b, wqkv, bqkv, wo, bo,
      ln1g, ln1b, w1, b1, w2, b2, ln2g, ln2b)

    # pool_type == 'cls': [CLS] embedding per sequence.
    return out[:, 0, :]


# ---------------------------------- main ------------------------------------

if __name__ == "__main__":
    cfg = Cfg()
    key = jax.random.PRNGKey(0)
    pkey, ikey = jax.random.split(key)

    params = init_params(pkey, cfg)

    B, S = 2, 8
    input_ids = jax.random.randint(ikey, (B, S), 0, cfg.vocab_size, dtype=jnp.int32)
    attention_mask = jnp.ones((B, S), dtype=jnp.int32).at[1, 6:].set(0)  # ragged mask
    token_type_ids = jnp.zeros((B, S), dtype=jnp.int32)

    out = simcse_forward(params, input_ids, attention_mask, token_type_ids, cfg)
    out = jax.block_until_ready(out)

    assert out.shape == (B, cfg.hidden), out.shape
    assert bool(jnp.all(jnp.isfinite(out)))
    print("KERNEL_OK")
</pallas_src>

<mosaic_0001>
module attributes {stable_mosaic.version = 11 : i64} {
  func.func @_simcse_encoder_kernel(%arg0: i32, %arg1: memref<8x32xf32, #tpu.memory_space<vmem>>, %arg2: memref<1x1x8xf32, #tpu.memory_space<vmem>>, %arg3: memref<1x32xf32, #tpu.memory_space<vmem>>, %arg4: memref<1x32xf32, #tpu.memory_space<vmem>>, %arg5: memref<2x32x96xf32, #tpu.memory_space<vmem>>, %arg6: memref<2x1x96xf32, #tpu.memory_space<vmem>>, %arg7: memref<2x32x32xf32, #tpu.memory_space<vmem>>, %arg8: memref<2x1x32xf32, #tpu.memory_space<vmem>>, %arg9: memref<2x1x32xf32, #tpu.memory_space<vmem>>, %arg10: memref<2x1x32xf32, #tpu.memory_space<vmem>>, %arg11: memref<2x32x64xf32, #tpu.memory_space<vmem>>, %arg12: memref<2x1x64xf32, #tpu.memory_space<vmem>>, %arg13: memref<2x64x32xf32, #tpu.memory_space<vmem>>, %arg14: memref<2x1x32xf32, #tpu.memory_space<vmem>>, %arg15: memref<2x1x32xf32, #tpu.memory_space<vmem>>, %arg16: memref<2x1x32xf32, #tpu.memory_space<vmem>>, %arg17: memref<1x1x32xf32, #tpu.memory_space<vmem>>, %arg18: memref<8x32xf32, #tpu.memory_space<vmem>>) attributes {dimension_semantics = [#tpu.dimension_semantics<parallel>], iteration_bounds = array<i64: 2>, scalar_prefetch = 0 : i64, scratch_operands = 1 : i64, tpu.core_type = #tpu.core_type<tc>, window_params = [{transform_indices = @transform_0, window_bounds = array<i64: 8, 32>}, {transform_indices = @transform_1, window_bounds = array<i64: 1, 1, 8>}, {pipeline_mode = #tpu.pipeline_mode<synchronous>, transform_indices = @transform_2, window_bounds = array<i64: 1, 32>}, {pipeline_mode = #tpu.pipeline_mode<synchronous>, transform_indices = @transform_3, window_bounds = array<i64: 1, 32>}, {pipeline_mode = #tpu.pipeline_mode<synchronous>, transform_indices = @transform_4, window_bounds = array<i64: 2, 32, 96>}, {pipeline_mode = #tpu.pipeline_mode<synchronous>, transform_indices = @transform_5, window_bounds = array<i64: 2, 1, 96>}, {pipeline_mode = #tpu.pipeline_mode<synchronous>, transform_indices = @transform_6, window_bounds = array<i64: 2, 32, 32>}, {pipeline_mode = #tpu.pipeline_mode<synchronous>, transform_indices = @transform_7, window_bounds = array<i64: 2, 1, 32>}, {pipeline_mode = #tpu.pipeline_mode<synchronous>, transform_indices = @transform_8, window_bounds = array<i64: 2, 1, 32>}, {pipeline_mode = #tpu.pipeline_mode<synchronous>, transform_indices = @transform_9, window_bounds = array<i64: 2, 1, 32>}, {pipeline_mode = #tpu.pipeline_mode<synchronous>, transform_indices = @transform_10, window_bounds = array<i64: 2, 32, 64>}, {pipeline_mode = #tpu.pipeline_mode<synchronous>, transform_indices = @transform_11, window_bounds = array<i64: 2, 1, 64>}, {pipeline_mode = #tpu.pipeline_mode<synchronous>, transform_indices = @transform_12, window_bounds = array<i64: 2, 64, 32>}, {pipeline_mode = #tpu.pipeline_mode<synchronous>, transform_indices = @transform_13, window_bounds = array<i64: 2, 1, 32>}, {pipeline_mode = #tpu.pipeline_mode<synchronous>, transform_indices = @transform_14, window_bounds = array<i64: 2, 1, 32>}, {pipeline_mode = #tpu.pipeline_mode<synchronous>, transform_indices = @transform_15, window_bounds = array<i64: 2, 1, 32>}, {transform_indices = @transform_16, window_bounds = array<i64: 1, 1, 32>}]} {
    %c0 = arith.constant 0 : index
    %c0_0 = arith.constant 0 : index
    %0 = vector.load %arg1[%c0, %c0_0] : memref<8x32xf32, #tpu.memory_space<vmem>>, vector<8x32xf32>
    %c0_1 = arith.constant 0 : index
    %c0_2 = arith.constant 0 : index
    %1 = vector.load %arg3[%c0_1, %c0_2] : memref<1x32xf32, #tpu.memory_space<vmem>>, vector<1x32xf32>
    %c0_3 = arith.constant 0 : index
    %c0_4 = arith.constant 0 : index
    %2 = vector.load %arg4[%c0_3, %c0_4] : memref<1x32xf32, #tpu.memory_space<vmem>>, vector<1x32xf32>
    %cst = arith.constant dense<0.000000e+00> : vector<8xf32>
    %3 = vector.multi_reduction <add>, %0, %cst [1] : vector<8x32xf32> to vector<8xf32>
    %4 = vector.shape_cast %3 : vector<8xf32> to vector<8x1xf32>
    %cst_5 = arith.constant 3.200000e+01 : f32
    %5 = vector.broadcast %cst_5 : f32 to vector<8x1xf32>
    %6 = arith.divf %4, %5 : vector<8x1xf32>
    %7 = vector.broadcast %6 : vector<8x1xf32> to vector<8x32xf32>
    %8 = arith.subf %0, %7 : vector<8x32xf32>
    %9 = arith.mulf %8, %8 : vector<8x32xf32>
    %cst_6 = arith.constant dense<0.000000e+00> : vector<8xf32>
    %10 = vector.multi_reduction <add>, %9, %cst_6 [1] : vector<8x32xf32> to vector<8xf32>
    %11 = vector.shape_cast %10 : vector<8xf32> to vector<8x1xf32>
    %cst_7 = arith.constant 3.200000e+01 : f32
    %12 = vector.broadcast %cst_7 : f32 to vector<8x1xf32>
    %13 = arith.divf %11, %12 : vector<8x1xf32>
    %14 = vector.broadcast %6 : vector<8x1xf32> to vector<8x32xf32>
    %15 = arith.subf %0, %14 : vector<8x32xf32>
    %cst_8 = arith.constant 9.99999996E-13 : f32
    %16 = vector.broadcast %cst_8 : f32 to vector<8x1xf32>
    %17 = arith.addf %13, %16 : vector<8x1xf32>
    %18 = math.rsqrt %17 : vector<8x1xf32>
    %19 = vector.broadcast %18 : vector<8x1xf32> to vector<8x32xf32>
    %20 = arith.mulf %15, %19 : vector<8x32xf32>
    %21 = vector.broadcast %1 : vector<1x32xf32> to vector<8x32xf32>
    %22 = arith.mulf %20, %21 : vector<8x32xf32>
    %23 = vector.broadcast %2 : vector<1x32xf32> to vector<8x32xf32>
    %24 = arith.addf %22, %23 : vector<8x32xf32>
    %c0_9 = arith.constant 0 : index
    %c0_10 = arith.constant 0 : index
    %c0_11 = arith.constant 0 : index
    %25 = vector.load %arg2[%c0_9, %c0_10, %c0_11] : memref<1x1x8xf32, #tpu.memory_space<vmem>>, vector<1x1x8xf32>
    %26 = vector.shape_cast %25 : vector<1x1x8xf32> to vector<1x8xf32>
    %cst_12 = arith.constant 1.000000e+00 : f32
    %27 = vector.broadcast %cst_12 : f32 to vector<1x8xf32>
    %28 = arith.subf %27, %26 : vector<1x8xf32>
    %cst_13 = arith.constant -1.000000e+09 : f32
    %29 = vector.broadcast %cst_13 : f32 to vector<1x8xf32>
    %30 = arith.mulf %28, %29 : vector<1x8xf32>
    %c0_14 = arith.constant 0 : index
    %c0_15 = arith.constant 0 : index
    %c0_16 = arith.constant 0 : index
    %31 = vector.load %arg5[%c0_14, %c0_15, %c0_16] : memref<2x32x96xf32, #tpu.memory_space<vmem>>, vector<1x32x96xf32>
    %32 = vector.shape_cast %31 : vector<1x32x96xf32> to vector<32x96xf32>
    %cst_17 = arith.constant dense<0.000000e+00> : vector<8x96xf32>
    %33 = tpu.matmul %24, %32, %cst_17 {dimension_numbers = #tpu.dot_dimension_numbers<[1], [0], [0], [1], [0, 0, 1, 1], [], []>} : vector<8x32xf32>, vector<32x96xf32>, vector<8x96xf32> -> vector<8x96xf32>
    %c0_18 = arith.constant 0 : index
    %c0_19 = arith.constant 0 : index
    %c0_20 = arith.constant 0 : index
    %34 = vector.load %arg6[%c0_18, %c0_19, %c0_20] : memref<2x1x96xf32, #tpu.memory_space<vmem>>, vector<1x1x96xf32>
    %35 = vector.shape_cast %34 : vector<1x1x96xf32> to vector<1x96xf32>
    %36 = vector.broadcast %35 : vector<1x96xf32> to vector<8x96xf32>
    %37 = arith.addf %33, %36 : vector<8x96xf32>
    %38 = vector.extract_strided_slice %37 {offsets = [0, 0], sizes = [8, 32], strides = [1, 1]} : vector<8x96xf32> to vector<8x32xf32>
    %cst_21 = arith.constant 0.353553385 : f32
    %39 = vector.broadcast %cst_21 : f32 to vector<8x32xf32>
    %40 = arith.mulf %38, %39 : vector<8x32xf32>
    %41 = vector.extract_strided_slice %37 {offsets = [0, 32], sizes = [8, 32], strides = [1, 1]} : vector<8x96xf32> to vector<8x32xf32>
    %42 = vector.extract_strided_slice %37 {offsets = [0, 64], sizes = [8, 32], strides = [1, 1]} : vector<8x96xf32> to vector<8x32xf32>
    %43 = vector.extract_strided_slice %40 {offsets = [0, 0], sizes = [8, 8], strides = [1, 1]} : vector<8x32xf32> to vector<8x8xf32>
    %44 = vector.extract_strided_slice %41 {offsets = [0, 0], sizes = [8, 8], strides = [1, 1]} : vector<8x32xf32> to vector<8x8xf32>
    %45 = tpu.transpose %44, [1, 0] : vector<8x8xf32> -> vector<8x8xf32>
    %cst_22 = arith.constant dense<0.000000e+00> : vector<8x8xf32>
    %46 = tpu.matmul %43, %45, %cst_22 {dimension_numbers = #tpu.dot_dimension_numbers<[1], [0], [0], [1], [0, 0, 1, 1], [], []>} : vector<8x8xf32>, vector<8x8xf32>, vector<8x8xf32> -> vector<8x8xf32>
    %47 = vector.broadcast %30 : vector<1x8xf32> to vector<8x8xf32>
    %48 = arith.addf %46, %47 : vector<8x8xf32>
    %cst_23 = arith.constant dense<0xFF800000> : vector<8xf32>
    %49 = vector.multi_reduction <maximumf>, %48, %cst_23 [1] : vector<8x8xf32> to vector<8xf32>
    %50 = vector.shape_cast %49 : vector<8xf32> to vector<8x1xf32>
    %51 = vector.broadcast %50 : vector<8x1xf32> to vector<8x8xf32>
    %52 = arith.subf %48, %51 : vector<8x8xf32>
    %53 = math.exp %52 : vector<8x8xf32>
    %cst_24 = arith.constant dense<0.000000e+00> : vector<8xf32>
    %54 = vector.multi_reduction <add>, %53, %cst_24 [1] : vector<8x8xf32> to vector<8xf32>
    %55 = vector.shape_cast %54 : vector<8xf32> to vector<8x1xf32>
    %56 = tpu.reciprocal %55 {approx = true} : vector<8x1xf32> -> vector<8x1xf32>
    %57 = vector.broadcast %56 : vector<8x1xf32> to vector<8x8xf32>
    %58 = arith.mulf %53, %57 : vector<8x8xf32>
    %59 = vector.extract_strided_slice %42 {offsets = [0, 0], sizes = [8, 8], strides = [1, 1]} : vector<8x32xf32> to vector<8x8xf32>
    %cst_25 = arith.constant dense<0.000000e+00> : vector<8x8xf32>
    %60 = tpu.matmul %58, %59, %cst_25 {dimension_numbers = #tpu.dot_dimension_numbers<[1], [0], [0], [1], [0, 0, 1, 1], [], []>} : vector<8x8xf32>, vector<8x8xf32>, vector<8x8xf32> -> vector<8x8xf32>
    %c0_26 = arith.constant 0 : index
    %c0_27 = arith.constant 0 : index
    %61 = vector.load %arg18[%c0_26, %c0_27] : memref<8x32xf32, #tpu.memory_space<vmem>>, vector<8x8xf32>
    tpu.vector_store %arg18[%c0_26, %c0_27], %60 {strides = array<i32>} : memref<8x32xf32, #tpu.memory_space<vmem>>, vector<8x8xf32>,
    %62 = vector.extract_strided_slice %40 {offsets = [0, 8], sizes = [8, 8], strides = [1, 1]} : vector<8x32xf32> to vector<8x8xf32>
    %63 = vector.extract_strided_slice %41 {offsets = [0, 8], sizes = [8, 8], strides = [1, 1]} : vector<8x32xf32> to vector<8x8xf32>
    %64 = tpu.transpose %63, [1, 0] : vector<8x8xf32> -> vector<8x8xf32>
    %cst_28 = arith.constant dense<0.000000e+00> : vector<8x8xf32>
    %65 = tpu.matmul %62, %64, %cst_28 {dimension_numbers = #tpu.dot_dimension_numbers<[1], [0], [0], [1], [0, 0, 1, 1], [], []>} : vector<8x8xf32>, vector<8x8xf32>, vector<8x8xf32> -> vector<8x8xf32>
    %66 = vector.broadcast %30 : vector<1x8xf32> to vector<8x8xf32>
    %67 = arith.addf %65, %66 : vector<8x8xf32>
    %cst_29 = arith.constant dense<0xFF800000> : vector<8xf32>
    %68 = vector.multi_reduction <maximumf>, %67, %cst_29 [1] : vector<8x8xf32> to vector<8xf32>
    %69 = vector.shape_cast %68 : vector<8xf32> to vector<8x1xf32>
    %70 = vector.broadcast %69 : vector<8x1xf32> to vector<8x8xf32>
    %71 = arith.subf %67, %70 : vector<8x8xf32>
    %72 = math.exp %71 : vector<8x8xf32>
    %cst_30 = arith.constant dense<0.000000e+00> : vector<8xf32>
    %73 = vector.multi_reduction <add>, %72, %cst_30 [1] : vector<8x8xf32> to vector<8xf32>
    %74 = vector.shape_cast %73 : vector<8xf32> to vector<8x1xf32>
    %75 = tpu.reciprocal %74 {approx = true} : vector<8x1xf32> -> vector<8x1xf32>
    %76 = vector.broadcast %75 : vector<8x1xf32> to vector<8x8xf32>
    %77 = arith.mulf %72, %76 : vector<8x8xf32>
    %78 = vector.extract_strided_slice %42 {offsets = [0, 8], sizes = [8, 8], strides = [1, 1]} : vector<8x32xf32> to vector<8x8xf32>
    %cst_31 = arith.constant dense<0.000000e+00> : vector<8x8xf32>
    %79 = tpu.matmul %77, %78, %cst_31 {dimension_numbers = #tpu.dot_dimension_numbers<[1], [0], [0], [1], [0, 0, 1, 1], [], []>} : vector<8x8xf32>, vector<8x8xf32>, vector<8x8xf32> -> vector<8x8xf32>
    %c0_32 = arith.constant 0 : index
    %c8 = arith.constant 8 : index
    %80 = vector.load %arg18[%c0_32, %c8] : memref<8x32xf32, #tpu.memory_space<vmem>>, vector<8x8xf32>
    tpu.vector_store %arg18[%c0_32, %c8], %79 {strides = array<i32>} : memref<8x32xf32, #tpu.memory_space<vmem>>, vector<8x8xf32>,
    %81 = vector.extract_strided_slice %40 {offsets = [0, 16], sizes = [8, 8], strides = [1, 1]} : vector<8x32xf32> to vector<8x8xf32>
    %82 = vector.extract_strided_slice %41 {offsets = [0, 16], sizes = [8, 8], strides = [1, 1]} : vector<8x32xf32> to vector<8x8xf32>
    %83 = tpu.transpose %82, [1, 0] : vector<8x8xf32> -> vector<8x8xf32>
    %cst_33 = arith.constant dense<0.000000e+00> : vector<8x8xf32>
    %84 = tpu.matmul %81, %83, %cst_33 {dimension_numbers = #tpu.dot_dimension_numbers<[1], [0], [0], [1], [0, 0, 1, 1], [], []>} : vector<8x8xf32>, vector<8x8xf32>, vector<8x8xf32> -> vector<8x8xf32>
    %85 = vector.broadcast %30 : vector<1x8xf32> to vector<8x8xf32>
    %86 = arith.addf %84, %85 : vector<8x8xf32>
    %cst_34 = arith.constant dense<0xFF800000> : vector<8xf32>
    %87 = vector.multi_reduction <maximumf>, %86, %cst_34 [1] : vector<8x8xf32> to vector<8xf32>
    %88 = vector.shape_cast %87 : vector<8xf32> to vector<8x1xf32>
    %89 = vector.broadcast %88 : vector<8x1xf32> to vector<8x8xf32>
    %90 = arith.subf %86, %89 : vector<8x8xf32>
    %91 = math.exp %90 : vector<8x8xf32>
    %cst_35 = arith.constant dense<0.000000e+00> : vector<8xf32>
    %92 = vector.multi_reduction <add>, %91, %cst_35 [1] : vector<8x8xf32> to vector<8xf32>
    %93 = vector.shape_cast %92 : vector<8xf32> to vector<8x1xf32>
    %94 = tpu.reciprocal %93 {approx = true} : vector<8x1xf32> -> vector<8x1xf32>
    %95 = vector.broadcast %94 : vector<8x1xf32> to vector<8x8xf32>
    %96 = arith.mulf %91, %95 : vector<8x8xf32>
    %97 = vector.extract_strided_slice %42 {offsets = [0, 16], sizes = [8, 8], strides = [1, 1]} : vector<8x32xf32> to vector<8x8xf32>
    %cst_36 = arith.constant dense<0.000000e+00> : vector<8x8xf32>
    %98 = tpu.matmul %96, %97, %cst_36 {dimension_numbers = #tpu.dot_dimension_numbers<[1], [0], [0], [1], [0, 0, 1, 1], [], []>} : vector<8x8xf32>, vector<8x8xf32>, vector<8x8xf32> -> vector<8x8xf32>
    %c0_37 = arith.constant 0 : index
    %c16 = arith.constant 16 : index
    %99 = vector.load %arg18[%c0_37, %c16] : memref<8x32xf32, #tpu.memory_space<vmem>>, vector<8x8xf32>
    tpu.vector_store %arg18[%c0_37, %c16], %98 {strides = array<i32>} : memref<8x32xf32, #tpu.memory_space<vmem>>, vector<8x8xf32>,
    %100 = vector.extract_strided_slice %40 {offsets = [0, 24], sizes = [8, 8], strides = [1, 1]} : vector<8x32xf32> to vector<8x8xf32>
    %101 = vector.extract_strided_slice %41 {offsets = [0, 24], sizes = [8, 8], strides = [1, 1]} : vector<8x32xf32> to vector<8x8xf32>
    %102 = tpu.transpose %101, [1, 0] : vector<8x8xf32> -> vector<8x8xf32>
    %cst_38 = arith.constant dense<0.000000e+00> : vector<8x8xf32>
    %103 = tpu.matmul %100, %102, %cst_38 {dimension_numbers = #tpu.dot_dimension_numbers<[1], [0], [0], [1], [0, 0, 1, 1], [], []>} : vector<8x8xf32>, vector<8x8xf32>, vector<8x8xf32> -> vector<8x8xf32>
    %104 = vector.broadcast %30 : vector<1x8xf32> to vector<8x8xf32>
    %105 = arith.addf %103, %104 : vector<8x8xf32>
    %cst_39 = arith.constant dense<0xFF800000> : vector<8xf32>
    %106 = vector.multi_reduction <maximumf>, %105, %cst_39 [1] : vector<8x8xf32> to vector<8xf32>
    %107 = vector.shape_cast %106 : vector<8xf32> to vector<8x1xf32>
    %108 = vector.broadcast %107 : vector<8x1xf32> to vector<8x8xf32>
    %109 = arith.subf %105, %108 : vector<8x8xf32>
    %110 = math.exp %109 : vector<8x8xf32>
    %cst_40 = arith.constant dense<0.000000e+00> : vector<8xf32>
    %111 = vector.multi_reduction <add>, %110, %cst_40 [1] : vector<8x8xf32> to vector<8xf32>
    %112 = vector.shape_cast %111 : vector<8xf32> to vector<8x1xf32>
    %113 = tpu.reciprocal %112 {approx = true} : vector<8x1xf32> -> vector<8x1xf32>
    %114 = vector.broadcast %113 : vector<8x1xf32> to vector<8x8xf32>
    %115 = arith.mulf %110, %114 : vector<8x8xf32>
    %116 = vector.extract_strided_slice %42 {offsets = [0, 24], sizes = [8, 8], strides = [1, 1]} : vector<8x32xf32> to vector<8x8xf32>
    %cst_41 = arith.constant dense<0.000000e+00> : vector<8x8xf32>
    %117 = tpu.matmul %115, %116, %cst_41 {dimension_numbers = #tpu.dot_dimension_numbers<[1], [0], [0], [1], [0, 0, 1, 1], [], []>} : vector<8x8xf32>, vector<8x8xf32>, vector<8x8xf32> -> vector<8x8xf32>
    %c0_42 = arith.constant 0 : index
    %c24 = arith.constant 24 : index
    %118 = vector.load %arg18[%c0_42, %c24] : memref<8x32xf32, #tpu.memory_space<vmem>>, vector<8x8xf32>
    tpu.vector_store %arg18[%c0_42, %c24], %117 {strides = array<i32>} : memref<8x32xf32, #tpu.memory_space<vmem>>, vector<8x8xf32>,
    %c0_43 = arith.constant 0 : index
    %c0_44 = arith.constant 0 : index
    %119 = vector.load %arg18[%c0_43, %c0_44] : memref<8x32xf32, #tpu.memory_space<vmem>>, vector<8x32xf32>
    %c0_45 = arith.constant 0 : index
    %c0_46 = arith.constant 0 : index
    %c0_47 = arith.constant 0 : index
    %120 = vector.load %arg7[%c0_45, %c0_46, %c0_47] : memref<2x32x32xf32, #tpu.memory_space<vmem>>, vector<1x32x32xf32>
    %121 = vector.shape_cast %120 : vector<1x32x32xf32> to vector<32x32xf32>
    %cst_48 = arith.constant dense<0.000000e+00> : vector<8x32xf32>
    %122 = tpu.matmul %119, %121, %cst_48 {dimension_numbers = #tpu.dot_dimension_numbers<[1], [0], [0], [1], [0, 0, 1, 1], [], []>} : vector<8x32xf32>, vector<32x32xf32>, vector<8x32xf32> -> vector<8x32xf32>
    %c0_49 = arith.constant 0 : index
    %c0_50 = arith.constant 0 : index
    %c0_51 = arith.constant 0 : index
    %123 = vector.load %arg8[%c0_49, %c0_50, %c0_51] : memref<2x1x32xf32, #tpu.memory_space<vmem>>, vector<1x1x32xf32>
    %124 = vector.shape_cast %123 : vector<1x1x32xf32> to vector<1x32xf32>
    %125 = vector.broadcast %124 : vector<1x32xf32> to vector<8x32xf32>
    %126 = arith.addf %122, %125 : vector<8x32xf32>
    %127 = arith.addf %126, %24 : vector<8x32xf32>
    %c0_52 = arith.constant 0 : index
    %c0_53 = arith.constant 0 : index
    %c0_54 = arith.constant 0 : index
    %128 = vector.load %arg9[%c0_52, %c0_53, %c0_54] : memref<2x1x32xf32, #tpu.memory_space<vmem>>, vector<1x1x32xf32>
    %129 = vector.shape_cast %128 : vector<1x1x32xf32> to vector<1x32xf32>
    %c0_55 = arith.constant 0 : index
    %c0_56 = arith.constant 0 : index
    %c0_57 = arith.constant 0 : index
    %130 = vector.load %arg10[%c0_55, %c0_56, %c0_57] : memref<2x1x32xf32, #tpu.memory_space<vmem>>, vector<1x1x32xf32>
    %131 = vector.shape_cast %130 : vector<1x1x32xf32> to vector<1x32xf32>
    %cst_58 = arith.constant dense<0.000000e+00> : vector<8xf32>
    %132 = vector.multi_reduction <add>, %127, %cst_58 [1] : vector<8x32xf32> to vector<8xf32>
    %133 = vector.shape_cast %132 : vector<8xf32> to vector<8x1xf32>
    %cst_59 = arith.constant 3.200000e+01 : f32
    %134 = vector.broadcast %cst_59 : f32 to vector<8x1xf32>
    %135 = arith.divf %133, %134 : vector<8x1xf32>
    %136 = vector.broadcast %135 : vector<8x1xf32> to vector<8x32xf32>
    %137 = arith.subf %127, %136 : vector<8x32xf32>
    %138 = arith.mulf %137, %137 : vector<8x32xf32>
    %cst_60 = arith.constant dense<0.000000e+00> : vector<8xf32>
    %139 = vector.multi_reduction <add>, %138, %cst_60 [1] : vector<8x32xf32> to vector<8xf32>
    %140 = vector.shape_cast %139 : vector<8xf32> to vector<8x1xf32>
    %cst_61 = arith.constant 3.200000e+01 : f32
    %141 = vector.broadcast %cst_61 : f32 to vector<8x1xf32>
    %142 = arith.divf %140, %141 : vector<8x1xf32>
    %143 = vector.broadcast %135 : vector<8x1xf32> to vector<8x32xf32>
    %144 = arith.subf %127, %143 : vector<8x32xf32>
    %cst_62 = arith.constant 9.99999996E-13 : f32
    %145 = vector.broadcast %cst_62 : f32 to vector<8x1xf32>
    %146 = arith.addf %142, %145 : vector<8x1xf32>
    %147 = math.rsqrt %146 : vector<8x1xf32>
    %148 = vector.broadcast %147 : vector<8x1xf32> to vector<8x32xf32>
    %149 = arith.mulf %144, %148 : vector<8x32xf32>
    %150 = vector.broadcast %129 : vector<1x32xf32> to vector<8x32xf32>
    %151 = arith.mulf %149, %150 : vector<8x32xf32>
    %152 = vector.broadcast %131 : vector<1x32xf32> to vector<8x32xf32>
    %153 = arith.addf %151, %152 : vector<8x32xf32>
    %c0_63 = arith.constant 0 : index
    %c0_64 = arith.constant 0 : index
    %c0_65 = arith.constant 0 : index
    %154 = vector.load %arg11[%c0_63, %c0_64, %c0_65] : memref<2x32x64xf32, #tpu.memory_space<vmem>>, vector<1x32x64xf32>
    %155 = vector.shape_cast %154 : vector<1x32x64xf32> to vector<32x64xf32>
    %cst_66 = arith.constant dense<0.000000e+00> : vector<8x64xf32>
    %156 = tpu.matmul %153, %155, %cst_66 {dimension_numbers = #tpu.dot_dimension_numbers<[1], [0], [0], [1], [0, 0, 1, 1], [], []>} : vector<8x32xf32>, vector<32x64xf32>, vector<8x64xf32> -> vector<8x64xf32>
    %c0_67 = arith.constant 0 : index
    %c0_68 = arith.constant 0 : index
    %c0_69 = arith.constant 0 : index
    %157 = vector.load %arg12[%c0_67, %c0_68, %c0_69] : memref<2x1x64xf32, #tpu.memory_space<vmem>>, vector<1x1x64xf32>
    %158 = vector.shape_cast %157 : vector<1x1x64xf32> to vector<1x64xf32>
    %159 = vector.broadcast %158 : vector<1x64xf32> to vector<8x64xf32>
    %160 = arith.addf %156, %159 : vector<8x64xf32>
    %161 = arith.mulf %160, %160 : vector<8x64xf32>
    %162 = arith.mulf %160, %161 : vector<8x64xf32>
    %cst_70 = arith.constant 4.471500e-02 : f32
    %163 = vector.broadcast %cst_70 : f32 to vector<8x64xf32>
    %164 = arith.mulf %163, %162 : vector<8x64xf32>
    %165 = arith.addf %160, %164 : vector<8x64xf32>
    %cst_71 = arith.constant 0.797884583 : f32
    %166 = vector.broadcast %cst_71 : f32 to vector<8x64xf32>
    %167 = arith.mulf %166, %165 : vector<8x64xf32>
    %168 = math.tanh %167 : vector<8x64xf32>
    %cst_72 = arith.constant 1.000000e+00 : f32
    %169 = vector.broadcast %cst_72 : f32 to vector<8x64xf32>
    %170 = arith.addf %169, %168 : vector<8x64xf32>
    %cst_73 = arith.constant 5.000000e-01 : f32
    %171 = vector.broadcast %cst_73 : f32 to vector<8x64xf32>
    %172 = arith.mulf %171, %170 : vector<8x64xf32>
    %173 = arith.mulf %160, %172 : vector<8x64xf32>
    %c0_74 = arith.constant 0 : index
    %c0_75 = arith.constant 0 : index
    %c0_76 = arith.constant 0 : index
    %174 = vector.load %arg13[%c0_74, %c0_75, %c0_76] : memref<2x64x32xf32, #tpu.memory_space<vmem>>, vector<1x64x32xf32>
    %175 = vector.shape_cast %174 : vector<1x64x32xf32> to vector<64x32xf32>
    %cst_77 = arith.constant dense<0.000000e+00> : vector<8x32xf32>
    %176 = tpu.matmul %173, %175, %cst_77 {dimension_numbers = #tpu.dot_dimension_numbers<[1], [0], [0], [1], [0, 0, 1, 1], [], []>} : vector<8x64xf32>, vector<64x32xf32>, vector<8x32xf32> -> vector<8x32xf32>
    %c0_78 = arith.constant 0 : index
    %c0_79 = arith.constant 0 : index
    %c0_80 = arith.constant 0 : index
    %177 = vector.load %arg14[%c0_78, %c0_79, %c0_80] : memref<2x1x32xf32, #tpu.memory_space<vmem>>, vector<1x1x32xf32>
    %178 = vector.shape_cast %177 : vector<1x1x32xf32> to vector<1x32xf32>
    %179 = vector.broadcast %178 : vector<1x32xf32> to vector<8x32xf32>
    %180 = arith.addf %176, %179 : vector<8x32xf32>
    %181 = arith.addf %180, %153 : vector<8x32xf32>
    %c0_81 = arith.constant 0 : index
    %c0_82 = arith.constant 0 : index
    %c0_83 = arith.constant 0 : index
    %182 = vector.load %arg15[%c0_81, %c0_82, %c0_83] : memref<2x1x32xf32, #tpu.memory_space<vmem>>, vector<1x1x32xf32>
    %183 = vector.shape_cast %182 : vector<1x1x32xf32> to vector<1x32xf32>
    %c0_84 = arith.constant 0 : index
    %c0_85 = arith.constant 0 : index
    %c0_86 = arith.constant 0 : index
    %184 = vector.load %arg16[%c0_84, %c0_85, %c0_86] : memref<2x1x32xf32, #tpu.memory_space<vmem>>, vector<1x1x32xf32>
    %185 = vector.shape_cast %184 : vector<1x1x32xf32> to vector<1x32xf32>
    %cst_87 = arith.constant dense<0.000000e+00> : vector<8xf32>
    %186 = vector.multi_reduction <add>, %181, %cst_87 [1] : vector<8x32xf32> to vector<8xf32>
    %187 = vector.shape_cast %186 : vector<8xf32> to vector<8x1xf32>
    %cst_88 = arith.constant 3.200000e+01 : f32
    %188 = vector.broadcast %cst_88 : f32 to vector<8x1xf32>
    %189 = arith.divf %187, %188 : vector<8x1xf32>
    %190 = vector.broadcast %189 : vector<8x1xf32> to vector<8x32xf32>
    %191 = arith.subf %181, %190 : vector<8x32xf32>
    %192 = arith.mulf %191, %191 : vector<8x32xf32>
    %cst_89 = arith.constant dense<0.000000e+00> : vector<8xf32>
    %193 = vector.multi_reduction <add>, %192, %cst_89 [1] : vector<8x32xf32> to vector<8xf32>
    %194 = vector.shape_cast %193 : vector<8xf32> to vector<8x1xf32>
    %cst_90 = arith.constant 3.200000e+01 : f32
    %195 = vector.broadcast %cst_90 : f32 to vector<8x1xf32>
    %196 = arith.divf %194, %195 : vector<8x1xf32>
    %197 = vector.broadcast %189 : vector<8x1xf32> to vector<8x32xf32>
    %198 = arith.subf %181, %197 : vector<8x32xf32>
    %cst_91 = arith.constant 9.99999996E-13 : f32
    %199 = vector.broadcast %cst_91 : f32 to vector<8x1xf32>
    %200 = arith.addf %196, %199 : vector<8x1xf32>
    %201 = math.rsqrt %200 : vector<8x1xf32>
    %202 = vector.broadcast %201 : vector<8x1xf32> to vector<8x32xf32>
    %203 = arith.mulf %198, %202 : vector<8x32xf32>
    %204 = vector.broadcast %183 : vector<1x32xf32> to vector<8x32xf32>
    %205 = arith.mulf %203, %204 : vector<8x32xf32>
    %206 = vector.broadcast %185 : vector<1x32xf32> to vector<8x32xf32>
    %207 = arith.addf %205, %206 : vector<8x32xf32>
    %c1 = arith.constant 1 : index
    %c0_92 = arith.constant 0 : index
    %c0_93 = arith.constant 0 : index
    %208 = vector.load %arg5[%c1, %c0_92, %c0_93] : memref<2x32x96xf32, #tpu.memory_space<vmem>>, vector<1x32x96xf32>
    %209 = vector.shape_cast %208 : vector<1x32x96xf32> to vector<32x96xf32>
    %cst_94 = arith.constant dense<0.000000e+00> : vector<8x96xf32>
    %210 = tpu.matmul %207, %209, %cst_94 {dimension_numbers = #tpu.dot_dimension_numbers<[1], [0], [0], [1], [0, 0, 1, 1], [], []>} : vector<8x32xf32>, vector<32x96xf32>, vector<8x96xf32> -> vector<8x96xf32>
    %c1_95 = arith.constant 1 : index
    %c0_96 = arith.constant 0 : index
    %c0_97 = arith.constant 0 : index
    %211 = vector.load %arg6[%c1_95, %c0_96, %c0_97] : memref<2x1x96xf32, #tpu.memory_space<vmem>>, vector<1x1x96xf32>
    %212 = vector.shape_cast %211 : vector<1x1x96xf32> to vector<1x96xf32>
    %213 = vector.broadcast %212 : vector<1x96xf32> to vector<8x96xf32>
    %214 = arith.addf %210, %213 : vector<8x96xf32>
    %215 = vector.extract_strided_slice %214 {offsets = [0, 0], sizes = [8, 32], strides = [1, 1]} : vector<8x96xf32> to vector<8x32xf32>
    %cst_98 = arith.constant 0.353553385 : f32
    %216 = vector.broadcast %cst_98 : f32 to vector<8x32xf32>
    %217 = arith.mulf %215, %216 : vector<8x32xf32>
    %218 = vector.extract_strided_slice %214 {offsets = [0, 32], sizes = [8, 32], strides = [1, 1]} : vector<8x96xf32> to vector<8x32xf32>
    %219 = vector.extract_strided_slice %214 {offsets = [0, 64], sizes = [8, 32], strides = [1, 1]} : vector<8x96xf32> to vector<8x32xf32>
    %220 = vector.extract_strided_slice %217 {offsets = [0, 0], sizes = [8, 8], strides = [1, 1]} : vector<8x32xf32> to vector<8x8xf32>
    %221 = vector.extract_strided_slice %218 {offsets = [0, 0], sizes = [8, 8], strides = [1, 1]} : vector<8x32xf32> to vector<8x8xf32>
    %222 = tpu.transpose %221, [1, 0] : vector<8x8xf32> -> vector<8x8xf32>
    %cst_99 = arith.constant dense<0.000000e+00> : vector<8x8xf32>
    %223 = tpu.matmul %220, %222, %cst_99 {dimension_numbers = #tpu.dot_dimension_numbers<[1], [0], [0], [1], [0, 0, 1, 1], [], []>} : vector<8x8xf32>, vector<8x8xf32>, vector<8x8xf32> -> vector<8x8xf32>
    %224 = vector.broadcast %30 : vector<1x8xf32> to vector<8x8xf32>
    %225 = arith.addf %223, %224 : vector<8x8xf32>
    %cst_100 = arith.constant dense<0xFF800000> : vector<8xf32>
    %226 = vector.multi_reduction <maximumf>, %225, %cst_100 [1] : vector<8x8xf32> to vector<8xf32>
    %227 = vector.shape_cast %226 : vector<8xf32> to vector<8x1xf32>
    %228 = vector.broadcast %227 : vector<8x1xf32> to vector<8x8xf32>
    %229 = arith.subf %225, %228 : vector<8x8xf32>
    %230 = math.exp %229 : vector<8x8xf32>
    %cst_101 = arith.constant dense<0.000000e+00> : vector<8xf32>
    %231 = vector.multi_reduction <add>, %230, %cst_101 [1] : vector<8x8xf32> to vector<8xf32>
    %232 = vector.shape_cast %231 : vector<8xf32> to vector<8x1xf32>
    %233 = tpu.reciprocal %232 {approx = true} : vector<8x1xf32> -> vector<8x1xf32>
    %234 = vector.broadcast %233 : vector<8x1xf32> to vector<8x8xf32>
    %235 = arith.mulf %230, %234 : vector<8x8xf32>
    %236 = vector.extract_strided_slice %219 {offsets = [0, 0], sizes = [8, 8], strides = [1, 1]} : vector<8x32xf32> to vector<8x8xf32>
    %cst_102 = arith.constant dense<0.000000e+00> : vector<8x8xf32>
    %237 = tpu.matmul %235, %236, %cst_102 {dimension_numbers = #tpu.dot_dimension_numbers<[1], [0], [0], [1], [0, 0, 1, 1], [], []>} : vector<8x8xf32>, vector<8x8xf32>, vector<8x8xf32> -> vector<8x8xf32>
    %c0_103 = arith.constant 0 : index
    %c0_104 = arith.constant 0 : index
    %238 = vector.load %arg18[%c0_103, %c0_104] : memref<8x32xf32, #tpu.memory_space<vmem>>, vector<8x8xf32>
    tpu.vector_store %arg18[%c0_103, %c0_104], %237 {strides = array<i32>} : memref<8x32xf32, #tpu.memory_space<vmem>>, vector<8x8xf32>,
    %239 = vector.extract_strided_slice %217 {offsets = [0, 8], sizes = [8, 8], strides = [1, 1]} : vector<8x32xf32> to vector<8x8xf32>
    %240 = vector.extract_strided_slice %218 {offsets = [0, 8], sizes = [8, 8], strides = [1, 1]} : vector<8x32xf32> to vector<8x8xf32>
    %241 = tpu.transpose %240, [1, 0] : vector<8x8xf32> -> vector<8x8xf32>
    %cst_105 = arith.constant dense<0.000000e+00> : vector<8x8xf32>
    %242 = tpu.matmul %239, %241, %cst_105 {dimension_numbers = #tpu.dot_dimension_numbers<[1], [0], [0], [1], [0, 0, 1, 1], [], []>} : vector<8x8xf32>, vector<8x8xf32>, vector<8x8xf32> -> vector<8x8xf32>
    %243 = vector.broadcast %30 : vector<1x8xf32> to vector<8x8xf32>
    %244 = arith.addf %242, %243 : vector<8x8xf32>
    %cst_106 = arith.constant dense<0xFF800000> : vector<8xf32>
    %245 = vector.multi_reduction <maximumf>, %244, %cst_106 [1] : vector<8x8xf32> to vector<8xf32>
    %246 = vector.shape_cast %245 : vector<8xf32> to vector<8x1xf32>
    %247 = vector.broadcast %246 : vector<8x1xf32> to vector<8x8xf32>
    %248 = arith.subf %244, %247 : vector<8x8xf32>
    %249 = math.exp %248 : vector<8x8xf32>
    %cst_107 = arith.constant dense<0.000000e+00> : vector<8xf32>
    %250 = vector.multi_reduction <add>, %249, %cst_107 [1] : vector<8x8xf32> to vector<8xf32>
    %251 = vector.shape_cast %250 : vector<8xf32> to vector<8x1xf32>
    %252 = tpu.reciprocal %251 {approx = true} : vector<8x1xf32> -> vector<8x1xf32>
    %253 = vector.broadcast %252 : vector<8x1xf32> to vector<8x8xf32>
    %254 = arith.mulf %249, %253 : vector<8x8xf32>
    %255 = vector.extract_strided_slice %219 {offsets = [0, 8], sizes = [8, 8], strides = [1, 1]} : vector<8x32xf32> to vector<8x8xf32>
    %cst_108 = arith.constant dense<0.000000e+00> : vector<8x8xf32>
    %256 = tpu.matmul %254, %255, %cst_108 {dimension_numbers = #tpu.dot_dimension_numbers<[1], [0], [0], [1], [0, 0, 1, 1], [], []>} : vector<8x8xf32>, vector<8x8xf32>, vector<8x8xf32> -> vector<8x8xf32>
    %c0_109 = arith.constant 0 : index
    %c8_110 = arith.constant 8 : index
    %257 = vector.load %arg18[%c0_109, %c8_110] : memref<8x32xf32, #tpu.memory_space<vmem>>, vector<8x8xf32>
    tpu.vector_store %arg18[%c0_109, %c8_110], %256 {strides = array<i32>} : memref<8x32xf32, #tpu.memory_space<vmem>>, vector<8x8xf32>,
    %258 = vector.extract_strided_slice %217 {offsets = [0, 16], sizes = [8, 8], strides = [1, 1]} : vector<8x32xf32> to vector<8x8xf32>
    %259 = vector.extract_strided_slice %218 {offsets = [0, 16], sizes = [8, 8], strides = [1, 1]} : vector<8x32xf32> to vector<8x8xf32>
    %260 = tpu.transpose %259, [1, 0] : vector<8x8xf32> -> vector<8x8xf32>
    %cst_111 = arith.constant dense<0.000000e+00> : vector<8x8xf32>
    %261 = tpu.matmul %258, %260, %cst_111 {dimension_numbers = #tpu.dot_dimension_numbers<[1], [0], [0], [1], [0, 0, 1, 1], [], []>} : vector<8x8xf32>, vector<8x8xf32>, vector<8x8xf32> -> vector<8x8xf32>
    %262 = vector.broadcast %30 : vector<1x8xf32> to vector<8x8xf32>
    %263 = arith.addf %261, %262 : vector<8x8xf32>
    %cst_112 = arith.constant dense<0xFF800000> : vector<8xf32>
    %264 = vector.multi_reduction <maximumf>, %263, %cst_112 [1] : vector<8x8xf32> to vector<8xf32>
    %265 = vector.shape_cast %264 : vector<8xf32> to vector<8x1xf32>
    %266 = vector.broadcast %265 : vector<8x1xf32> to vector<8x8xf32>
    %267 = arith.subf %263, %266 : vector<8x8xf32>
    %268 = math.exp %267 : vector<8x8xf32>
    %cst_113 = arith.constant dense<0.000000e+00> : vector<8xf32>
    %269 = vector.multi_reduction <add>, %268, %cst_113 [1] : vector<8x8xf32> to vector<8xf32>
    %270 = vector.shape_cast %269 : vector<8xf32> to vector<8x1xf32>
    %271 = tpu.reciprocal %270 {approx = true} : vector<8x1xf32> -> vector<8x1xf32>
    %272 = vector.broadcast %271 : vector<8x1xf32> to vector<8x8xf32>
    %273 = arith.mulf %268, %272 : vector<8x8xf32>
    %274 = vector.extract_strided_slice %219 {offsets = [0, 16], sizes = [8, 8], strides = [1, 1]} : vector<8x32xf32> to vector<8x8xf32>
    %cst_114 = arith.constant dense<0.000000e+00> : vector<8x8xf32>
    %275 = tpu.matmul %273, %274, %cst_114 {dimension_numbers = #tpu.dot_dimension_numbers<[1], [0], [0], [1], [0, 0, 1, 1], [], []>} : vector<8x8xf32>, vector<8x8xf32>, vector<8x8xf32> -> vector<8x8xf32>
    %c0_115 = arith.constant 0 : index
    %c16_116 = arith.constant 16 : index
    %276 = vector.load %arg18[%c0_115, %c16_116] : memref<8x32xf32, #tpu.memory_space<vmem>>, vector<8x8xf32>
    tpu.vector_store %arg18[%c0_115, %c16_116], %275 {strides = array<i32>} : memref<8x32xf32, #tpu.memory_space<vmem>>, vector<8x8xf32>,
    %277 = vector.extract_strided_slice %217 {offsets = [0, 24], sizes = [8, 8], strides = [1, 1]} : vector<8x32xf32> to vector<8x8xf32>
    %278 = vector.extract_strided_slice %218 {offsets = [0, 24], sizes = [8, 8], strides = [1, 1]} : vector<8x32xf32> to vector<8x8xf32>
    %279 = tpu.transpose %278, [1, 0] : vector<8x8xf32> -> vector<8x8xf32>
    %cst_117 = arith.constant dense<0.000000e+00> : vector<8x8xf32>
    %280 = tpu.matmul %277, %279, %cst_117 {dimension_numbers = #tpu.dot_dimension_numbers<[1], [0], [0], [1], [0, 0, 1, 1], [], []>} : vector<8x8xf32>, vector<8x8xf32>, vector<8x8xf32> -> vector<8x8xf32>
    %281 = vector.broadcast %30 : vector<1x8xf32> to vector<8x8xf32>
    %282 = arith.addf %280, %281 : vector<8x8xf32>
    %cst_118 = arith.constant dense<0xFF800000> : vector<8xf32>
    %283 = vector.multi_reduction <maximumf>, %282, %cst_118 [1] : vector<8x8xf32> to vector<8xf32>
    %284 = vector.shape_cast %283 : vector<8xf32> to vector<8x1xf32>
    %285 = vector.broadcast %284 : vector<8x1xf32> to vector<8x8xf32>
    %286 = arith.subf %282, %285 : vector<8x8xf32>
    %287 = math.exp %286 : vector<8x8xf32>
    %cst_119 = arith.constant dense<0.000000e+00> : vector<8xf32>
    %288 = vector.multi_reduction <add>, %287, %cst_119 [1] : vector<8x8xf32> to vector<8xf32>
    %289 = vector.shape_cast %288 : vector<8xf32> to vector<8x1xf32>
    %290 = tpu.reciprocal %289 {approx = true} : vector<8x1xf32> -> vector<8x1xf32>
    %291 = vector.broadcast %290 : vector<8x1xf32> to vector<8x8xf32>
    %292 = arith.mulf %287, %291 : vector<8x8xf32>
    %293 = vector.extract_strided_slice %219 {offsets = [0, 24], sizes = [8, 8], strides = [1, 1]} : vector<8x32xf32> to vector<8x8xf32>
    %cst_120 = arith.constant dense<0.000000e+00> : vector<8x8xf32>
    %294 = tpu.matmul %292, %293, %cst_120 {dimension_numbers = #tpu.dot_dimension_numbers<[1], [0], [0], [1], [0, 0, 1, 1], [], []>} : vector<8x8xf32>, vector<8x8xf32>, vector<8x8xf32> -> vector<8x8xf32>
    %c0_121 = arith.constant 0 : index
    %c24_122 = arith.constant 24 : index
    %295 = vector.load %arg18[%c0_121, %c24_122] : memref<8x32xf32, #tpu.memory_space<vmem>>, vector<8x8xf32>
    tpu.vector_store %arg18[%c0_121, %c24_122], %294 {strides = array<i32>} : memref<8x32xf32, #tpu.memory_space<vmem>>, vector<8x8xf32>,
    %c0_123 = arith.constant 0 : index
    %c0_124 = arith.constant 0 : index
    %296 = vector.load %arg18[%c0_123, %c0_124] : memref<8x32xf32, #tpu.memory_space<vmem>>, vector<8x32xf32>
    %c1_125 = arith.constant 1 : index
    %c0_126 = arith.constant 0 : index
    %c0_127 = arith.constant 0 : index
    %297 = vector.load %arg7[%c1_125, %c0_126, %c0_127] : memref<2x32x32xf32, #tpu.memory_space<vmem>>, vector<1x32x32xf32>
    %298 = vector.shape_cast %297 : vector<1x32x32xf32> to vector<32x32xf32>
    %cst_128 = arith.constant dense<0.000000e+00> : vector<8x32xf32>
    %299 = tpu.matmul %296, %298, %cst_128 {dimension_numbers = #tpu.dot_dimension_numbers<[1], [0], [0], [1], [0, 0, 1, 1], [], []>} : vector<8x32xf32>, vector<32x32xf32>, vector<8x32xf32> -> vector<8x32xf32>
    %c1_129 = arith.constant 1 : index
    %c0_130 = arith.constant 0 : index
    %c0_131 = arith.constant 0 : index
    %300 = vector.load %arg8[%c1_129, %c0_130, %c0_131] : memref<2x1x32xf32, #tpu.memory_space<vmem>>, vector<1x1x32xf32>
    %301 = vector.shape_cast %300 : vector<1x1x32xf32> to vector<1x32xf32>
    %302 = vector.broadcast %301 : vector<1x32xf32> to vector<8x32xf32>
    %303 = arith.addf %299, %302 : vector<8x32xf32>
    %304 = arith.addf %303, %207 : vector<8x32xf32>
    %c1_132 = arith.constant 1 : index
    %c0_133 = arith.constant 0 : index
    %c0_134 = arith.constant 0 : index
    %305 = vector.load %arg9[%c1_132, %c0_133, %c0_134] : memref<2x1x32xf32, #tpu.memory_space<vmem>>, vector<1x1x32xf32>
    %306 = vector.shape_cast %305 : vector<1x1x32xf32> to vector<1x32xf32>
    %c1_135 = arith.constant 1 : index
    %c0_136 = arith.constant 0 : index
    %c0_137 = arith.constant 0 : index
    %307 = vector.load %arg10[%c1_135, %c0_136, %c0_137] : memref<2x1x32xf32, #tpu.memory_space<vmem>>, vector<1x1x32xf32>
    %308 = vector.shape_cast %307 : vector<1x1x32xf32> to vector<1x32xf32>
    %cst_138 = arith.constant dense<0.000000e+00> : vector<8xf32>
    %309 = vector.multi_reduction <add>, %304, %cst_138 [1] : vector<8x32xf32> to vector<8xf32>
    %310 = vector.shape_cast %309 : vector<8xf32> to vector<8x1xf32>
    %cst_139 = arith.constant 3.200000e+01 : f32
    %311 = vector.broadcast %cst_139 : f32 to vector<8x1xf32>
    %312 = arith.divf %310, %311 : vector<8x1xf32>
    %313 = vector.broadcast %312 : vector<8x1xf32> to vector<8x32xf32>
    %314 = arith.subf %304, %313 : vector<8x32xf32>
    %315 = arith.mulf %314, %314 : vector<8x32xf32>
    %cst_140 = arith.constant dense<0.000000e+00> : vector<8xf32>
    %316 = vector.multi_reduction <add>, %315, %cst_140 [1] : vector<8x32xf32> to vector<8xf32>
    %317 = vector.shape_cast %316 : vector<8xf32> to vector<8x1xf32>
    %cst_141 = arith.constant 3.200000e+01 : f32
    %318 = vector.broadcast %cst_141 : f32 to vector<8x1xf32>
    %319 = arith.divf %317, %318 : vector<8x1xf32>
    %320 = vector.broadcast %312 : vector<8x1xf32> to vector<8x32xf32>
    %321 = arith.subf %304, %320 : vector<8x32xf32>
    %cst_142 = arith.constant 9.99999996E-13 : f32
    %322 = vector.broadcast %cst_142 : f32 to vector<8x1xf32>
    %323 = arith.addf %319, %322 : vector<8x1xf32>
    %324 = math.rsqrt %323 : vector<8x1xf32>
    %325 = vector.broadcast %324 : vector<8x1xf32> to vector<8x32xf32>
    %326 = arith.mulf %321, %325 : vector<8x32xf32>
    %327 = vector.broadcast %306 : vector<1x32xf32> to vector<8x32xf32>
    %328 = arith.mulf %326, %327 : vector<8x32xf32>
    %329 = vector.broadcast %308 : vector<1x32xf32> to vector<8x32xf32>
    %330 = arith.addf %328, %329 : vector<8x32xf32>
    %c1_143 = arith.constant 1 : index
    %c0_144 = arith.constant 0 : index
    %c0_145 = arith.constant 0 : index
    %331 = vector.load %arg11[%c1_143, %c0_144, %c0_145] : memref<2x32x64xf32, #tpu.memory_space<vmem>>, vector<1x32x64xf32>
    %332 = vector.shape_cast %331 : vector<1x32x64xf32> to vector<32x64xf32>
    %cst_146 = arith.constant dense<0.000000e+00> : vector<8x64xf32>
    %333 = tpu.matmul %330, %332, %cst_146 {dimension_numbers = #tpu.dot_dimension_numbers<[1], [0], [0], [1], [0, 0, 1, 1], [], []>} : vector<8x32xf32>, vector<32x64xf32>, vector<8x64xf32> -> vector<8x64xf32>
    %c1_147 = arith.constant 1 : index
    %c0_148 = arith.constant 0 : index
    %c0_149 = arith.constant 0 : index
    %334 = vector.load %arg12[%c1_147, %c0_148, %c0_149] : memref<2x1x64xf32, #tpu.memory_space<vmem>>, vector<1x1x64xf32>
    %335 = vector.shape_cast %334 : vector<1x1x64xf32> to vector<1x64xf32>
    %336 = vector.broadcast %335 : vector<1x64xf32> to vector<8x64xf32>
    %337 = arith.addf %333, %336 : vector<8x64xf32>
    %338 = arith.mulf %337, %337 : vector<8x64xf32>
    %339 = arith.mulf %337, %338 : vector<8x64xf32>
    %cst_150 = arith.constant 4.471500e-02 : f32
    %340 = vector.broadcast %cst_150 : f32 to vector<8x64xf32>
    %341 = arith.mulf %340, %339 : vector<8x64xf32>
    %342 = arith.addf %337, %341 : vector<8x64xf32>
    %cst_151 = arith.constant 0.797884583 : f32
    %343 = vector.broadcast %cst_151 : f32 to vector<8x64xf32>
    %344 = arith.mulf %343, %342 : vector<8x64xf32>
    %345 = math.tanh %344 : vector<8x64xf32>
    %cst_152 = arith.constant 1.000000e+00 : f32
    %346 = vector.broadcast %cst_152 : f32 to vector<8x64xf32>
    %347 = arith.addf %346, %345 : vector<8x64xf32>
    %cst_153 = arith.constant 5.000000e-01 : f32
    %348 = vector.broadcast %cst_153 : f32 to vector<8x64xf32>
    %349 = arith.mulf %348, %347 : vector<8x64xf32>
    %350 = arith.mulf %337, %349 : vector<8x64xf32>
    %c1_154 = arith.constant 1 : index
    %c0_155 = arith.constant 0 : index
    %c0_156 = arith.constant 0 : index
    %351 = vector.load %arg13[%c1_154, %c0_155, %c0_156] : memref<2x64x32xf32, #tpu.memory_space<vmem>>, vector<1x64x32xf32>
    %352 = vector.shape_cast %351 : vector<1x64x32xf32> to vector<64x32xf32>
    %cst_157 = arith.constant dense<0.000000e+00> : vector<8x32xf32>
    %353 = tpu.matmul %350, %352, %cst_157 {dimension_numbers = #tpu.dot_dimension_numbers<[1], [0], [0], [1], [0, 0, 1, 1], [], []>} : vector<8x64xf32>, vector<64x32xf32>, vector<8x32xf32> -> vector<8x32xf32>
    %c1_158 = arith.constant 1 : index
    %c0_159 = arith.constant 0 : index
    %c0_160 = arith.constant 0 : index
    %354 = vector.load %arg14[%c1_158, %c0_159, %c0_160] : memref<2x1x32xf32, #tpu.memory_space<vmem>>, vector<1x1x32xf32>
    %355 = vector.shape_cast %354 : vector<1x1x32xf32> to vector<1x32xf32>
    %356 = vector.broadcast %355 : vector<1x32xf32> to vector<8x32xf32>
    %357 = arith.addf %353, %356 : vector<8x32xf32>
    %358 = arith.addf %357, %330 : vector<8x32xf32>
    %c1_161 = arith.constant 1 : index
    %c0_162 = arith.constant 0 : index
    %c0_163 = arith.constant 0 : index
    %359 = vector.load %arg15[%c1_161, %c0_162, %c0_163] : memref<2x1x32xf32, #tpu.memory_space<vmem>>, vector<1x1x32xf32>
    %360 = vector.shape_cast %359 : vector<1x1x32xf32> to vector<1x32xf32>
    %c1_164 = arith.constant 1 : index
    %c0_165 = arith.constant 0 : index
    %c0_166 = arith.constant 0 : index
    %361 = vector.load %arg16[%c1_164, %c0_165, %c0_166] : memref<2x1x32xf32, #tpu.memory_space<vmem>>, vector<1x1x32xf32>
    %362 = vector.shape_cast %361 : vector<1x1x32xf32> to vector<1x32xf32>
    %cst_167 = arith.constant dense<0.000000e+00> : vector<8xf32>
    %363 = vector.multi_reduction <add>, %358, %cst_167 [1] : vector<8x32xf32> to vector<8xf32>
    %364 = vector.shape_cast %363 : vector<8xf32> to vector<8x1xf32>
    %cst_168 = arith.constant 3.200000e+01 : f32
    %365 = vector.broadcast %cst_168 : f32 to vector<8x1xf32>
    %366 = arith.divf %364, %365 : vector<8x1xf32>
    %367 = vector.broadcast %366 : vector<8x1xf32> to vector<8x32xf32>
    %368 = arith.subf %358, %367 : vector<8x32xf32>
    %369 = arith.mulf %368, %368 : vector<8x32xf32>
    %cst_169 = arith.constant dense<0.000000e+00> : vector<8xf32>
    %370 = vector.multi_reduction <add>, %369, %cst_169 [1] : vector<8x32xf32> to vector<8xf32>
    %371 = vector.shape_cast %370 : vector<8xf32> to vector<8x1xf32>
    %cst_170 = arith.constant 3.200000e+01 : f32
    %372 = vector.broadcast %cst_170 : f32 to vector<8x1xf32>
    %373 = arith.divf %371, %372 : vector<8x1xf32>
    %374 = vector.broadcast %366 : vector<8x1xf32> to vector<8x32xf32>
    %375 = arith.subf %358, %374 : vector<8x32xf32>
    %cst_171 = arith.constant 9.99999996E-13 : f32
    %376 = vector.broadcast %cst_171 : f32 to vector<8x1xf32>
    %377 = arith.addf %373, %376 : vector<8x1xf32>
    %378 = math.rsqrt %377 : vector<8x1xf32>
    %379 = vector.broadcast %378 : vector<8x1xf32> to vector<8x32xf32>
    %380 = arith.mulf %375, %379 : vector<8x32xf32>
    %381 = vector.broadcast %360 : vector<1x32xf32> to vector<8x32xf32>
    %382 = arith.mulf %380, %381 : vector<8x32xf32>
    %383 = vector.broadcast %362 : vector<1x32xf32> to vector<8x32xf32>
    %384 = arith.addf %382, %383 : vector<8x32xf32>
    %385 = vector.extract_strided_slice %384 {offsets = [0, 0], sizes = [1, 32], strides = [1, 1]} : vector<8x32xf32> to vector<1x32xf32>
    %c0_172 = arith.constant 0 : index
    %c0_173 = arith.constant 0 : index
    %c0_174 = arith.constant 0 : index
    %386 = vector.load %arg17[%c0_172, %c0_173, %c0_174] : memref<1x1x32xf32, #tpu.memory_space<vmem>>, vector<1x1x32xf32>
    %387 = vector.shape_cast %386 : vector<1x1x32xf32> to vector<1x32xf32>
    %388 = vector.shape_cast %385 : vector<1x32xf32> to vector<1x1x32xf32>
    tpu.vector_store %arg17[%c0_172, %c0_173, %c0_174], %388 {strides = array<i32>} : memref<1x1x32xf32, #tpu.memory_space<vmem>>, vector<1x1x32xf32>,
    return
  }
  func.func @transform_0(%arg0: i32) -> (i32, i32) {
    %c0_i32 = arith.constant 0 : i32
    %c0_i32_0 = arith.constant 0 : i32
    return %arg0, %c0_i32 : i32, i32
  }
  func.func @transform_1(%arg0: i32) -> (i32, i32, i32) {
    %c0_i32 = arith.constant 0 : i32
    %c0_i32_0 = arith.constant 0 : i32
    %c0_i32_1 = arith.constant 0 : i32
    return %arg0, %c0_i32, %c0_i32_0 : i32, i32, i32
  }
  func.func @transform_2(%arg0: i32) -> (i32, i32) {
    %c0_i32 = arith.constant 0 : i32
    %c0_i32_0 = arith.constant 0 : i32
    %c0_i32_1 = arith.constant 0 : i32
    return %c0_i32, %c0_i32_0 : i32, i32
  }
  func.func @transform_3(%arg0: i32) -> (i32, i32) {
    %c0_i32 = arith.constant 0 : i32
    %c0_i32_0 = arith.constant 0 : i32
    %c0_i32_1 = arith.constant 0 : i32
    return %c0_i32, %c0_i32_0 : i32, i32
  }
  func.func @transform_4(%arg0: i32) -> (i32, i32, i32) {
    %c0_i32 = arith.constant 0 : i32
    %c0_i32_0 = arith.constant 0 : i32
    %c0_i32_1 = arith.constant 0 : i32
    %c0_i32_2 = arith.constant 0 : i32
    return %c0_i32, %c0_i32_0, %c0_i32_1 : i32, i32, i32
  }
  func.func @transform_5(%arg0: i32) -> (i32, i32, i32) {
    %c0_i32 = arith.constant 0 : i32
    %c0_i32_0 = arith.constant 0 : i32
    %c0_i32_1 = arith.constant 0 : i32
    %c0_i32_2 = arith.constant 0 : i32
    return %c0_i32, %c0_i32_0, %c0_i32_1 : i32, i32, i32
  }
  func.func @transform_6(%arg0: i32) -> (i32, i32, i32) {
    %c0_i32 = arith.constant 0 : i32
    %c0_i32_0 = arith.constant 0 : i32
    %c0_i32_1 = arith.constant 0 : i32
    %c0_i32_2 = arith.constant 0 : i32
    return %c0_i32, %c0_i32_0, %c0_i32_1 : i32, i32, i32
  }
  func.func @transform_7(%arg0: i32) -> (i32, i32, i32) {
    %c0_i32 = arith.constant 0 : i32
    %c0_i32_0 = arith.constant 0 : i32
    %c0_i32_1 = arith.constant 0 : i32
    %c0_i32_2 = arith.constant 0 : i32
    return %c0_i32, %c0_i32_0, %c0_i32_1 : i32, i32, i32
  }
  func.func @transform_8(%arg0: i32) -> (i32, i32, i32) {
    %c0_i32 = arith.constant 0 : i32
    %c0_i32_0 = arith.constant 0 : i32
    %c0_i32_1 = arith.constant 0 : i32
    %c0_i32_2 = arith.constant 0 : i32
    return %c0_i32, %c0_i32_0, %c0_i32_1 : i32, i32, i32
  }
  func.func @transform_9(%arg0: i32) -> (i32, i32, i32) {
    %c0_i32 = arith.constant 0 : i32
    %c0_i32_0 = arith.constant 0 : i32
    %c0_i32_1 = arith.constant 0 : i32
    %c0_i32_2 = arith.constant 0 : i32
    return %c0_i32, %c0_i32_0, %c0_i32_1 : i32, i32, i32
  }
  func.func @transform_10(%arg0: i32) -> (i32, i32, i32) {
    %c0_i32 = arith.constant 0 : i32
    %c0_i32_0 = arith.constant 0 : i32
    %c0_i32_1 = arith.constant 0 : i32
    %c0_i32_2 = arith.constant 0 : i32
    return %c0_i32, %c0_i32_0, %c0_i32_1 : i32, i32, i32
  }
  func.func @transform_11(%arg0: i32) -> (i32, i32, i32) {
    %c0_i32 = arith.constant 0 : i32
    %c0_i32_0 = arith.constant 0 : i32
    %c0_i32_1 = arith.constant 0 : i32
    %c0_i32_2 = arith.constant 0 : i32
    return %c0_i32, %c0_i32_0, %c0_i32_1 : i32, i32, i32
  }
  func.func @transform_12(%arg0: i32) -> (i32, i32, i32) {
    %c0_i32 = arith.constant 0 : i32
    %c0_i32_0 = arith.constant 0 : i32
    %c0_i32_1 = arith.constant 0 : i32
    %c0_i32_2 = arith.constant 0 : i32
    return %c0_i32, %c0_i32_0, %c0_i32_1 : i32, i32, i32
  }
  func.func @transform_13(%arg0: i32) -> (i32, i32, i32) {
    %c0_i32 = arith.constant 0 : i32
    %c0_i32_0 = arith.constant 0 : i32
    %c0_i32_1 = arith.constant 0 : i32
    %c0_i32_2 = arith.constant 0 : i32
    return %c0_i32, %c0_i32_0, %c0_i32_1 : i32, i32, i32
  }
  func.func @transform_14(%arg0: i32) -> (i32, i32, i32) {
    %c0_i32 = arith.constant 0 : i32
    %c0_i32_0 = arith.constant 0 : i32
    %c0_i32_1 = arith.constant 0 : i32
    %c0_i32_2 = arith.constant 0 : i32
    return %c0_i32, %c0_i32_0, %c0_i32_1 : i32, i32, i32
  }
  func.func @transform_15(%arg0: i32) -> (i32, i32, i32) {
    %c0_i32 = arith.constant 0 : i32
    %c0_i32_0 = arith.constant 0 : i32
    %c0_i32_1 = arith.constant 0 : i32
    %c0_i32_2 = arith.constant 0 : i32
    return %c0_i32, %c0_i32_0, %c0_i32_1 : i32, i32, i32
  }
  func.func @transform_16(%arg0: i32) -> (i32, i32, i32) {
    %c0_i32 = arith.constant 0 : i32
    %c0_i32_0 = arith.constant 0 : i32
    %c0_i32_1 = arith.constant 0 : i32
    return %arg0, %c0_i32, %c0_i32_0 : i32, i32, i32
  }
}

</mosaic_0001>

<llo_original>
// kernel: tpu_custom_call.1
$region0: #{tpu_custom_call.1}
  #allocation0 [shape = 'u32[]', space=smem, size = 0x4, offset = 0x4, fixed_abs, tag = 'smem constant byte address 0x4 - core index']
  #allocation1 [shape = 'u32[144,128]{1,0:T(1,128)}', space=vmem, size = 0x12000, scoped, tag = 'internal scratch']
  #allocation2 [shape = 'f32[8,32]{1,0:T(8,128)}', space=vmem, size = 0x1000, scoped, tag = 'scratch operand']
  %s0 = inlined_call_operand.hbm [shape: f32[16,32], index: 0, kind: input, shape index: {}]
  %s1 = inlined_call_operand.hbm [shape: f32[2,1,8], index: 1, kind: input, shape index: {}]
  %s2 = inlined_call_operand.hbm [shape: f32[1,32], index: 2, kind: input, shape index: {}]
  %s3 = inlined_call_operand.hbm [shape: f32[1,32], index: 3, kind: input, shape index: {}]
  %s4 = inlined_call_operand.vmem [shape: f32[2,32,96], index: 4, kind: input, shape index: {}]
  %s5 = inlined_call_operand.vmem [shape: f32[2,1,96], index: 5, kind: input, shape index: {}]
  %s6 = inlined_call_operand.vmem [shape: f32[2,32,32], index: 6, kind: input, shape index: {}]
  %s7 = inlined_call_operand.vmem [shape: f32[2,1,32], index: 7, kind: input, shape index: {}]
  %s8 = inlined_call_operand.vmem [shape: f32[2,1,32], index: 8, kind: input, shape index: {}]
  %s9 = inlined_call_operand.vmem [shape: f32[2,1,32], index: 9, kind: input, shape index: {}]
  %s10 = inlined_call_operand.vmem [shape: f32[2,32,64], index: 10, kind: input, shape index: {}]
  %s11 = inlined_call_operand.vmem [shape: f32[2,1,64], index: 11, kind: input, shape index: {}]
  %s12 = inlined_call_operand.vmem [shape: f32[2,64,32], index: 12, kind: input, shape index: {}]
  %s13 = inlined_call_operand.vmem [shape: f32[2,1,32], index: 13, kind: input, shape index: {}]
  %s14 = inlined_call_operand.vmem [shape: f32[2,1,32], index: 14, kind: input, shape index: {}]
  %s15 = inlined_call_operand.vmem [shape: f32[2,1,32], index: 15, kind: input, shape index: {}]
  %s16 = inlined_call_operand.hbm [shape: f32[2,1,32], index: 16, kind: output, shape index: {}]
  %s17 = sld [smem:[#allocation0]]
  $region113: #{tpu_custom_call.1} parent=0
    _
  %s19 = ssub.s32 1, %s17
  %s20 = scalar_select 0, %s19, %s17
  $region1: #{tpu_custom_call.1} parent=0
    #allocation3 [shape = 'u8[8192]{0}', space=vmem, size = 0x2000, scoped, tag = 'input window, operand 0']
    #allocation4 [shape = 's32[2]{0}', space=sflag, size = 0x8, scoped, tag = 'scoped memory for tpu_custom_call.1']
    #allocation5 [shape = 's32[2]{0}', space=sflag, size = 0x8, scoped, tag = 'scoped memory for tpu_custom_call.1']
    #allocation6 [shape = 'u8[1024]{0}', space=vmem, size = 0x400, scoped, tag = 'input window, operand 1']
    #allocation7 [shape = 's32[2]{0}', space=sflag, size = 0x8, scoped, tag = 'scoped memory for tpu_custom_call.1']
    #allocation8 [shape = 'u8[512]{0}', space=vmem, size = 0x400, scoped, tag = 'input window, operand 2, single buffered']
    #allocation9 [shape = 'u8[512]{0}', space=vmem, size = 0x400, scoped, tag = 'input window, operand 3, single buffered']
    #allocation10 [shape = 's32[1]{0}', space=sflag, size = 0x4, scoped, tag = 'scoped memory for tpu_custom_call.1']
    #allocation11 [shape = 'u8[1024]{0}', space=vmem, size = 0x400, scoped, tag = 'output window, operand 0']
    %21 = vsyncpa [#allocation4], 0
    %s22 = scalar_lea.sflag [#allocation4], 1
    %23 = vsyncpa %s22, 0
    %24 = vsyncpa [#allocation7], 0
    %s25 = scalar_lea.sflag [#allocation7], 1
    %26 = vsyncpa %s25, 0
    %27 = vsyncpa [#allocation10], 0
    %28 = vsyncpa [#allocation5], 0
    %s29 = scalar_lea.sflag [#allocation5], 1
    %30 = vsyncpa %s29, 0
    loop: start=0, step=1, limit=4
    $region2: #{tpu_custom_call.1} parent=1 // loop_pre_header
      _
    $region3: #{tpu_custom_call.1} parent=1 // loop_header
      %s32 = sphi 0, %s36
      %p33 = scmp.ge.s32.totalorder %s32, 4
      %s42 = sphi 0, %s44
      %s45 = sphi 0, %s42
      %s46 = sphi 0, %s45
      %s62 = sphi 0, %s46
      %s68 = sphi 0, %s70
      %s71 = sphi 0, %s68
      %s72 = sphi 0, %s71
      %s88 = sphi 0, %s72
      %s92 = sphi 0, %s92
      %s94 = sphi 0, %s92
      %s95 = sphi 0, %s94
      %s109 = sphi 0, %s95
      %s113 = sphi 0, %s113
      %s115 = sphi 0, %s113
      %s116 = sphi 0, %s115
      %s130 = sphi 0, %s116
      %s134 = sphi 0, %s134
      %s136 = sphi 0, %s134
      %s137 = sphi 0, %s136
      %s151 = sphi 0, %s137
      %s155 = sphi 0, %s155
      %s157 = sphi 0, %s155
      %s158 = sphi 0, %s157
      %s172 = sphi 0, %s158
      %s176 = sphi 0, %s176
      %s178 = sphi 0, %s176
      %s179 = sphi 0, %s178
      %s193 = sphi 0, %s179
      %s197 = sphi 0, %s197
      %s199 = sphi 0, %s197
      %s200 = sphi 0, %s199
      %s214 = sphi 0, %s200
      %s218 = sphi 0, %s218
      %s220 = sphi 0, %s218
      %s221 = sphi 0, %s220
      %s235 = sphi 0, %s221
      %s239 = sphi 0, %s239
      %s241 = sphi 0, %s239
      %s242 = sphi 0, %s241
      %s256 = sphi 0, %s242
      %s260 = sphi 0, %s260
      %s262 = sphi 0, %s260
      %s263 = sphi 0, %s262
      %s277 = sphi 0, %s263
      %s281 = sphi 0, %s281
      %s283 = sphi 0, %s281
      %s284 = sphi 0, %s283
      %s298 = sphi 0, %s284
      %s302 = sphi 0, %s302
      %s304 = sphi 0, %s302
      %s305 = sphi 0, %s304
      %s319 = sphi 0, %s305
      %s323 = sphi 0, %s323
      %s325 = sphi 0, %s323
      %s326 = sphi 0, %s325
      %s340 = sphi 0, %s326
      %s344 = sphi 0, %s344
      %s346 = sphi 0, %s344
      %s347 = sphi 0, %s346
      %s361 = sphi 0, %s347
      %s365 = sphi 0, %s365
      %s367 = sphi 0, %s365
      %s368 = sphi 0, %s367
      %s382 = sphi 0, %s368
      %s388 = sphi 0, %s390
      %s391 = sphi 0, %s388
      %s392 = sphi 0, %s391
      %s408 = sphi 0, %s392
    $region4: #{tpu_custom_call.1} parent=1 // loop_header_branch
      %35 = sbr.rel (%p33) target = $region8
    $region5: #{tpu_custom_call.1} parent=1 // loop_body
      %s37 = ssub.s32 %s32, 1
      %s38 = ssub.s32 %s32, 2
      %s39 = sadd.s32 %s32, 1
      %s40 = ssub.s32 %s32, %s39
      %p41 = scmp.eq.s32.totalorder %s40, 0
      %s43 = sadd.s32 %s42, 1
      %s44 = scalar_select %p41, %s42, %s43
      %p47 = pneg %p41
      %p48 = scmp.eq.s32.totalorder %s32, 1
      %p49 = por %p47, %p48
      %p50 = scmp.ne.s32.totalorder %s42, %s45
      %p51 = scmp.eq.s32.totalorder %s32, 0
      %p52 = por %p50, %p51
      %p53 = scmp.ne.s32.totalorder %s42, %s45
      %p54 = scmp.eq.s32.totalorder %s37, 1
      %p55 = por %p53, %p54
      %p56 = scmp.ne.s32.totalorder %s45, %s46
      %p57 = scmp.eq.s32.totalorder %s37, 0
      %p58 = por %p56, %p57
      %p59 = scmp.ne.s32.totalorder %s45, %s46
      %p60 = scmp.eq.s32.totalorder %s38, 1
      %p61 = por %p59, %p60
      %p63 = scmp.ne.s32.totalorder %s46, %s62
      %p64 = scmp.eq.s32.totalorder %s38, 0
      %p65 = por %p63, %p64
      %s66 = ssub.s32 %s32, %s39
      %p67 = scmp.eq.s32.totalorder %s66, 0
      %s69 = sadd.s32 %s68, 1
      %s70 = scalar_select %p67, %s68, %s69
      %p73 = pneg %p67
      %p74 = scmp.eq.s32.totalorder %s32, 1
      %p75 = por %p73, %p74
      %p76 = scmp.ne.s32.totalorder %s68, %s71
      %p77 = scmp.eq.s32.totalorder %s32, 0
      %p78 = por %p76, %p77
      %p79 = scmp.ne.s32.totalorder %s68, %s71
      %p80 = scmp.eq.s32.totalorder %s37, 1
      %p81 = por %p79, %p80
      %p82 = scmp.ne.s32.totalorder %s71, %s72
      %p83 = scmp.eq.s32.totalorder %s37, 0
      %p84 = por %p82, %p83
      %p85 = scmp.ne.s32.totalorder %s71, %s72
      %p86 = scmp.eq.s32.totalorder %s38, 1
      %p87 = por %p85, %p86
      %p89 = scmp.ne.s32.totalorder %s72, %s88
      %p90 = scmp.eq.s32.totalorder %s38, 0
      %p91 = por %p89, %p90
      %s93 = sadd.s32 %s92, 1
      %p96 = scmp.eq.s32.totalorder %s32, 1
      %p97 = scmp.ne.s32.totalorder %s92, %s94
      %p98 = scmp.eq.s32.totalorder %s32, 0
      %p99 = por %p97, %p98
      %p100 = scmp.ne.s32.totalorder %s92, %s94
      %p101 = scmp.eq.s32.totalorder %s37, 1
      %p102 = por %p100, %p101
      %p103 = scmp.ne.s32.totalorder %s94, %s95
      %p104 = scmp.eq.s32.totalorder %s37, 0
      %p105 = por %p103, %p104
      %p106 = scmp.ne.s32.totalorder %s94, %s95
      %p107 = scmp.eq.s32.totalorder %s38, 1
      %p108 = por %p106, %p107
      %p110 = scmp.ne.s32.totalorder %s95, %s109
      %p111 = scmp.eq.s32.totalorder %s38, 0
      %p112 = por %p110, %p111
      %s114 = sadd.s32 %s113, 1
      %p117 = scmp.eq.s32.totalorder %s32, 1
      %p118 = scmp.ne.s32.totalorder %s113, %s115
      %p119 = scmp.eq.s32.totalorder %s32, 0
      %p120 = por %p118, %p119
      %p121 = scmp.ne.s32.totalorder %s113, %s115
      %p122 = scmp.eq.s32.totalorder %s37, 1
      %p123 = por %p121, %p122
      %p124 = scmp.ne.s32.totalorder %s115, %s116
      %p125 = scmp.eq.s32.totalorder %s37, 0
      %p126 = por %p124, %p125
      %p127 = scmp.ne.s32.totalorder %s115, %s116
      %p128 = scmp.eq.s32.totalorder %s38, 1
      %p129 = por %p127, %p128
      %p131 = scmp.ne.s32.totalorder %s116, %s130
      %p132 = scmp.eq.s32.totalorder %s38, 0
      %p133 = por %p131, %p132
      %s135 = sadd.s32 %s134, 1
      %p138 = scmp.eq.s32.totalorder %s32, 1
      %p139 = scmp.ne.s32.totalorder %s134, %s136
      %p140 = scmp.eq.s32.totalorder %s32, 0
      %p141 = por %p139, %p140
      %p142 = scmp.ne.s32.totalorder %s134, %s136
      %p143 = scmp.eq.s32.totalorder %s37, 1
      %p144 = por %p142, %p143
      %p145 = scmp.ne.s32.totalorder %s136, %s137
      %p146 = scmp.eq.s32.totalorder %s37, 0
      %p147 = por %p145, %p146
      %p148 = scmp.ne.s32.totalorder %s136, %s137
      %p149 = scmp.eq.s32.totalorder %s38, 1
      %p150 = por %p148, %p149
      %p152 = scmp.ne.s32.totalorder %s137, %s151
      %p153 = scmp.eq.s32.totalorder %s38, 0
      %p154 = por %p152, %p153
      %s156 = sadd.s32 %s155, 1
      %p159 = scmp.eq.s32.totalorder %s32, 1
      %p160 = scmp.ne.s32.totalorder %s155, %s157
      %p161 = scmp.eq.s32.totalorder %s32, 0
      %p162 = por %p160, %p161
      %p163 = scmp.ne.s32.totalorder %s155, %s157
      %p164 = scmp.eq.s32.totalorder %s37, 1
      %p165 = por %p163, %p164
      %p166 = scmp.ne.s32.totalorder %s157, %s158
      %p167 = scmp.eq.s32.totalorder %s37, 0
      %p168 = por %p166, %p167
      %p169 = scmp.ne.s32.totalorder %s157, %s158
      %p170 = scmp.eq.s32.totalorder %s38, 1
      %p171 = por %p169, %p170
      %p173 = scmp.ne.s32.totalorder %s158, %s172
      %p174 = scmp.eq.s32.totalorder %s38, 0
      %p175 = por %p173, %p174
      %s177 = sadd.s32 %s176, 1
      %p180 = scmp.eq.s32.totalorder %s32, 1
      %p181 = scmp.ne.s32.totalorder %s176, %s178
      %p182 = scmp.eq.s32.totalorder %s32, 0
      %p183 = por %p181, %p182
      %p184 = scmp.ne.s32.totalorder %s176, %s178
      %p185 = scmp.eq.s32.totalorder %s37, 1
      %p186 = por %p184, %p185
      %p187 = scmp.ne.s32.totalorder %s178, %s179
      %p188 = scmp.eq.s32.totalorder %s37, 0
      %p189 = por %p187, %p188
      %p190 = scmp.ne.s32.totalorder %s178, %s179
      %p191 = scmp.eq.s32.totalorder %s38, 1
      %p192 = por %p190, %p191
      %p194 = scmp.ne.s32.totalorder %s179, %s193
      %p195 = scmp.eq.s32.totalorder %s38, 0
      %p196 = por %p194, %p195
      %s198 = sadd.s32 %s197, 1
      %p201 = scmp.eq.s32.totalorder %s32, 1
      %p202 = scmp.ne.s32.totalorder %s197, %s199
      %p203 = scmp.eq.s32.totalorder %s32, 0
      %p204 = por %p202, %p203
      %p205 = scmp.ne.s32.totalorder %s197, %s199
      %p206 = scmp.eq.s32.totalorder %s37, 1
      %p207 = por %p205, %p206
      %p208 = scmp.ne.s32.totalorder %s199, %s200
      %p209 = scmp.eq.s32.totalorder %s37, 0
      %p210 = por %p208, %p209
      %p211 = scmp.ne.s32.totalorder %s199, %s200
      %p212 = scmp.eq.s32.totalorder %s38, 1
      %p213 = por %p211, %p212
      %p215 = scmp.ne.s32.totalorder %s200, %s214
      %p216 = scmp.eq.s32.totalorder %s38, 0
      %p217 = por %p215, %p216
      %s219 = sadd.s32 %s218, 1
      %p222 = scmp.eq.s32.totalorder %s32, 1
      %p223 = scmp.ne.s32.totalorder %s218, %s220
      %p224 = scmp.eq.s32.totalorder %s32, 0
      %p225 = por %p223, %p224
      %p226 = scmp.ne.s32.totalorder %s218, %s220
      %p227 = scmp.eq.s32.totalorder %s37, 1
      %p228 = por %p226, %p227
      %p229 = scmp.ne.s32.totalorder %s220, %s221
      %p230 = scmp.eq.s32.totalorder %s37, 0
      %p231 = por %p229, %p230
      %p232 = scmp.ne.s32.totalorder %s220, %s221
      %p233 = scmp.eq.s32.totalorder %s38, 1
      %p234 = por %p232, %p233
      %p236 = scmp.ne.s32.totalorder %s221, %s235
      %p237 = scmp.eq.s32.totalorder %s38, 0
      %p238 = por %p236, %p237
      %s240 = sadd.s32 %s239, 1
      %p243 = scmp.eq.s32.totalorder %s32, 1
      %p244 = scmp.ne.s32.totalorder %s239, %s241
      %p245 = scmp.eq.s32.totalorder %s32, 0
      %p246 = por %p244, %p245
      %p247 = scmp.ne.s32.totalorder %s239, %s241
      %p248 = scmp.eq.s32.totalorder %s37, 1
      %p249 = por %p247, %p248
      %p250 = scmp.ne.s32.totalorder %s241, %s242
      %p251 = scmp.eq.s32.totalorder %s37, 0
      %p252 = por %p250, %p251
      %p253 = scmp.ne.s32.totalorder %s241, %s242
      %p254 = scmp.eq.s32.totalorder %s38, 1
      %p255 = por %p253, %p254
      %p257 = scmp.ne.s32.totalorder %s242, %s256
      %p258 = scmp.eq.s32.totalorder %s38, 0
      %p259 = por %p257, %p258
      %s261 = sadd.s32 %s260, 1
      %p264 = scmp.eq.s32.totalorder %s32, 1
      %p265 = scmp.ne.s32.totalorder %s260, %s262
      %p266 = scmp.eq.s32.totalorder %s32, 0
      %p267 = por %p265, %p266
      %p268 = scmp.ne.s32.totalorder %s260, %s262
      %p269 = scmp.eq.s32.totalorder %s37, 1
      %p270 = por %p268, %p269
      %p271 = scmp.ne.s32.totalorder %s262, %s263
      %p272 = scmp.eq.s32.totalorder %s37, 0
      %p273 = por %p271, %p272
      %p274 = scmp.ne.s32.totalorder %s262, %s263
      %p275 = scmp.eq.s32.totalorder %s38, 1
      %p276 = por %p274, %p275
      %p278 = scmp.ne.s32.totalorder %s263, %s277
      %p279 = scmp.eq.s32.totalorder %s38, 0
      %p280 = por %p278, %p279
      %s282 = sadd.s32 %s281, 1
      %p285 = scmp.eq.s32.totalorder %s32, 1
      %p286 = scmp.ne.s32.totalorder %s281, %s283
      %p287 = scmp.eq.s32.totalorder %s32, 0
      %p288 = por %p286, %p287
      %p289 = scmp.ne.s32.totalorder %s281, %s283
      %p290 = scmp.eq.s32.totalorder %s37, 1
      %p291 = por %p289, %p290
      %p292 = scmp.ne.s32.totalorder %s283, %s284
      %p293 = scmp.eq.s32.totalorder %s37, 0
      %p294 = por %p292, %p293
      %p295 = scmp.ne.s32.totalorder %s283, %s284
      %p296 = scmp.eq.s32.totalorder %s38, 1
      %p297 = por %p295, %p296
      %p299 = scmp.ne.s32.totalorder %s284, %s298
      %p300 = scmp.eq.s32.totalorder %s38, 0
      %p301 = por %p299, %p300
      %s303 = sadd.s32 %s302, 1
      %p306 = scmp.eq.s32.totalorder %s32, 1
      %p307 = scmp.ne.s32.totalorder %s302, %s304
      %p308 = scmp.eq.s32.totalorder %s32, 0
      %p309 = por %p307, %p308
      %p310 = scmp.ne.s32.totalorder %s302, %s304
      %p311 = scmp.eq.s32.totalorder %s37, 1
      %p312 = por %p310, %p311
      %p313 = scmp.ne.s32.totalorder %s304, %s305
      %p314 = scmp.eq.s32.totalorder %s37, 0
      %p315 = por %p313, %p314
      %p316 = scmp.ne.s32.totalorder %s304, %s305
      %p317 = scmp.eq.s32.totalorder %s38, 1
      %p318 = por %p316, %p317
      %p320 = scmp.ne.s32.totalorder %s305, %s319
      %p321 = scmp.eq.s32.totalorder %s38, 0
      %p322 = por %p320, %p321
      %s324 = sadd.s32 %s323, 1
      %p327 = scmp.eq.s32.totalorder %s32, 1
      %p328 = scmp.ne.s32.totalorder %s323, %s325
      %p329 = scmp.eq.s32.totalorder %s32, 0
      %p330 = por %p328, %p329
      %p331 = scmp.ne.s32.totalorder %s323, %s325
      %p332 = scmp.eq.s32.totalorder %s37, 1
      %p333 = por %p331, %p332
      %p334 = scmp.ne.s32.totalorder %s325, %s326
      %p335 = scmp.eq.s32.totalorder %s37, 0
      %p336 = por %p334, %p335
      %p337 = scmp.ne.s32.totalorder %s325, %s326
      %p338 = scmp.eq.s32.totalorder %s38, 1
      %p339 = por %p337, %p338
      %p341 = scmp.ne.s32.totalorder %s326, %s340
      %p342 = scmp.eq.s32.totalorder %s38, 0
      %p343 = por %p341, %p342
      %s345 = sadd.s32 %s344, 1
      %p348 = scmp.eq.s32.totalorder %s32, 1
      %p349 = scmp.ne.s32.totalorder %s344, %s346
      %p350 = scmp.eq.s32.totalorder %s32, 0
      %p351 = por %p349, %p350
      %p352 = scmp.ne.s32.totalorder %s344, %s346
      %p353 = scmp.eq.s32.totalorder %s37, 1
      %p354 = por %p352, %p353
      %p355 = scmp.ne.s32.totalorder %s346, %s347
      %p356 = scmp.eq.s32.totalorder %s37, 0
      %p357 = por %p355, %p356
      %p358 = scmp.ne.s32.totalorder %s346, %s347
      %p359 = scmp.eq.s32.totalorder %s38, 1
      %p360 = por %p358, %p359
      %p362 = scmp.ne.s32.totalorder %s347, %s361
      %p363 = scmp.eq.s32.totalorder %s38, 0
      %p364 = por %p362, %p363
      %s366 = sadd.s32 %s365, 1
      %p369 = scmp.eq.s32.totalorder %s32, 1
      %p370 = scmp.ne.s32.totalorder %s365, %s367
      %p371 = scmp.eq.s32.totalorder %s32, 0
      %p372 = por %p370, %p371
      %p373 = scmp.ne.s32.totalorder %s365, %s367
      %p374 = scmp.eq.s32.totalorder %s37, 1
      %p375 = por %p373, %p374
      %p376 = scmp.ne.s32.totalorder %s367, %s368
      %p377 = scmp.eq.s32.totalorder %s37, 0
      %p378 = por %p376, %p377
      %p379 = scmp.ne.s32.totalorder %s367, %s368
      %p380 = scmp.eq.s32.totalorder %s38, 1
      %p381 = por %p379, %p380
      %p383 = scmp.ne.s32.totalorder %s368, %s382
      %p384 = scmp.eq.s32.totalorder %s38, 0
      %p385 = por %p383, %p384
      %s386 = ssub.s32 %s32, %s39
      %p387 = scmp.eq.s32.totalorder %s386, 0
      %s389 = sadd.s32 %s388, 1
      %s390 = scalar_select %p387, %s388, %s389
      %p393 = pneg %p387
      %p394 = scmp.eq.s32.totalorder %s32, 1
      %p395 = por %p393, %p394
      %p396 = scmp.ne.s32.totalorder %s388, %s391
      %p397 = scmp.eq.s32.totalorder %s32, 0
      %p398 = por %p396, %p397
      %p399 = scmp.ne.s32.totalorder %s388, %s391
      %p400 = scmp.eq.s32.totalorder %s37, 1
      %p401 = por %p399, %p400
      %p402 = scmp.ne.s32.totalorder %s391, %s392
      %p403 = scmp.eq.s32.totalorder %s37, 0
      %p404 = por %p402, %p403
      %p405 = scmp.ne.s32.totalorder %s391, %s392
      %p406 = scmp.eq.s32.totalorder %s38, 1
      %p407 = por %p405, %p406
      %p409 = scmp.ne.s32.totalorder %s392, %s408
      %p410 = scmp.eq.s32.totalorder %s38, 0
      %p411 = por %p409, %p410
      %p412 = scmp.le.s32.totalorder 1, %s32
      %p413 = scmp.lt.s32.totalorder %s32, 3
      %p414 = pnand %p412, %p413
      %p415 = pneg %p414
      // Predicated region
      $region9: #{tpu_custom_call.1} parent=5 // pred_check
        _
      $region10: #{tpu_custom_call.1} parent=5 // pred_check_branch
        %417 = sbr.rel (%p414) target = $region12
      $region11: #{tpu_custom_call.1} parent=5 // pred_region
        %s418 = ssub.s32 %s32, 1
        // Predicated region
        $region13: #{tpu_custom_call.1} parent=11 // pred_check
          %p419 = pneg %p105
        $region14: #{tpu_custom_call.1} parent=11 // pred_check_branch
          %421 = sbr.rel (%p419) target = $region16
        $region15: #{tpu_custom_call.1} parent=11 // pred_region
          %s423 = ssub.s32 16, 16
          %424 = vsyncadd [#allocation7], %s423
          %s426 = sshll.u32 [#allocation8], 4
          %s427 = int_to_ptr.vmem [resolvable:$true] %s426
          %429 = dma.hbm_to_vmem [thread:$0]  %s2, 16, %s427, [#allocation7]
        $region16: #{tpu_custom_call.1} parent=11 // pred_fallthru
          _
        // Predicated region
        $region17: #{tpu_custom_call.1} parent=11 // pred_check
          %p430 = pneg %p126
        $region18: #{tpu_custom_call.1} parent=11 // pred_check_branch
          %432 = sbr.rel (%p430) target = $region20
        $region19: #{tpu_custom_call.1} parent=11 // pred_region
          %s434 = ssub.s32 16, 16
          %435 = vsyncadd [#allocation10], %s434
          %s437 = sshll.u32 [#allocation9], 4
          %s438 = int_to_ptr.vmem [resolvable:$true] %s437
          %440 = dma.hbm_to_vmem [thread:$0]  %s3, 16, %s438, [#allocation10]
        $region20: #{tpu_custom_call.1} parent=11 // pred_fallthru
          _
        // Predicated region
        $region21: #{tpu_custom_call.1} parent=11 // pred_check
          %p441 = pneg %p147
        $region22: #{tpu_custom_call.1} parent=11 // pred_check_branch
          %443 = sbr.rel (%p441) target = $region24
        $region23: #{tpu_custom_call.1} parent=11 // pred_region
          _
        $region24: #{tpu_custom_call.1} parent=11 // pred_fallthru
          _
        // Predicated region
        $region25: #{tpu_custom_call.1} parent=11 // pred_check
          %p444 = pneg %p168
        $region26: #{tpu_custom_call.1} parent=11 // pred_check_branch
          %446 = sbr.rel (%p444) target = $region28
        $region27: #{tpu_custom_call.1} parent=11 // pred_region
          _
        $region28: #{tpu_custom_call.1} parent=11 // pred_fallthru
          _
        // Predicated region
        $region29: #{tpu_custom_call.1} parent=11 // pred_check
          %p447 = pneg %p189
        $region30: #{tpu_custom_call.1} parent=11 // pred_check_branch
          %449 = sbr.rel (%p447) target = $region32
        $region31: #{tpu_custom_call.1} parent=11 // pred_region
          _
        $region32: #{tpu_custom_call.1} parent=11 // pred_fallthru
          _
        // Predicated region
        $region33: #{tpu_custom_call.1} parent=11 // pred_check
          %p450 = pneg %p210
        $region34: #{tpu_custom_call.1} parent=11 // pred_check_branch
          %452 = sbr.rel (%p450) target = $region36
        $region35: #{tpu_custom_call.1} parent=11 // pred_region
          _
        $region36: #{tpu_custom_call.1} parent=11 // pred_fallthru
          _
        // Predicated region
        $region37: #{tpu_custom_call.1} parent=11 // pred_check
          %p453 = pneg %p231
        $region38: #{tpu_custom_call.1} parent=11 // pred_check_branch
          %455 = sbr.rel (%p453) target = $region40
        $region39: #{tpu_custom_call.1} parent=11 // pred_region
          _
        $region40: #{tpu_custom_call.1} parent=11 // pred_fallthru
          _
        // Predicated region
        $region41: #{tpu_custom_call.1} parent=11 // pred_check
          %p456 = pneg %p252
        $region42: #{tpu_custom_call.1} parent=11 // pred_check_branch
          %458 = sbr.rel (%p456) target = $region44
        $region43: #{tpu_custom_call.1} parent=11 // pred_region
          _
        $region44: #{tpu_custom_call.1} parent=11 // pred_fallthru
          _
        // Predicated region
        $region45: #{tpu_custom_call.1} parent=11 // pred_check
          %p459 = pneg %p273
        $region46: #{tpu_custom_call.1} parent=11 // pred_check_branch
          %461 = sbr.rel (%p459) target = $region48
        $region47: #{tpu_custom_call.1} parent=11 // pred_region
          _
        $region48: #{tpu_custom_call.1} parent=11 // pred_fallthru
          _
        // Predicated region
        $region49: #{tpu_custom_call.1} parent=11 // pred_check
          %p462 = pneg %p294
        $region50: #{tpu_custom_call.1} parent=11 // pred_check_branch
          %464 = sbr.rel (%p462) target = $region52
        $region51: #{tpu_custom_call.1} parent=11 // pred_region
          _
        $region52: #{tpu_custom_call.1} parent=11 // pred_fallthru
          _
        // Predicated region
        $region53: #{tpu_custom_call.1} parent=11 // pred_check
          %p465 = pneg %p315
        $region54: #{tpu_custom_call.1} parent=11 // pred_check_branch
          %467 = sbr.rel (%p465) target = $region56
        $region55: #{tpu_custom_call.1} parent=11 // pred_region
          _
        $region56: #{tpu_custom_call.1} parent=11 // pred_fallthru
          _
        // Predicated region
        $region57: #{tpu_custom_call.1} parent=11 // pred_check
          %p468 = pneg %p336
        $region58: #{tpu_custom_call.1} parent=11 // pred_check_branch
          %470 = sbr.rel (%p468) target = $region60
        $region59: #{tpu_custom_call.1} parent=11 // pred_region
          _
        $region60: #{tpu_custom_call.1} parent=11 // pred_fallthru
          _
        // Predicated region
        $region61: #{tpu_custom_call.1} parent=11 // pred_check
          %p471 = pneg %p357
        $region62: #{tpu_custom_call.1} parent=11 // pred_check_branch
          %473 = sbr.rel (%p471) target = $region64
        $region63: #{tpu_custom_call.1} parent=11 // pred_region
          _
        $region64: #{tpu_custom_call.1} parent=11 // pred_fallthru
          _
        // Predicated region
        $region65: #{tpu_custom_call.1} parent=11 // pred_check
          %p474 = pneg %p378
        $region66: #{tpu_custom_call.1} parent=11 // pred_check_branch
          %476 = sbr.rel (%p474) target = $region68
        $region67: #{tpu_custom_call.1} parent=11 // pred_region
          _
        $region68: #{tpu_custom_call.1} parent=11 // pred_fallthru
          _
      $region12: #{tpu_custom_call.1} parent=5 // pred_fallthru
        _
      %p477 = scmp.lt.s32.totalorder %s32, 2
      // Predicated region
      $region69: #{tpu_custom_call.1} parent=5 // pred_check
        %p478 = pneg %p477
      $region70: #{tpu_custom_call.1} parent=5 // pred_check_branch
        %480 = sbr.rel (%p478) target = $region72
      $region71: #{tpu_custom_call.1} parent=5 // pred_region
        // Predicated region
        $region73: #{tpu_custom_call.1} parent=71 // pred_check
          %p481 = pneg %p52
        $region74: #{tpu_custom_call.1} parent=71 // pred_check_branch
          %483 = sbr.rel (%p481) target = $region76
        $region75: #{tpu_custom_call.1} parent=71 // pred_region
          %s484 = sand.u32 %s42, 1
          %s485 = scalar_lea.sflag [#allocation4], %s484
          %s486 = sand.u32 %s42, 1
          %s487 = smul.addr %s486, 8
          %s488 = scalar_lea.vmem [#allocation3], %s487
          %s490 = ssub.s32 128, 128
          %491 = vsyncadd %s485, %s490
          %s492 = smul.addr %s32, 128
          %s493 = scalar_lea.hbm %s0, %s492
          %s495 = sshll.u32 %s488, 4
          %s496 = int_to_ptr.vmem [resolvable:$true] %s495
          %498 = dma.hbm_to_vmem [thread:$0]  %s493, 128, %s496, %s485
        $region76: #{tpu_custom_call.1} parent=71 // pred_fallthru
          _
        // Predicated region
        $region77: #{tpu_custom_call.1} parent=71 // pred_check
          %p499 = pneg %p78
        $region78: #{tpu_custom_call.1} parent=71 // pred_check_branch
          %501 = sbr.rel (%p499) target = $region80
        $region79: #{tpu_custom_call.1} parent=71 // pred_region
          %s502 = sand.u32 %s32, 1
          %s503 = scalar_lea.sflag [#allocation7], %s502
          %s504 = sand.u32 %s68, 1
          %s505 = scalar_lea.vmem [#allocation6], %s504
          %s507 = ssub.s32 16, 16
          %508 = vsyncadd %s503, %s507
          %s509 = smul.addr %s32, 16
          %s510 = scalar_lea.hbm %s1, %s509
          %s512 = sshll.u32 %s505, 4
          %s513 = int_to_ptr.vmem [resolvable:$true] %s512
          %515 = dma.hbm_to_vmem [thread:$0]  %s510, 16, %s513, %s503
        $region80: #{tpu_custom_call.1} parent=71 // pred_fallthru
          _
      $region72: #{tpu_custom_call.1} parent=5 // pred_fallthru
        _
      %p516 = scmp.le.s32.totalorder 1, %s32
      %p517 = scmp.lt.s32.totalorder %s32, 3
      %p518 = pnand %p516, %p517
      %p519 = pneg %p518
      // Predicated region
      $region81: #{tpu_custom_call.1} parent=5 // pred_check
        _
      $region82: #{tpu_custom_call.1} parent=5 // pred_check_branch
        %521 = sbr.rel (%p518) target = $region84
      $region83: #{tpu_custom_call.1} parent=5 // pred_region
        %s522 = ssub.s32 %s32, 1
        %s523 = sand.u32 %s45, 1
        %s524 = scalar_lea.sflag [#allocation4], %s523
        %s525 = sand.u32 %s45, 1
        %s526 = smul.addr %s525, 8
        %s527 = scalar_lea.vmem [#allocation3], %s526
        // Predicated region
        $region85: #{tpu_custom_call.1} parent=83 // pred_check
          %p528 = pneg %p58
        $region86: #{tpu_custom_call.1} parent=83 // pred_check_branch
          %530 = sbr.rel (%p528) target = $region88
        $region87: #{tpu_custom_call.1} parent=83 // pred_region
          %531 = dma.done %s524, 128
        $region88: #{tpu_custom_call.1} parent=83 // pred_fallthru
          _
        %s532 = sand.u32 %s37, 1
        %s533 = scalar_lea.sflag [#allocation7], %s532
        %s534 = sand.u32 %s71, 1
        %s535 = scalar_lea.vmem [#allocation6], %s534
        // Predicated region
        $region89: #{tpu_custom_call.1} parent=83 // pred_check
          %p536 = pneg %p84
        $region90: #{tpu_custom_call.1} parent=83 // pred_check_branch
          %538 = sbr.rel (%p536) target = $region92
        $region91: #{tpu_custom_call.1} parent=83 // pred_region
          %539 = dma.done %s533, 16
        $region92: #{tpu_custom_call.1} parent=83 // pred_fallthru
          _
        // Predicated region
        $region93: #{tpu_custom_call.1} parent=83 // pred_check
          %p540 = pneg %p105
        $region94: #{tpu_custom_call.1} parent=83 // pred_check_branch
          %542 = sbr.rel (%p540) target = $region96
        $region95: #{tpu_custom_call.1} parent=83 // pred_region
          %543 = dma.done [#allocation7], 16
        $region96: #{tpu_custom_call.1} parent=83 // pred_fallthru
          _
        // Predicated region
        $region97: #{tpu_custom_call.1} parent=83 // pred_check
          %p544 = pneg %p126
        $region98: #{tpu_custom_call.1} parent=83 // pred_check_branch
          %546 = sbr.rel (%p544) target = $region100
        $region99: #{tpu_custom_call.1} parent=83 // pred_region
          %547 = dma.done [#allocation10], 16
        $region100: #{tpu_custom_call.1} parent=83 // pred_fallthru
          _
        %s548 = sand.u32 %s45, 1
        %s549 = scalar_lea.sflag [#allocation4], %s548
        %s550 = sand.u32 %s45, 1
        %s551 = smul.addr %s550, 8
        %s552 = scalar_lea.vmem [#allocation3], %s551
        %p553 = pneg %p58
        %p554 = pneg %p55
        %s555 = sand.u32 %s37, 1
        %s556 = scalar_lea.sflag [#allocation7], %s555
        %s557 = sand.u32 %s71, 1
        %s558 = scalar_lea.vmem [#allocation6], %s557
        %p559 = pneg %p84
        %p560 = pneg %p81
        %p561 = pneg %p105
        %p562 = pneg %p102
        %p563 = pneg %p126
        %p564 = pneg %p123
        %p565 = pneg %p147
        %p566 = pneg %p144
        %p567 = pneg %p168
        %p568 = pneg %p165
        %p569 = pneg %p189
        %p570 = pneg %p186
        %p571 = pneg %p210
        %p572 = pneg %p207
        %p573 = pneg %p231
        %p574 = pneg %p228
        %p575 = pneg %p252
        %p576 = pneg %p249
        %p577 = pneg %p273
        %p578 = pneg %p270
        %p579 = pneg %p294
        %p580 = pneg %p291
        %p581 = pneg %p315
        %p582 = pneg %p312
        %p583 = pneg %p336
        %p584 = pneg %p333
        %p585 = pneg %p357
        %p586 = pneg %p354
        %p587 = pneg %p378
        %p588 = pneg %p375
        %p589 = pneg %p404
        %p590 = pneg %p401
        %s591 = sand.u32 %s391, 1
        %s592 = scalar_lea.sflag [#allocation5], %s591
        %s593 = sand.u32 %s391, 1
        %s594 = scalar_lea.vmem [#allocation11], %s593
        %v595 = vld [vmem:[%s527] sm:$0xff]
        %v596 = vld [vmem:[#allocation8] sm:$0x1]
        %v597 = vld [vmem:[#allocation9] sm:$0x1]
        %vm598 = vcmask 261120
        %v599 = vsel %vm598, %v595, 0.0
        %600 = vadd.xlane.f32.xlu0 %v599
        %v601 = vpop.xlane.xlu0 %600
        %v602 = vrcp.pop 32.0
        %v603 = vmul.f32 %v601, %v602
        %v604 = vsub.f32 %v595, %v603
        %v605 = vmul.f32 %v604, %v604
        %v606 = vsel %vm598, %v605, 0.0
        %607 = vadd.xlane.f32.xlu0 %v606
        %v608 = vpop.xlane.xlu0 %607
        %v609 = vmul.f32 %v608, %v602
        %v610 = vadd.f32 %v609, 1e-12
        %v611 = vrsqrt.pop %v610
        %v612 = vmul.f32 %v604, %v611
        %v614 = vlaneseq
        %v615 = vshrl.u32 %v614, 7
        %v616 = vsub.s32 0, %v615
        %v617 = vrot.slane %v596, %v616
        %v619 = vmul.f32 %v612, %v617
        %v621 = vlaneseq
        %v622 = vshrl.u32 %v621, 7
        %v623 = vsub.s32 0, %v622
        %v624 = vrot.slane %v597, %v623
        %v626 = vadd.f32 %v619, %v624
        %v627 = vld [vmem:[%s535] sm:$0x1]
        %v628 = vsub.f32 1.0, %v627
        %v629 = vmul.f32 %v628, -1e+09
        %v630 = vld [vmem:[%s4] sm:$0xff]
        %v631 = vld [vmem:[%s4 + $0x8] sm:$0xff]
        %v632 = vld [vmem:[%s4 + $0x10] sm:$0xff]
        %v633 = vld [vmem:[%s4 + $0x18] sm:$0xff]
        %v634 = vld [vmem:[%s5] sm:$0x1]
        %v636 = vlaneseq
        %v637 = vshrl.u32 %v636, 7
        %v638 = vsub.s32 0, %v637
        %v639 = vrot.slane %v634, %v638
        %v642 = vsel %vm598, %v626, 0
        %644 = vmatprep.subr.mxu0 0.0
        %645 = vmatpush1.msra.mxu0 0.0
        %646 = vmatprep.subr.mxu0 0.0
        %647 = vmatpush1.msra.mxu0 0.0
        %648 = vmatprep.subr.mxu0 0.0
        %649 = vmatpush1.msra.mxu0 0.0
        %650 = vmatprep.subr.mxu0 0.0
        %651 = vmatpush1.msra.mxu0 0.0
        %652 = vmatprep.subr.mxu0 0.0
        %653 = vmatpush1.msra.mxu0 0.0
        %654 = vmatprep.subr.mxu0 0.0
        %655 = vmatpush1.msra.mxu0 0.0
        %656 = vmatprep.subr.mxu0 0.0
        %657 = vmatpush1.msra.mxu0 0.0
        %658 = vmatprep.subr.mxu0 0.0
        %659 = vmatpush1.msra.mxu0 0.0
        %660 = vmatprep.subr.mxu0 0.0
        %661 = vmatpush1.msra.mxu0 0.0
        %662 = vmatprep.subr.mxu0 0.0
        %663 = vmatpush1.msra.mxu0 0.0
        %664 = vmatprep.subr.mxu0 0.0
        %665 = vmatpush1.msra.mxu0 0.0
        %666 = vmatprep.subr.mxu0 0.0
        %667 = vmatpush1.msra.mxu0 0.0
        %668 = vmatprep.subr.mxu0 0.0
        %669 = vmatpush1.msra.mxu0 %v633
        %670 = vmatprep.subr.mxu0 0.0
        %671 = vmatpush1.msra.mxu0 %v632
        %672 = vmatprep.subr.mxu0 0.0
        %673 = vmatpush1.msra.mxu0 %v631
        %674 = vmatprep.subr.mxu0 0.0
        %675 = vmatpush1.msra.mxu0 %v630
        %676 = vmatprep.subr.mxu0 0.0
        %677 = vmatpush2.msra.mxu0 0.0
        %678 = vmatprep.subr.mxu0 0.0
        %679 = vmatpush2.msra.mxu0 0.0
        %680 = vmatprep.subr.mxu0 0.0
        %681 = vmatpush2.msra.mxu0 0.0
        %682 = vmatprep.subr.mxu0 0.0
        %683 = vmatpush2.msra.mxu0 0.0
        %684 = vmatprep.subr.mxu0 0.0
        %685 = vmatpush2.msra.mxu0 0.0
        %686 = vmatprep.subr.mxu0 0.0
        %687 = vmatpush2.msra.mxu0 0.0
        %688 = vmatprep.subr.mxu0 0.0
        %689 = vmatpush2.msra.mxu0 0.0
        %690 = vmatprep.subr.mxu0 0.0
        %691 = vmatpush2.msra.mxu0 0.0
        %692 = vmatprep.subr.mxu0 0.0
        %693 = vmatpush2.msra.mxu0 0.0
        %694 = vmatprep.subr.mxu0 0.0
        %695 = vmatpush2.msra.mxu0 0.0
        %696 = vmatprep.subr.mxu0 0.0
        %697 = vmatpush2.msra.mxu0 0.0
        %698 = vmatprep.subr.mxu0 0.0
        %699 = vmatpush2.msra.mxu0 0.0
        %700 = vmatprep.subr.mxu0 0.0
        %701 = vmatpush2.msra.mxu0 0.0
        %702 = vmatprep.subr.mxu0 0.0
        %703 = vmatpush2.msra.mxu0 0.0
        %704 = vmatprep.subr.mxu0 0.0
        %705 = vmatpush2.msra.mxu0 0.0
        %706 = vmatprep.subr.mxu0 0.0
        %707 = vmatpush2.msra.mxu0 0.0
        %708 = vmatprep.mubr.f32.mxu0 0.0
        %709 = vmatmul.mubr.f32.gmra.mxu0 %v642
        %v710 = vpop.f32.mrf.mxu0
        %v711 = vadd.f32 %v639, %v710
        %v712 = vpop.f32.mrf.mxu0
        %713 = vdwg.mxu0
        %v714 = vmul.f32 %v711, 0.35355338
        %v716 = vlaneseq
        %v717 = vshrl.u32 %v716, 7
        %v718 = vsub.s32 0, %v717
        %v719 = vrot.slane %v629, %v718
        %722 = vrot.lane.b32.xlu0 %v711, 96
        %v723 = vpop.permute.xlu0 %722
        %vm724 = vcmask 64512
        %v726 = vsel %vm724, %v714, 0
        %v728 = vsel %vm724, %v723, 0
        %730 = vmatprep.subr.mxu0 0.0
        %731 = vmatpush1.xpose.msra.mxu0 0.0
        %732 = vmatprep.subr.mxu0 0.0
        %733 = vmatpush1.xpose.msra.mxu0 0.0
        %734 = vmatprep.subr.mxu0 0.0
        %735 = vmatpush1.xpose.msra.mxu0 0.0
        %736 = vmatprep.subr.mxu0 0.0
        %737 = vmatpush1.xpose.msra.mxu0 0.0
        %738 = vmatprep.subr.mxu0 0.0
        %739 = vmatpush1.xpose.msra.mxu0 0.0
        %740 = vmatprep.subr.mxu0 0.0
        %741 = vmatpush1.xpose.msra.mxu0 0.0
        %742 = vmatprep.subr.mxu0 0.0
        %743 = vmatpush1.xpose.msra.mxu0 0.0
        %744 = vmatprep.subr.mxu0 0.0
        %745 = vmatpush1.xpose.msra.mxu0 0.0
        %746 = vmatprep.subr.mxu0 0.0
        %747 = vmatpush1.xpose.msra.mxu0 0.0
        %748 = vmatprep.subr.mxu0 0.0
        %749 = vmatpush1.xpose.msra.mxu0 0.0
        %750 = vmatprep.subr.mxu0 0.0
        %751 = vmatpush1.xpose.msra.mxu0 0.0
        %752 = vmatprep.subr.mxu0 0.0
        %753 = vmatpush1.xpose.msra.mxu0 0.0
        %754 = vmatprep.subr.mxu0 0.0
        %755 = vmatpush1.xpose.msra.mxu0 0.0
        %756 = vmatprep.subr.mxu0 0.0
        %757 = vmatpush1.xpose.msra.mxu0 0.0
        %758 = vmatprep.subr.mxu0 0.0
        %759 = vmatpush1.xpose.msra.mxu0 0.0
        %760 = vmatprep.subr.mxu0 0.0
        %761 = vmatpush1.xpose.msra.mxu0 %v728
        %762 = vmatprep.subr.mxu0 0.0
        %763 = vmatpush2.xpose.msra.mxu0 0.0
        %764 = vmatprep.subr.mxu0 0.0
        %765 = vmatpush2.xpose.msra.mxu0 0.0
        %766 = vmatprep.subr.mxu0 0.0
        %767 = vmatpush2.xpose.msra.mxu0 0.0
        %768 = vmatprep.subr.mxu0 0.0
        %769 = vmatpush2.xpose.msra.mxu0 0.0
        %770 = vmatprep.subr.mxu0 0.0
        %771 = vmatpush2.xpose.msra.mxu0 0.0
        %772 = vmatprep.subr.mxu0 0.0
        %773 = vmatpush2.xpose.msra.mxu0 0.0
        %774 = vmatprep.subr.mxu0 0.0
        %775 = vmatpush2.xpose.msra.mxu0 0.0
        %776 = vmatprep.subr.mxu0 0.0
        %777 = vmatpush2.xpose.msra.mxu0 0.0
        %778 = vmatprep.subr.mxu0 0.0
        %779 = vmatpush2.xpose.msra.mxu0 0.0
        %780 = vmatprep.subr.mxu0 0.0
        %781 = vmatpush2.xpose.msra.mxu0 0.0
        %782 = vmatprep.subr.mxu0 0.0
        %783 = vmatpush2.xpose.msra.mxu0 0.0
        %784 = vmatprep.subr.mxu0 0.0
        %785 = vmatpush2.xpose.msra.mxu0 0.0
        %786 = vmatprep.subr.mxu0 0.0
        %787 = vmatpush2.xpose.msra.mxu0 0.0
        %788 = vmatprep.subr.mxu0 0.0
        %789 = vmatpush2.xpose.msra.mxu0 0.0
        %790 = vmatprep.subr.mxu0 0.0
        %791 = vmatpush2.xpose.msra.mxu0 0.0
        %792 = vmatprep.subr.mxu0 0.0
        %793 = vmatpush2.xpose.msra.mxu0 0.0
        %794 = vmatprep.mubr.f32.mxu0 0.0
        %795 = vmatmul.mubr.f32.gmra.mxu0 %v726
        %v796 = vpop.f32.mrf.mxu0
        %v797 = vadd.f32 %v719, %v796
        %v798 = vpop.f32.mrf.mxu0
        %799 = vdwg.mxu0
        %v800 = vsel %vm724, %v797, -inf
        %801 = vmax.xlane.f32.xlu0 %v800
        %v802 = vpop.xlane.xlu0 %801
        %v803 = vsub.f32 %v797, %v802
        %v804 = vmul.f32 %v803, 1.442695
        %v805 = vpow.pop %v804
        %v806 = vsel %vm724, %v805, 0.0
        %807 = vadd.xlane.f32.xlu0 %v806
        %v808 = vpop.xlane.xlu0 %807
        %v809 = vrcp.pop %v808
        %v810 = vmul.f32 %v805, %v809
        %811 = vrot.lane.b32.xlu0 %v711, 64
        %v812 = vpop.permute.xlu0 %811
        %v815 = vsel %vm724, %v810, 0
        %817 = vmatprep.subr.mxu0 0.0
        %818 = vmatpush1.msra.mxu0 0.0
        %819 = vmatprep.subr.mxu0 0.0
        %820 = vmatpush1.msra.mxu0 0.0
        %821 = vmatprep.subr.mxu0 0.0
        %822 = vmatpush1.msra.mxu0 0.0
        %823 = vmatprep.subr.mxu0 0.0
        %824 = vmatpush1.msra.mxu0 0.0
        %825 = vmatprep.subr.mxu0 0.0
        %826 = vmatpush1.msra.mxu0 0.0
        %827 = vmatprep.subr.mxu0 0.0
        %828 = vmatpush1.msra.mxu0 0.0
        %829 = vmatprep.subr.mxu0 0.0
        %830 = vmatpush1.msra.mxu0 0.0
        %831 = vmatprep.subr.mxu0 0.0
        %832 = vmatpush1.msra.mxu0 0.0
        %833 = vmatprep.subr.mxu0 0.0
        %834 = vmatpush1.msra.mxu0 0.0
        %835 = vmatprep.subr.mxu0 0.0
        %836 = vmatpush1.msra.mxu0 0.0
        %837 = vmatprep.subr.mxu0 0.0
        %838 = vmatpush1.msra.mxu0 0.0
        %839 = vmatprep.subr.mxu0 0.0
        %840 = vmatpush1.msra.mxu0 0.0
        %841 = vmatprep.subr.mxu0 0.0
        %842 = vmatpush1.msra.mxu0 0.0
        %843 = vmatprep.subr.mxu0 0.0
        %844 = vmatpush1.msra.mxu0 0.0
        %845 = vmatprep.subr.mxu0 0.0
        %846 = vmatpush1.msra.mxu0 0.0
        %847 = vmatprep.subr.mxu0 0.0
        %848 = vmatpush1.msra.mxu0 %v812
        %849 = vmatprep.subr.mxu0 0.0
        %850 = vmatpush2.msra.mxu0 0.0
        %851 = vmatprep.subr.mxu0 0.0
        %852 = vmatpush2.msra.mxu0 0.0
        %853 = vmatprep.subr.mxu0 0.0
        %854 = vmatpush2.msra.mxu0 0.0
        %855 = vmatprep.subr.mxu0 0.0
        %856 = vmatpush2.msra.mxu0 0.0
        %857 = vmatprep.subr.mxu0 0.0
        %858 = vmatpush2.msra.mxu0 0.0
        %859 = vmatprep.subr.mxu0 0.0
        %860 = vmatpush2.msra.mxu0 0.0
        %861 = vmatprep.subr.mxu0 0.0
        %862 = vmatpush2.msra.mxu0 0.0
        %863 = vmatprep.subr.mxu0 0.0
        %864 = vmatpush2.msra.mxu0 0.0
        %865 = vmatprep.subr.mxu0 0.0
        %866 = vmatpush2.msra.mxu0 0.0
        %867 = vmatprep.subr.mxu0 0.0
        %868 = vmatpush2.msra.mxu0 0.0
        %869 = vmatprep.subr.mxu0 0.0
        %870 = vmatpush2.msra.mxu0 0.0
        %871 = vmatprep.subr.mxu0 0.0
        %872 = vmatpush2.msra.mxu0 0.0
        %873 = vmatprep.subr.mxu0 0.0
        %874 = vmatpush2.msra.mxu0 0.0
        %875 = vmatprep.subr.mxu0 0.0
        %876 = vmatpush2.msra.mxu0 0.0
        %877 = vmatprep.subr.mxu0 0.0
        %878 = vmatpush2.msra.mxu0 0.0
        %879 = vmatprep.subr.mxu0 0.0
        %880 = vmatpush2.msra.mxu0 0.0
        %881 = vmatprep.mubr.f32.mxu0 0.0
        %882 = vmatmul.mubr.f32.gmra.mxu0 %v815
        %v883 = vpop.f32.mrf.mxu0
        %v884 = vadd.f32 0.0, %v883
        %v885 = vpop.f32.mrf.mxu0
        %886 = vdwg.mxu0
        %887 = vst.msk [vmem:[#allocation2] sm:$0xff] %vm724, %v884
        %888 = vrot.lane.b32.xlu0 %v714, 120
        %v889 = vpop.permute.xlu0 %888
        %890 = vrot.lane.b32.xlu0 %v711, 88
        %v891 = vpop.permute.xlu0 %890
        %v892 = vsel %vm724, %v889, 0
        %v894 = vsel %vm724, %v891, 0
        %896 = vmatprep.subr.mxu0 0.0
        %897 = vmatpush1.xpose.msra.mxu0 0.0
        %898 = vmatprep.subr.mxu0 0.0
        %899 = vmatpush1.xpose.msra.mxu0 0.0
        %900 = vmatprep.subr.mxu0 0.0
        %901 = vmatpush1.xpose.msra.mxu0 0.0
        %902 = vmatprep.subr.mxu0 0.0
        %903 = vmatpush1.xpose.msra.mxu0 0.0
        %904 = vmatprep.subr.mxu0 0.0
        %905 = vmatpush1.xpose.msra.mxu0 0.0
        %906 = vmatprep.subr.mxu0 0.0
        %907 = vmatpush1.xpose.msra.mxu0 0.0
        %908 = vmatprep.subr.mxu0 0.0
        %909 = vmatpush1.xpose.msra.mxu0 0.0
        %910 = vmatprep.subr.mxu0 0.0
        %911 = vmatpush1.xpose.msra.mxu0 0.0
        %912 = vmatprep.subr.mxu0 0.0
        %913 = vmatpush1.xpose.msra.mxu0 0.0
        %914 = vmatprep.subr.mxu0 0.0
        %915 = vmatpush1.xpose.msra.mxu0 0.0
        %916 = vmatprep.subr.mxu0 0.0
        %917 = vmatpush1.xpose.msra.mxu0 0.0
        %918 = vmatprep.subr.mxu0 0.0
        %919 = vmatpush1.xpose.msra.mxu0 0.0
        %920 = vmatprep.subr.mxu0 0.0
        %921 = vmatpush1.xpose.msra.mxu0 0.0
        %922 = vmatprep.subr.mxu0 0.0
        %923 = vmatpush1.xpose.msra.mxu0 0.0
        %924 = vmatprep.subr.mxu0 0.0
        %925 = vmatpush1.xpose.msra.mxu0 0.0
        %926 = vmatprep.subr.mxu0 0.0
        %927 = vmatpush1.xpose.msra.mxu0 %v894
        %928 = vmatprep.subr.mxu0 0.0
        %929 = vmatpush2.xpose.msra.mxu0 0.0
        %930 = vmatprep.subr.mxu0 0.0
        %931 = vmatpush2.xpose.msra.mxu0 0.0
        %932 = vmatprep.subr.mxu0 0.0
        %933 = vmatpush2.xpose.msra.mxu0 0.0
        %934 = vmatprep.subr.mxu0 0.0
        %935 = vmatpush2.xpose.msra.mxu0 0.0
        %936 = vmatprep.subr.mxu0 0.0
        %937 = vmatpush2.xpose.msra.mxu0 0.0
        %938 = vmatprep.subr.mxu0 0.0
        %939 = vmatpush2.xpose.msra.mxu0 0.0
        %940 = vmatprep.subr.mxu0 0.0
        %941 = vmatpush2.xpose.msra.mxu0 0.0
        %942 = vmatprep.subr.mxu0 0.0
        %943 = vmatpush2.xpose.msra.mxu0 0.0
        %944 = vmatprep.subr.mxu0 0.0
        %945 = vmatpush2.xpose.msra.mxu0 0.0
        %946 = vmatprep.subr.mxu0 0.0
        %947 = vmatpush2.xpose.msra.mxu0 0.0
        %948 = vmatprep.subr.mxu0 0.0
        %949 = vmatpush2.xpose.msra.mxu0 0.0
        %950 = vmatprep.subr.mxu0 0.0
        %951 = vmatpush2.xpose.msra.mxu0 0.0
        %952 = vmatprep.subr.mxu0 0.0
        %953 = vmatpush2.xpose.msra.mxu0 0.0
        %954 = vmatprep.subr.mxu0 0.0
        %955 = vmatpush2.xpose.msra.mxu0 0.0
        %956 = vmatprep.subr.mxu0 0.0
        %957 = vmatpush2.xpose.msra.mxu0 0.0
        %958 = vmatprep.subr.mxu0 0.0
        %959 = vmatpush2.xpose.msra.mxu0 0.0
        %960 = vmatprep.mubr.f32.mxu0 0.0
        %961 = vmatmul.mubr.f32.gmra.mxu0 %v892
        %v962 = vpop.f32.mrf.mxu0
        %v963 = vadd.f32 %v719, %v962
        %v964 = vpop.f32.mrf.mxu0
        %965 = vdwg.mxu0
        %v966 = vsel %vm724, %v963, -inf
        %967 = vmax.xlane.f32.xlu0 %v966
        %v968 = vpop.xlane.xlu0 %967
        %v969 = vsub.f32 %v963, %v968
        %v970 = vmul.f32 %v969, 1.442695
        %v971 = vpow.pop %v970
        %v972 = vsel %vm724, %v971, 0.0
        %973 = vadd.xlane.f32.xlu0 %v972
        %v974 = vpop.xlane.xlu0 %973
        %v975 = vrcp.pop %v974
        %v976 = vmul.f32 %v971, %v975
        %977 = vrot.lane.b32.xlu0 %v711, 56
        %v978 = vpop.permute.xlu0 %977
        %v981 = vsel %vm724, %v976, 0
        %983 = vmatprep.subr.mxu0 0.0
        %984 = vmatpush1.msra.mxu0 0.0
        %985 = vmatprep.subr.mxu0 0.0
        %986 = vmatpush1.msra.mxu0 0.0
        %987 = vmatprep.subr.mxu0 0.0
        %988 = vmatpush1.msra.mxu0 0.0
        %989 = vmatprep.subr.mxu0 0.0
        %990 = vmatpush1.msra.mxu0 0.0
        %991 = vmatprep.subr.mxu0 0.0
        %992 = vmatpush1.msra.mxu0 0.0
        %993 = vmatprep.subr.mxu0 0.0
        %994 = vmatpush1.msra.mxu0 0.0
        %995 = vmatprep.subr.mxu0 0.0
        %996 = vmatpush1.msra.mxu0 0.0
        %997 = vmatprep.subr.mxu0 0.0
        %998 = vmatpush1.msra.mxu0 0.0
        %999 = vmatprep.subr.mxu0 0.0
        %1000 = vmatpush1.msra.mxu0 0.0
        %1001 = vmatprep.subr.mxu0 0.0
        %1002 = vmatpush1.msra.mxu0 0.0
        %1003 = vmatprep.subr.mxu0 0.0
        %1004 = vmatpush1.msra.mxu0 0.0
        %1005 = vmatprep.subr.mxu0 0.0
        %1006 = vmatpush1.msra.mxu0 0.0
        %1007 = vmatprep.subr.mxu0 0.0
        %1008 = vmatpush1.msra.mxu0 0.0
        %1009 = vmatprep.subr.mxu0 0.0
        %1010 = vmatpush1.msra.mxu0 0.0
        %1011 = vmatprep.subr.mxu0 0.0
        %1012 = vmatpush1.msra.mxu0 0.0
        %1013 = vmatprep.subr.mxu0 0.0
        %1014 = vmatpush1.msra.mxu0 %v978
        %1015 = vmatprep.subr.mxu0 0.0
        %1016 = vmatpush2.msra.mxu0 0.0
        %1017 = vmatprep.subr.mxu0 0.0
        %1018 = vmatpush2.msra.mxu0 0.0
        %1019 = vmatprep.subr.mxu0 0.0
        %1020 = vmatpush2.msra.mxu0 0.0
        %1021 = vmatprep.subr.mxu0 0.0
        %1022 = vmatpush2.msra.mxu0 0.0
        %1023 = vmatprep.subr.mxu0 0.0
        %1024 = vmatpush2.msra.mxu0 0.0
        %1025 = vmatprep.subr.mxu0 0.0
        %1026 = vmatpush2.msra.mxu0 0.0
        %1027 = vmatprep.subr.mxu0 0.0
        %1028 = vmatpush2.msra.mxu0 0.0
        %1029 = vmatprep.subr.mxu0 0.0
        %1030 = vmatpush2.msra.mxu0 0.0
        %1031 = vmatprep.subr.mxu0 0.0
        %1032 = vmatpush2.msra.mxu0 0.0
        %1033 = vmatprep.subr.mxu0 0.0
        %1034 = vmatpush2.msra.mxu0 0.0
        %1035 = vmatprep.subr.mxu0 0.0
        %1036 = vmatpush2.msra.mxu0 0.0
        %1037 = vmatprep.subr.mxu0 0.0
        %1038 = vmatpush2.msra.mxu0 0.0
        %1039 = vmatprep.subr.mxu0 0.0
        %1040 = vmatpush2.msra.mxu0 0.0
        %1041 = vmatprep.subr.mxu0 0.0
        %1042 = vmatpush2.msra.mxu0 0.0
        %1043 = vmatprep.subr.mxu0 0.0
        %1044 = vmatpush2.msra.mxu0 0.0
        %1045 = vmatprep.subr.mxu0 0.0
        %1046 = vmatpush2.msra.mxu0 0.0
        %1047 = vmatprep.mubr.f32.mxu0 0.0
        %1048 = vmatmul.mubr.f32.gmra.mxu0 %v981
        %v1049 = vpop.f32.mrf.mxu0
        %v1050 = vadd.f32 0.0, %v1049
        %v1051 = vpop.f32.mrf.mxu0
        %1052 = vdwg.mxu0
        %1054 = vrot.lane.b32.xlu0 %v1050, 8
        %v1055 = vpop.permute.xlu0 %1054
        %vm1057 = vcmask 130112
        %1058 = vst.msk [vmem:[#allocation2] sm:$0xff] %vm1057, %v1055
        %1059 = vrot.lane.b32.xlu0 %v714, 112
        %v1060 = vpop.permute.xlu0 %1059
        %1061 = vrot.lane.b32.xlu0 %v711, 80
        %v1062 = vpop.permute.xlu0 %1061
        %v1063 = vsel %vm724, %v1060, 0
        %v1065 = vsel %vm724, %v1062, 0
        %1067 = vmatprep.subr.mxu0 0.0
        %1068 = vmatpush1.xpose.msra.mxu0 0.0
        %1069 = vmatprep.subr.mxu0 0.0
        %1070 = vmatpush1.xpose.msra.mxu0 0.0
        %1071 = vmatprep.subr.mxu0 0.0
        %1072 = vmatpush1.xpose.msra.mxu0 0.0
        %1073 = vmatprep.subr.mxu0 0.0
        %1074 = vmatpush1.xpose.msra.mxu0 0.0
        %1075 = vmatprep.subr.mxu0 0.0
        %1076 = vmatpush1.xpose.msra.mxu0 0.0
        %1077 = vmatprep.subr.mxu0 0.0
        %1078 = vmatpush1.xpose.msra.mxu0 0.0
        %1079 = vmatprep.subr.mxu0 0.0
        %1080 = vmatpush1.xpose.msra.mxu0 0.0
        %1081 = vmatprep.subr.mxu0 0.0
        %1082 = vmatpush1.xpose.msra.mxu0 0.0
        %1083 = vmatprep.subr.mxu0 0.0
        %1084 = vmatpush1.xpose.msra.mxu0 0.0
        %1085 = vmatprep.subr.mxu0 0.0
        %1086 = vmatpush1.xpose.msra.mxu0 0.0
        %1087 = vmatprep.subr.mxu0 0.0
        %1088 = vmatpush1.xpose.msra.mxu0 0.0
        %1089 = vmatprep.subr.mxu0 0.0
        %1090 = vmatpush1.xpose.msra.mxu0 0.0
        %1091 = vmatprep.subr.mxu0 0.0
        %1092 = vmatpush1.xpose.msra.mxu0 0.0
        %1093 = vmatprep.subr.mxu0 0.0
        %1094 = vmatpush1.xpose.msra.mxu0 0.0
        %1095 = vmatprep.subr.mxu0 0.0
        %1096 = vmatpush1.xpose.msra.mxu0 0.0
        %1097 = vmatprep.subr.mxu0 0.0
        %1098 = vmatpush1.xpose.msra.mxu0 %v1065
        %1099 = vmatprep.subr.mxu0 0.0
        %1100 = vmatpush2.xpose.msra.mxu0 0.0
        %1101 = vmatprep.subr.mxu0 0.0
        %1102 = vmatpush2.xpose.msra.mxu0 0.0
        %1103 = vmatprep.subr.mxu0 0.0
        %1104 = vmatpush2.xpose.msra.mxu0 0.0
        %1105 = vmatprep.subr.mxu0 0.0
        %1106 = vmatpush2.xpose.msra.mxu0 0.0
        %1107 = vmatprep.subr.mxu0 0.0
        %1108 = vmatpush2.xpose.msra.mxu0 0.0
        %1109 = vmatprep.subr.mxu0 0.0
        %1110 = vmatpush2.xpose.msra.mxu0 0.0
        %1111 = vmatprep.subr.mxu0 0.0
        %1112 = vmatpush2.xpose.msra.mxu0 0.0
        %1113 = vmatprep.subr.mxu0 0.0
        %1114 = vmatpush2.xpose.msra.mxu0 0.0
        %1115 = vmatprep.subr.mxu0 0.0
        %1116 = vmatpush2.xpose.msra.mxu0 0.0
        %1117 = vmatprep.subr.mxu0 0.0
        %1118 = vmatpush2.xpose.msra.mxu0 0.0
        %1119 = vmatprep.subr.mxu0 0.0
        %1120 = vmatpush2.xpose.msra.mxu0 0.0
        %1121 = vmatprep.subr.mxu0 0.0
        %1122 = vmatpush2.xpose.msra.mxu0 0.0
        %1123 = vmatprep.subr.mxu0 0.0
        %1124 = vmatpush2.xpose.msra.mxu0 0.0
        %1125 = vmatprep.subr.mxu0 0.0
        %1126 = vmatpush2.xpose.msra.mxu0 0.0
        %1127 = vmatprep.subr.mxu0 0.0
        %1128 = vmatpush2.xpose.msra.mxu0 0.0
        %1129 = vmatprep.subr.mxu0 0.0
        %1130 = vmatpush2.xpose.msra.mxu0 0.0
        %1131 = vmatprep.mubr.f32.mxu0 0.0
        %1132 = vmatmul.mubr.f32.gmra.mxu0 %v1063
        %v1133 = vpop.f32.mrf.mxu0
        %v1134 = vadd.f32 %v719, %v1133
        %v1135 = vpop.f32.mrf.mxu0
        %1136 = vdwg.mxu0
        %v1137 = vsel %vm724, %v1134, -inf
        %1138 = vmax.xlane.f32.xlu0 %v1137
        %v1139 = vpop.xlane.xlu0 %1138
        %v1140 = vsub.f32 %v1134, %v1139
        %v1141 = vmul.f32 %v1140, 1.442695
        %v1142 = vpow.pop %v1141
        %v1143 = vsel %vm724, %v1142, 0.0
        %1144 = vadd.xlane.f32.xlu0 %v1143
        %v1145 = vpop.xlane.xlu0 %1144
        %v1146 = vrcp.pop %v1145
        %v1147 = vmul.f32 %v1142, %v1146
        %1148 = vrot.lane.b32.xlu0 %v711, 48
        %v1149 = vpop.permute.xlu0 %1148
        %v1152 = vsel %vm724, %v1147, 0
        %1154 = vmatprep.subr.mxu0 0.0
        %1155 = vmatpush1.msra.mxu0 0.0
        %1156 = vmatprep.subr.mxu0 0.0
        %1157 = vmatpush1.msra.mxu0 0.0
        %1158 = vmatprep.subr.mxu0 0.0
        %1159 = vmatpush1.msra.mxu0 0.0
        %1160 = vmatprep.subr.mxu0 0.0
        %1161 = vmatpush1.msra.mxu0 0.0
        %1162 = vmatprep.subr.mxu0 0.0
        %1163 = vmatpush1.msra.mxu0 0.0
        %1164 = vmatprep.subr.mxu0 0.0
        %1165 = vmatpush1.msra.mxu0 0.0
        %1166 = vmatprep.subr.mxu0 0.0
        %1167 = vmatpush1.msra.mxu0 0.0
        %1168 = vmatprep.subr.mxu0 0.0
        %1169 = vmatpush1.msra.mxu0 0.0
        %1170 = vmatprep.subr.mxu0 0.0
        %1171 = vmatpush1.msra.mxu0 0.0
        %1172 = vmatprep.subr.mxu0 0.0
        %1173 = vmatpush1.msra.mxu0 0.0
        %1174 = vmatprep.subr.mxu0 0.0
        %1175 = vmatpush1.msra.mxu0 0.0
        %1176 = vmatprep.subr.mxu0 0.0
        %1177 = vmatpush1.msra.mxu0 0.0
        %1178 = vmatprep.subr.mxu0 0.0
        %1179 = vmatpush1.msra.mxu0 0.0
        %1180 = vmatprep.subr.mxu0 0.0
        %1181 = vmatpush1.msra.mxu0 0.0
        %1182 = vmatprep.subr.mxu0 0.0
        %1183 = vmatpush1.msra.mxu0 0.0
        %1184 = vmatprep.subr.mxu0 0.0
        %1185 = vmatpush1.msra.mxu0 %v1149
        %1186 = vmatprep.subr.mxu0 0.0
        %1187 = vmatpush2.msra.mxu0 0.0
        %1188 = vmatprep.subr.mxu0 0.0
        %1189 = vmatpush2.msra.mxu0 0.0
        %1190 = vmatprep.subr.mxu0 0.0
        %1191 = vmatpush2.msra.mxu0 0.0
        %1192 = vmatprep.subr.mxu0 0.0
        %1193 = vmatpush2.msra.mxu0 0.0
        %1194 = vmatprep.subr.mxu0 0.0
        %1195 = vmatpush2.msra.mxu0 0.0
        %1196 = vmatprep.subr.mxu0 0.0
        %1197 = vmatpush2.msra.mxu0 0.0
        %1198 = vmatprep.subr.mxu0 0.0
        %1199 = vmatpush2.msra.mxu0 0.0
        %1200 = vmatprep.subr.mxu0 0.0
        %1201 = vmatpush2.msra.mxu0 0.0
        %1202 = vmatprep.subr.mxu0 0.0
        %1203 = vmatpush2.msra.mxu0 0.0
        %1204 = vmatprep.subr.mxu0 0.0
        %1205 = vmatpush2.msra.mxu0 0.0
        %1206 = vmatprep.subr.mxu0 0.0
        %1207 = vmatpush2.msra.mxu0 0.0
        %1208 = vmatprep.subr.mxu0 0.0
        %1209 = vmatpush2.msra.mxu0 0.0
        %1210 = vmatprep.subr.mxu0 0.0
        %1211 = vmatpush2.msra.mxu0 0.0
        %1212 = vmatprep.subr.mxu0 0.0
        %1213 = vmatpush2.msra.mxu0 0.0
        %1214 = vmatprep.subr.mxu0 0.0
        %1215 = vmatpush2.msra.mxu0 0.0
        %1216 = vmatprep.subr.mxu0 0.0
        %1217 = vmatpush2.msra.mxu0 0.0
        %1218 = vmatprep.mubr.f32.mxu0 0.0
        %1219 = vmatmul.mubr.f32.gmra.mxu0 %v1152
        %v1220 = vpop.f32.mrf.mxu0
        %v1221 = vadd.f32 0.0, %v1220
        %v1222 = vpop.f32.mrf.mxu0
        %1223 = vdwg.mxu0
        %1225 = vrot.lane.b32.xlu0 %v1221, 16
        %v1226 = vpop.permute.xlu0 %1225
        %vm1228 = vcmask 195712
        %1229 = vst.msk [vmem:[#allocation2] sm:$0xff] %vm1228, %v1226
        %1230 = vrot.lane.b32.xlu0 %v714, 104
        %v1231 = vpop.permute.xlu0 %1230
        %1232 = vrot.lane.b32.xlu0 %v711, 72
        %v1233 = vpop.permute.xlu0 %1232
        %v1234 = vsel %vm724, %v1231, 0
        %v1236 = vsel %vm724, %v1233, 0
        %1238 = vmatprep.subr.mxu0 0.0
        %1239 = vmatpush1.xpose.msra.mxu0 0.0
        %1240 = vmatprep.subr.mxu0 0.0
        %1241 = vmatpush1.xpose.msra.mxu0 0.0
        %1242 = vmatprep.subr.mxu0 0.0
        %1243 = vmatpush1.xpose.msra.mxu0 0.0
        %1244 = vmatprep.subr.mxu0 0.0
        %1245 = vmatpush1.xpose.msra.mxu0 0.0
        %1246 = vmatprep.subr.mxu0 0.0
        %1247 = vmatpush1.xpose.msra.mxu0 0.0
        %1248 = vmatprep.subr.mxu0 0.0
        %1249 = vmatpush1.xpose.msra.mxu0 0.0
        %1250 = vmatprep.subr.mxu0 0.0
        %1251 = vmatpush1.xpose.msra.mxu0 0.0
        %1252 = vmatprep.subr.mxu0 0.0
        %1253 = vmatpush1.xpose.msra.mxu0 0.0
        %1254 = vmatprep.subr.mxu0 0.0
        %1255 = vmatpush1.xpose.msra.mxu0 0.0
        %1256 = vmatprep.subr.mxu0 0.0
        %1257 = vmatpush1.xpose.msra.mxu0 0.0
        %1258 = vmatprep.subr.mxu0 0.0
        %1259 = vmatpush1.xpose.msra.mxu0 0.0
        %1260 = vmatprep.subr.mxu0 0.0
        %1261 = vmatpush1.xpose.msra.mxu0 0.0
        %1262 = vmatprep.subr.mxu0 0.0
        %1263 = vmatpush1.xpose.msra.mxu0 0.0
        %1264 = vmatprep.subr.mxu0 0.0
        %1265 = vmatpush1.xpose.msra.mxu0 0.0
        %1266 = vmatprep.subr.mxu0 0.0
        %1267 = vmatpush1.xpose.msra.mxu0 0.0
        %1268 = vmatprep.subr.mxu0 0.0
        %1269 = vmatpush1.xpose.msra.mxu0 %v1236
        %1270 = vmatprep.subr.mxu0 0.0
        %1271 = vmatpush2.xpose.msra.mxu0 0.0
        %1272 = vmatprep.subr.mxu0 0.0
        %1273 = vmatpush2.xpose.msra.mxu0 0.0
        %1274 = vmatprep.subr.mxu0 0.0
        %1275 = vmatpush2.xpose.msra.mxu0 0.0
        %1276 = vmatprep.subr.mxu0 0.0
        %1277 = vmatpush2.xpose.msra.mxu0 0.0
        %1278 = vmatprep.subr.mxu0 0.0
        %1279 = vmatpush2.xpose.msra.mxu0 0.0
        %1280 = vmatprep.subr.mxu0 0.0
        %1281 = vmatpush2.xpose.msra.mxu0 0.0
        %1282 = vmatprep.subr.mxu0 0.0
        %1283 = vmatpush2.xpose.msra.mxu0 0.0
        %1284 = vmatprep.subr.mxu0 0.0
        %1285 = vmatpush2.xpose.msra.mxu0 0.0
        %1286 = vmatprep.subr.mxu0 0.0
        %1287 = vmatpush2.xpose.msra.mxu0 0.0
        %1288 = vmatprep.subr.mxu0 0.0
        %1289 = vmatpush2.xpose.msra.mxu0 0.0
        %1290 = vmatprep.subr.mxu0 0.0
        %1291 = vmatpush2.xpose.msra.mxu0 0.0
        %1292 = vmatprep.subr.mxu0 0.0
        %1293 = vmatpush2.xpose.msra.mxu0 0.0
        %1294 = vmatprep.subr.mxu0 0.0
        %1295 = vmatpush2.xpose.msra.mxu0 0.0
        %1296 = vmatprep.subr.mxu0 0.0
        %1297 = vmatpush2.xpose.msra.mxu0 0.0
        %1298 = vmatprep.subr.mxu0 0.0
        %1299 = vmatpush2.xpose.msra.mxu0 0.0
        %1300 = vmatprep.subr.mxu0 0.0
        %1301 = vmatpush2.xpose.msra.mxu0 0.0
        %1302 = vmatprep.mubr.f32.mxu0 0.0
        %1303 = vmatmul.mubr.f32.gmra.mxu0 %v1234
        %v1304 = vpop.f32.mrf.mxu0
        %v1305 = vadd.f32 %v719, %v1304
        %v1306 = vpop.f32.mrf.mxu0
        %1307 = vdwg.mxu0
        %v1308 = vsel %vm724, %v1305, -inf
        %1309 = vmax.xlane.f32.xlu0 %v1308
        %v1310 = vpop.xlane.xlu0 %1309
        %v1311 = vsub.f32 %v1305, %v1310
        %v1312 = vmul.f32 %v1311, 1.442695
        %v1313 = vpow.pop %v1312
        %v1314 = vsel %vm724, %v1313, 0.0
        %1315 = vadd.xlane.f32.xlu0 %v1314
        %v1316 = vpop.xlane.xlu0 %1315
        %v1317 = vrcp.pop %v1316
        %v1318 = vmul.f32 %v1313, %v1317
        %1319 = vrot.lane.b32.xlu0 %v711, 40
        %v1320 = vpop.permute.xlu0 %1319
        %v1323 = vsel %vm724, %v1318, 0
        %1325 = vmatprep.subr.mxu0 0.0
        %1326 = vmatpush1.msra.mxu0 0.0
        %1327 = vmatprep.subr.mxu0 0.0
        %1328 = vmatpush1.msra.mxu0 0.0
        %1329 = vmatprep.subr.mxu0 0.0
        %1330 = vmatpush1.msra.mxu0 0.0
        %1331 = vmatprep.subr.mxu0 0.0
        %1332 = vmatpush1.msra.mxu0 0.0
        %1333 = vmatprep.subr.mxu0 0.0
        %1334 = vmatpush1.msra.mxu0 0.0
        %1335 = vmatprep.subr.mxu0 0.0
        %1336 = vmatpush1.msra.mxu0 0.0
        %1337 = vmatprep.subr.mxu0 0.0
        %1338 = vmatpush1.msra.mxu0 0.0
        %1339 = vmatprep.subr.mxu0 0.0
        %1340 = vmatpush1.msra.mxu0 0.0
        %1341 = vmatprep.subr.mxu0 0.0
        %1342 = vmatpush1.msra.mxu0 0.0
        %1343 = vmatprep.subr.mxu0 0.0
        %1344 = vmatpush1.msra.mxu0 0.0
        %1345 = vmatprep.subr.mxu0 0.0
        %1346 = vmatpush1.msra.mxu0 0.0
        %1347 = vmatprep.subr.mxu0 0.0
        %1348 = vmatpush1.msra.mxu0 0.0
        %1349 = vmatprep.subr.mxu0 0.0
        %1350 = vmatpush1.msra.mxu0 0.0
        %1351 = vmatprep.subr.mxu0 0.0
        %1352 = vmatpush1.msra.mxu0 0.0
        %1353 = vmatprep.subr.mxu0 0.0
        %1354 = vmatpush1.msra.mxu0 0.0
        %1355 = vmatprep.subr.mxu0 0.0
        %1356 = vmatpush1.msra.mxu0 %v1320
        %1357 = vmatprep.subr.mxu0 0.0
        %1358 = vmatpush2.msra.mxu0 0.0
        %1359 = vmatprep.subr.mxu0 0.0
        %1360 = vmatpush2.msra.mxu0 0.0
        %1361 = vmatprep.subr.mxu0 0.0
        %1362 = vmatpush2.msra.mxu0 0.0
        %1363 = vmatprep.subr.mxu0 0.0
        %1364 = vmatpush2.msra.mxu0 0.0
        %1365 = vmatprep.subr.mxu0 0.0
        %1366 = vmatpush2.msra.mxu0 0.0
        %1367 = vmatprep.subr.mxu0 0.0
        %1368 = vmatpush2.msra.mxu0 0.0
        %1369 = vmatprep.subr.mxu0 0.0
        %1370 = vmatpush2.msra.mxu0 0.0
        %1371 = vmatprep.subr.mxu0 0.0
        %1372 = vmatpush2.msra.mxu0 0.0
        %1373 = vmatprep.subr.mxu0 0.0
        %1374 = vmatpush2.msra.mxu0 0.0
        %1375 = vmatprep.subr.mxu0 0.0
        %1376 = vmatpush2.msra.mxu0 0.0
        %1377 = vmatprep.subr.mxu0 0.0
        %1378 = vmatpush2.msra.mxu0 0.0
        %1379 = vmatprep.subr.mxu0 0.0
        %1380 = vmatpush2.msra.mxu0 0.0
        %1381 = vmatprep.subr.mxu0 0.0
        %1382 = vmatpush2.msra.mxu0 0.0
        %1383 = vmatprep.subr.mxu0 0.0
        %1384 = vmatpush2.msra.mxu0 0.0
        %1385 = vmatprep.subr.mxu0 0.0
        %1386 = vmatpush2.msra.mxu0 0.0
        %1387 = vmatprep.subr.mxu0 0.0
        %1388 = vmatpush2.msra.mxu0 0.0
        %1389 = vmatprep.mubr.f32.mxu0 0.0
        %1390 = vmatmul.mubr.f32.gmra.mxu0 %v1323
        %v1391 = vpop.f32.mrf.mxu0
        %v1392 = vadd.f32 0.0, %v1391
        %v1393 = vpop.f32.mrf.mxu0
        %1394 = vdwg.mxu0
        %1396 = vrot.lane.b32.xlu0 %v1392, 24
        %v1397 = vpop.permute.xlu0 %1396
        %vm1399 = vcmask 261312
        %1400 = vst.msk [vmem:[#allocation2] sm:$0xff] %vm1399, %v1397
        %v1401 = vld [vmem:[#allocation2] sm:$0xff]
        %v1402 = vld [vmem:[%s6] sm:$0xff]
        %v1403 = vld [vmem:[%s6 + $0x8] sm:$0xff]
        %v1404 = vld [vmem:[%s6 + $0x10] sm:$0xff]
        %v1405 = vld [vmem:[%s6 + $0x18] sm:$0xff]
        %v1406 = vld [vmem:[%s7] sm:$0x1]
        %v1408 = vlaneseq
        %v1409 = vshrl.u32 %v1408, 7
        %v1410 = vsub.s32 0, %v1409
        %v1411 = vrot.slane %v1406, %v1410
        %v1414 = vsel %vm598, %v1401, 0
        %1416 = vmatprep.subr.mxu0 0.0
        %1417 = vmatpush1.msra.mxu0 0.0
        %1418 = vmatprep.subr.mxu0 0.0
        %1419 = vmatpush1.msra.mxu0 0.0
        %1420 = vmatprep.subr.mxu0 0.0
        %1421 = vmatpush1.msra.mxu0 0.0
        %1422 = vmatprep.subr.mxu0 0.0
        %1423 = vmatpush1.msra.mxu0 0.0
        %1424 = vmatprep.subr.mxu0 0.0
        %1425 = vmatpush1.msra.mxu0 0.0
        %1426 = vmatprep.subr.mxu0 0.0
        %1427 = vmatpush1.msra.mxu0 0.0
        %1428 = vmatprep.subr.mxu0 0.0
        %1429 = vmatpush1.msra.mxu0 0.0
        %1430 = vmatprep.subr.mxu0 0.0
        %1431 = vmatpush1.msra.mxu0 0.0
        %1432 = vmatprep.subr.mxu0 0.0
        %1433 = vmatpush1.msra.mxu0 0.0
        %1434 = vmatprep.subr.mxu0 0.0
        %1435 = vmatpush1.msra.mxu0 0.0
        %1436 = vmatprep.subr.mxu0 0.0
        %1437 = vmatpush1.msra.mxu0 0.0
        %1438 = vmatprep.subr.mxu0 0.0
        %1439 = vmatpush1.msra.mxu0 0.0
        %1440 = vmatprep.subr.mxu0 0.0
        %1441 = vmatpush1.msra.mxu0 %v1405
        %1442 = vmatprep.subr.mxu0 0.0
        %1443 = vmatpush1.msra.mxu0 %v1404
        %1444 = vmatprep.subr.mxu0 0.0
        %1445 = vmatpush1.msra.mxu0 %v1403
        %1446 = vmatprep.subr.mxu0 0.0
        %1447 = vmatpush1.msra.mxu0 %v1402
        %1448 = vmatprep.subr.mxu0 0.0
        %1449 = vmatpush2.msra.mxu0 0.0
        %1450 = vmatprep.subr.mxu0 0.0
        %1451 = vmatpush2.msra.mxu0 0.0
        %1452 = vmatprep.subr.mxu0 0.0
        %1453 = vmatpush2.msra.mxu0 0.0
        %1454 = vmatprep.subr.mxu0 0.0
        %1455 = vmatpush2.msra.mxu0 0.0
        %1456 = vmatprep.subr.mxu0 0.0
        %1457 = vmatpush2.msra.mxu0 0.0
        %1458 = vmatprep.subr.mxu0 0.0
        %1459 = vmatpush2.msra.mxu0 0.0
        %1460 = vmatprep.subr.mxu0 0.0
        %1461 = vmatpush2.msra.mxu0 0.0
        %1462 = vmatprep.subr.mxu0 0.0
        %1463 = vmatpush2.msra.mxu0 0.0
        %1464 = vmatprep.subr.mxu0 0.0
        %1465 = vmatpush2.msra.mxu0 0.0
        %1466 = vmatprep.subr.mxu0 0.0
        %1467 = vmatpush2.msra.mxu0 0.0
        %1468 = vmatprep.subr.mxu0 0.0
        %1469 = vmatpush2.msra.mxu0 0.0
        %1470 = vmatprep.subr.mxu0 0.0
        %1471 = vmatpush2.msra.mxu0 0.0
        %1472 = vmatprep.subr.mxu0 0.0
        %1473 = vmatpush2.msra.mxu0 0.0
        %1474 = vmatprep.subr.mxu0 0.0
        %1475 = vmatpush2.msra.mxu0 0.0
        %1476 = vmatprep.subr.mxu0 0.0
        %1477 = vmatpush2.msra.mxu0 0.0
        %1478 = vmatprep.subr.mxu0 0.0
        %1479 = vmatpush2.msra.mxu0 0.0
        %1480 = vmatprep.mubr.f32.mxu0 0.0
        %1481 = vmatmul.mubr.f32.gmra.mxu0 %v1414
        %v1482 = vpop.f32.mrf.mxu0
        %v1483 = vadd.f32 %v1411, %v1482
        %v1484 = vpop.f32.mrf.mxu0
        %1485 = vdwg.mxu0
        %v1486 = vadd.f32 %v1483, %v626
        %v1487 = vld [vmem:[%s8] sm:$0x1]
        %v1488 = vld [vmem:[%s9] sm:$0x1]
        %v1489 = vsel %vm598, %v1486, 0.0
        %1490 = vadd.xlane.f32.xlu0 %v1489
        %v1491 = vpop.xlane.xlu0 %1490
        %v1492 = vmul.f32 %v1491, %v602
        %v1493 = vsub.f32 %v1486, %v1492
        %v1494 = vmul.f32 %v1493, %v1493
        %v1495 = vsel %vm598, %v1494, 0.0
        %1496 = vadd.xlane.f32.xlu0 %v1495
        %v1497 = vpop.xlane.xlu0 %1496
        %v1498 = vmul.f32 %v1497, %v602
        %v1499 = vadd.f32 %v1498, 1e-12
        %v1500 = vrsqrt.pop %v1499
        %v1501 = vmul.f32 %v1493, %v1500
        %v1503 = vlaneseq
        %v1504 = vshrl.u32 %v1503, 7
        %v1505 = vsub.s32 0, %v1504
        %v1506 = vrot.slane %v1487, %v1505
        %v1508 = vmul.f32 %v1501, %v1506
        %v1510 = vlaneseq
        %v1511 = vshrl.u32 %v1510, 7
        %v1512 = vsub.s32 0, %v1511
        %v1513 = vrot.slane %v1488, %v1512
        %v1515 = vadd.f32 %v1508, %v1513
        %v1516 = vld [vmem:[%s10] sm:$0xff]
        %v1517 = vld [vmem:[%s10 + $0x8] sm:$0xff]
        %v1518 = vld [vmem:[%s10 + $0x10] sm:$0xff]
        %v1519 = vld [vmem:[%s10 + $0x18] sm:$0xff]
        %v1520 = vld [vmem:[%s11] sm:$0x1]
        %v1522 = vlaneseq
        %v1523 = vshrl.u32 %v1522, 7
        %v1524 = vsub.s32 0, %v1523
        %v1525 = vrot.slane %v1520, %v1524
        %v1528 = vsel %vm598, %v1515, 0
        %1530 = vmatprep.subr.mxu0 0.0
        %1531 = vmatpush1.msra.mxu0 0.0
        %1532 = vmatprep.subr.mxu0 0.0
        %1533 = vmatpush1.msra.mxu0 0.0
        %1534 = vmatprep.subr.mxu0 0.0
        %1535 = vmatpush1.msra.mxu0 0.0
        %1536 = vmatprep.subr.mxu0 0.0
        %1537 = vmatpush1.msra.mxu0 0.0
        %1538 = vmatprep.subr.mxu0 0.0
        %1539 = vmatpush1.msra.mxu0 0.0
        %1540 = vmatprep.subr.mxu0 0.0
        %1541 = vmatpush1.msra.mxu0 0.0
        %1542 = vmatprep.subr.mxu0 0.0
        %1543 = vmatpush1.msra.mxu0 0.0
        %1544 = vmatprep.subr.mxu0 0.0
        %1545 = vmatpush1.msra.mxu0 0.0
        %1546 = vmatprep.subr.mxu0 0.0
        %1547 = vmatpush1.msra.mxu0 0.0
        %1548 = vmatprep.subr.mxu0 0.0
        %1549 = vmatpush1.msra.mxu0 0.0
        %1550 = vmatprep.subr.mxu0 0.0
        %1551 = vmatpush1.msra.mxu0 0.0
        %1552 = vmatprep.subr.mxu0 0.0
        %1553 = vmatpush1.msra.mxu0 0.0
        %1554 = vmatprep.subr.mxu0 0.0
        %1555 = vmatpush1.msra.mxu0 %v1519
        %1556 = vmatprep.subr.mxu0 0.0
        %1557 = vmatpush1.msra.mxu0 %v1518
        %1558 = vmatprep.subr.mxu0 0.0
        %1559 = vmatpush1.msra.mxu0 %v1517
        %1560 = vmatprep.subr.mxu0 0.0
        %1561 = vmatpush1.msra.mxu0 %v1516
        %1562 = vmatprep.subr.mxu0 0.0
        %1563 = vmatpush2.msra.mxu0 0.0
        %1564 = vmatprep.subr.mxu0 0.0
        %1565 = vmatpush2.msra.mxu0 0.0
        %1566 = vmatprep.subr.mxu0 0.0
        %1567 = vmatpush2.msra.mxu0 0.0
        %1568 = vmatprep.subr.mxu0 0.0
        %1569 = vmatpush2.msra.mxu0 0.0
        %1570 = vmatprep.subr.mxu0 0.0
        %1571 = vmatpush2.msra.mxu0 0.0
        %1572 = vmatprep.subr.mxu0 0.0
        %1573 = vmatpush2.msra.mxu0 0.0
        %1574 = vmatprep.subr.mxu0 0.0
        %1575 = vmatpush2.msra.mxu0 0.0
        %1576 = vmatprep.subr.mxu0 0.0
        %1577 = vmatpush2.msra.mxu0 0.0
        %1578 = vmatprep.subr.mxu0 0.0
        %1579 = vmatpush2.msra.mxu0 0.0
        %1580 = vmatprep.subr.mxu0 0.0
        %1581 = vmatpush2.msra.mxu0 0.0
        %1582 = vmatprep.subr.mxu0 0.0
        %1583 = vmatpush2.msra.mxu0 0.0
        %1584 = vmatprep.subr.mxu0 0.0
        %1585 = vmatpush2.msra.mxu0 0.0
        %1586 = vmatprep.subr.mxu0 0.0
        %1587 = vmatpush2.msra.mxu0 0.0
        %1588 = vmatprep.subr.mxu0 0.0
        %1589 = vmatpush2.msra.mxu0 0.0
        %1590 = vmatprep.subr.mxu0 0.0
        %1591 = vmatpush2.msra.mxu0 0.0
        %1592 = vmatprep.subr.mxu0 0.0
        %1593 = vmatpush2.msra.mxu0 0.0
        %1594 = vmatprep.mubr.f32.mxu0 0.0
        %1595 = vmatmul.mubr.f32.gmra.mxu0 %v1528
        %v1596 = vpop.f32.mrf.mxu0
        %v1597 = vadd.f32 %v1525, %v1596
        %v1598 = vpop.f32.mrf.mxu0
        %1599 = vdwg.mxu0
        %v1600 = vmul.f32 %v1597, %v1597
        %v1601 = vmul.f32 %v1597, %v1600
        %v1602 = vmul.f32 %v1601, 0.044715
        %v1603 = vadd.f32 %v1597, %v1602
        %v1604 = vmul.f32 %v1603, 0.7978846
        %v1605 = vtanh.pop %v1604
        %v1606 = vadd.f32 %v1605, 1.0
        %v1607 = vmul.f32 %v1606, 0.5
        %v1608 = vmul.f32 %v1597, %v1607
        %v1609 = vld [vmem:[%s12] sm:$0xff]
        %v1610 = vld [vmem:[%s12 + $0x8] sm:$0xff]
        %v1611 = vld [vmem:[%s12 + $0x10] sm:$0xff]
        %v1612 = vld [vmem:[%s12 + $0x18] sm:$0xff]
        %v1613 = vld [vmem:[%s12 + $0x20] sm:$0xff]
        %v1614 = vld [vmem:[%s12 + $0x28] sm:$0xff]
        %v1615 = vld [vmem:[%s12 + $0x30] sm:$0xff]
        %v1616 = vld [vmem:[%s12 + $0x38] sm:$0xff]
        %v1617 = vld [vmem:[%s13] sm:$0x1]
        %v1619 = vlaneseq
        %v1620 = vshrl.u32 %v1619, 7
        %v1621 = vsub.s32 0, %v1620
        %v1622 = vrot.slane %v1617, %v1621
        %vm1624 = vcmask 523264
        %v1626 = vsel %vm1624, %v1608, 0
        %1628 = vmatprep.subr.mxu0 0.0
        %1629 = vmatpush1.msra.mxu0 0.0
        %1630 = vmatprep.subr.mxu0 0.0
        %1631 = vmatpush1.msra.mxu0 0.0
        %1632 = vmatprep.subr.mxu0 0.0
        %1633 = vmatpush1.msra.mxu0 0.0
        %1634 = vmatprep.subr.mxu0 0.0
        %1635 = vmatpush1.msra.mxu0 0.0
        %1636 = vmatprep.subr.mxu0 0.0
        %1637 = vmatpush1.msra.mxu0 0.0
        %1638 = vmatprep.subr.mxu0 0.0
        %1639 = vmatpush1.msra.mxu0 0.0
        %1640 = vmatprep.subr.mxu0 0.0
        %1641 = vmatpush1.msra.mxu0 0.0
        %1642 = vmatprep.subr.mxu0 0.0
        %1643 = vmatpush1.msra.mxu0 0.0
        %1644 = vmatprep.subr.mxu0 0.0
        %1645 = vmatpush1.msra.mxu0 %v1616
        %1646 = vmatprep.subr.mxu0 0.0
        %1647 = vmatpush1.msra.mxu0 %v1615
        %1648 = vmatprep.subr.mxu0 0.0
        %1649 = vmatpush1.msra.mxu0 %v1614
        %1650 = vmatprep.subr.mxu0 0.0
        %1651 = vmatpush1.msra.mxu0 %v1613
        %1652 = vmatprep.subr.mxu0 0.0
        %1653 = vmatpush1.msra.mxu0 %v1612
        %1654 = vmatprep.subr.mxu0 0.0
        %1655 = vmatpush1.msra.mxu0 %v1611
        %1656 = vmatprep.subr.mxu0 0.0
        %1657 = vmatpush1.msra.mxu0 %v1610
        %1658 = vmatprep.subr.mxu0 0.0
        %1659 = vmatpush1.msra.mxu0 %v1609
        %1660 = vmatprep.subr.mxu0 0.0
        %1661 = vmatpush2.msra.mxu0 0.0
        %1662 = vmatprep.subr.mxu0 0.0
        %1663 = vmatpush2.msra.mxu0 0.0
        %1664 = vmatprep.subr.mxu0 0.0
        %1665 = vmatpush2.msra.mxu0 0.0
        %1666 = vmatprep.subr.mxu0 0.0
        %1667 = vmatpush2.msra.mxu0 0.0
        %1668 = vmatprep.subr.mxu0 0.0
        %1669 = vmatpush2.msra.mxu0 0.0
        %1670 = vmatprep.subr.mxu0 0.0
        %1671 = vmatpush2.msra.mxu0 0.0
        %1672 = vmatprep.subr.mxu0 0.0
        %1673 = vmatpush2.msra.mxu0 0.0
        %1674 = vmatprep.subr.mxu0 0.0
        %1675 = vmatpush2.msra.mxu0 0.0
        %1676 = vmatprep.subr.mxu0 0.0
        %1677 = vmatpush2.msra.mxu0 0.0
        %1678 = vmatprep.subr.mxu0 0.0
        %1679 = vmatpush2.msra.mxu0 0.0
        %1680 = vmatprep.subr.mxu0 0.0
        %1681 = vmatpush2.msra.mxu0 0.0
        %1682 = vmatprep.subr.mxu0 0.0
        %1683 = vmatpush2.msra.mxu0 0.0
        %1684 = vmatprep.subr.mxu0 0.0
        %1685 = vmatpush2.msra.mxu0 0.0
        %1686 = vmatprep.subr.mxu0 0.0
        %1687 = vmatpush2.msra.mxu0 0.0
        %1688 = vmatprep.subr.mxu0 0.0
        %1689 = vmatpush2.msra.mxu0 0.0
        %1690 = vmatprep.subr.mxu0 0.0
        %1691 = vmatpush2.msra.mxu0 0.0
        %1692 = vmatprep.mubr.f32.mxu0 0.0
        %1693 = vmatmul.mubr.f32.gmra.mxu0 %v1626
        %v1694 = vpop.f32.mrf.mxu0
        %v1695 = vadd.f32 %v1622, %v1694
        %v1696 = vpop.f32.mrf.mxu0
        %1697 = vdwg.mxu0
        %v1698 = vadd.f32 %v1695, %v1515
        %v1699 = vld [vmem:[%s14] sm:$0x1]
        %v1700 = vld [vmem:[%s15] sm:$0x1]
        %v1701 = vsel %vm598, %v1698, 0.0
        %1702 = vadd.xlane.f32.xlu0 %v1701
        %v1703 = vpop.xlane.xlu0 %1702
        %v1704 = vmul.f32 %v1703, %v602
        %v1705 = vsub.f32 %v1698, %v1704
        %v1706 = vmul.f32 %v1705, %v1705
        %v1707 = vsel %vm598, %v1706, 0.0
        %1708 = vadd.xlane.f32.xlu0 %v1707
        %v1709 = vpop.xlane.xlu0 %1708
        %v1710 = vmul.f32 %v1709, %v602
        %v1711 = vadd.f32 %v1710, 1e-12
        %v1712 = vrsqrt.pop %v1711
        %v1713 = vmul.f32 %v1705, %v1712
        %v1715 = vlaneseq
        %v1716 = vshrl.u32 %v1715, 7
        %v1717 = vsub.s32 0, %v1716
        %v1718 = vrot.slane %v1699, %v1717
        %v1720 = vmul.f32 %v1713, %v1718
        %v1722 = vlaneseq
        %v1723 = vshrl.u32 %v1722, 7
        %v1724 = vsub.s32 0, %v1723
        %v1725 = vrot.slane %v1700, %v1724
        %v1727 = vadd.f32 %v1720, %v1725
        %s1728 = scalar_lea.vmem %s4, 32
        %v1729 = vld [vmem:[%s1728] sm:$0xff]
        %v1730 = vld [vmem:[%s1728 + $0x8] sm:$0xff]
        %v1731 = vld [vmem:[%s1728 + $0x10] sm:$0xff]
        %v1732 = vld [vmem:[%s1728 + $0x18] sm:$0xff]
        %s1733 = scalar_lea.vmem %s5, 1
        %v1734 = vld [vmem:[%s1733] sm:$0x1]
        %v1736 = vlaneseq
        %v1737 = vshrl.u32 %v1736, 7
        %v1738 = vsub.s32 0, %v1737
        %v1739 = vrot.slane %v1734, %v1738
        %v1742 = vsel %vm598, %v1727, 0
        %1744 = vmatprep.subr.mxu0 0.0
        %1745 = vmatpush1.msra.mxu0 0.0
        %1746 = vmatprep.subr.mxu0 0.0
        %1747 = vmatpush1.msra.mxu0 0.0
        %1748 = vmatprep.subr.mxu0 0.0
        %1749 = vmatpush1.msra.mxu0 0.0
        %1750 = vmatprep.subr.mxu0 0.0
        %1751 = vmatpush1.msra.mxu0 0.0
        %1752 = vmatprep.subr.mxu0 0.0
        %1753 = vmatpush1.msra.mxu0 0.0
        %1754 = vmatprep.subr.mxu0 0.0
        %1755 = vmatpush1.msra.mxu0 0.0
        %1756 = vmatprep.subr.mxu0 0.0
        %1757 = vmatpush1.msra.mxu0 0.0
        %1758 = vmatprep.subr.mxu0 0.0
        %1759 = vmatpush1.msra.mxu0 0.0
        %1760 = vmatprep.subr.mxu0 0.0
        %1761 = vmatpush1.msra.mxu0 0.0
        %1762 = vmatprep.subr.mxu0 0.0
        %1763 = vmatpush1.msra.mxu0 0.0
        %1764 = vmatprep.subr.mxu0 0.0
        %1765 = vmatpush1.msra.mxu0 0.0
        %1766 = vmatprep.subr.mxu0 0.0
        %1767 = vmatpush1.msra.mxu0 0.0
        %1768 = vmatprep.subr.mxu0 0.0
        %1769 = vmatpush1.msra.mxu0 %v1732
        %1770 = vmatprep.subr.mxu0 0.0
        %1771 = vmatpush1.msra.mxu0 %v1731
        %1772 = vmatprep.subr.mxu0 0.0
        %1773 = vmatpush1.msra.mxu0 %v1730
        %1774 = vmatprep.subr.mxu0 0.0
        %1775 = vmatpush1.msra.mxu0 %v1729
        %1776 = vmatprep.subr.mxu0 0.0
        %1777 = vmatpush2.msra.mxu0 0.0
        %1778 = vmatprep.subr.mxu0 0.0
        %1779 = vmatpush2.msra.mxu0 0.0
        %1780 = vmatprep.subr.mxu0 0.0
        %1781 = vmatpush2.msra.mxu0 0.0
        %1782 = vmatprep.subr.mxu0 0.0
        %1783 = vmatpush2.msra.mxu0 0.0
        %1784 = vmatprep.subr.mxu0 0.0
        %1785 = vmatpush2.msra.mxu0 0.0
        %1786 = vmatprep.subr.mxu0 0.0
        %1787 = vmatpush2.msra.mxu0 0.0
        %1788 = vmatprep.subr.mxu0 0.0
        %1789 = vmatpush2.msra.mxu0 0.0
        %1790 = vmatprep.subr.mxu0 0.0
        %1791 = vmatpush2.msra.mxu0 0.0
        %1792 = vmatprep.subr.mxu0 0.0
        %1793 = vmatpush2.msra.mxu0 0.0
        %1794 = vmatprep.subr.mxu0 0.0
        %1795 = vmatpush2.msra.mxu0 0.0
        %1796 = vmatprep.subr.mxu0 0.0
        %1797 = vmatpush2.msra.mxu0 0.0
        %1798 = vmatprep.subr.mxu0 0.0
        %1799 = vmatpush2.msra.mxu0 0.0
        %1800 = vmatprep.subr.mxu0 0.0
        %1801 = vmatpush2.msra.mxu0 0.0
        %1802 = vmatprep.subr.mxu0 0.0
        %1803 = vmatpush2.msra.mxu0 0.0
        %1804 = vmatprep.subr.mxu0 0.0
        %1805 = vmatpush2.msra.mxu0 0.0
        %1806 = vmatprep.subr.mxu0 0.0
        %1807 = vmatpush2.msra.mxu0 0.0
        %1808 = vmatprep.mubr.f32.mxu0 0.0
        %1809 = vmatmul.mubr.f32.gmra.mxu0 %v1742
        %v1810 = vpop.f32.mrf.mxu0
        %v1811 = vadd.f32 %v1739, %v1810
        %v1812 = vpop.f32.mrf.mxu0
        %1813 = vdwg.mxu0
        %v1814 = vmul.f32 %v1811, 0.35355338
        %1816 = vrot.lane.b32.xlu0 %v1811, 96
        %v1817 = vpop.permute.xlu0 %1816
        %v1819 = vsel %vm724, %v1814, 0
        %v1821 = vsel %vm724, %v1817, 0
        %1823 = vmatprep.subr.mxu0 0.0
        %1824 = vmatpush1.xpose.msra.mxu0 0.0
        %1825 = vmatprep.subr.mxu0 0.0
        %1826 = vmatpush1.xpose.msra.mxu0 0.0
        %1827 = vmatprep.subr.mxu0 0.0
        %1828 = vmatpush1.xpose.msra.mxu0 0.0
        %1829 = vmatprep.subr.mxu0 0.0
        %1830 = vmatpush1.xpose.msra.mxu0 0.0
        %1831 = vmatprep.subr.mxu0 0.0
        %1832 = vmatpush1.xpose.msra.mxu0 0.0
        %1833 = vmatprep.subr.mxu0 0.0
        %1834 = vmatpush1.xpose.msra.mxu0 0.0
        %1835 = vmatprep.subr.mxu0 0.0
        %1836 = vmatpush1.xpose.msra.mxu0 0.0
        %1837 = vmatprep.subr.mxu0 0.0
        %1838 = vmatpush1.xpose.msra.mxu0 0.0
        %1839 = vmatprep.subr.mxu0 0.0
        %1840 = vmatpush1.xpose.msra.mxu0 0.0
        %1841 = vmatprep.subr.mxu0 0.0
        %1842 = vmatpush1.xpose.msra.mxu0 0.0
        %1843 = vmatprep.subr.mxu0 0.0
        %1844 = vmatpush1.xpose.msra.mxu0 0.0
        %1845 = vmatprep.subr.mxu0 0.0
        %1846 = vmatpush1.xpose.msra.mxu0 0.0
        %1847 = vmatprep.subr.mxu0 0.0
        %1848 = vmatpush1.xpose.msra.mxu0 0.0
        %1849 = vmatprep.subr.mxu0 0.0
        %1850 = vmatpush1.xpose.msra.mxu0 0.0
        %1851 = vmatprep.subr.mxu0 0.0
        %1852 = vmatpush1.xpose.msra.mxu0 0.0
        %1853 = vmatprep.subr.mxu0 0.0
        %1854 = vmatpush1.xpose.msra.mxu0 %v1821
        %1855 = vmatprep.subr.mxu0 0.0
        %1856 = vmatpush2.xpose.msra.mxu0 0.0
        %1857 = vmatprep.subr.mxu0 0.0
        %1858 = vmatpush2.xpose.msra.mxu0 0.0
        %1859 = vmatprep.subr.mxu0 0.0
        %1860 = vmatpush2.xpose.msra.mxu0 0.0
        %1861 = vmatprep.subr.mxu0 0.0
        %1862 = vmatpush2.xpose.msra.mxu0 0.0
        %1863 = vmatprep.subr.mxu0 0.0
        %1864 = vmatpush2.xpose.msra.mxu0 0.0
        %1865 = vmatprep.subr.mxu0 0.0
        %1866 = vmatpush2.xpose.msra.mxu0 0.0
        %1867 = vmatprep.subr.mxu0 0.0
        %1868 = vmatpush2.xpose.msra.mxu0 0.0
        %1869 = vmatprep.subr.mxu0 0.0
        %1870 = vmatpush2.xpose.msra.mxu0 0.0
        %1871 = vmatprep.subr.mxu0 0.0
        %1872 = vmatpush2.xpose.msra.mxu0 0.0
        %1873 = vmatprep.subr.mxu0 0.0
        %1874 = vmatpush2.xpose.msra.mxu0 0.0
        %1875 = vmatprep.subr.mxu0 0.0
        %1876 = vmatpush2.xpose.msra.mxu0 0.0
        %1877 = vmatprep.subr.mxu0 0.0
        %1878 = vmatpush2.xpose.msra.mxu0 0.0
        %1879 = vmatprep.subr.mxu0 0.0
        %1880 = vmatpush2.xpose.msra.mxu0 0.0
        %1881 = vmatprep.subr.mxu0 0.0
        %1882 = vmatpush2.xpose.msra.mxu0 0.0
        %1883 = vmatprep.subr.mxu0 0.0
        %1884 = vmatpush2.xpose.msra.mxu0 0.0
        %1885 = vmatprep.subr.mxu0 0.0
        %1886 = vmatpush2.xpose.msra.mxu0 0.0
        %1887 = vmatprep.mubr.f32.mxu0 0.0
        %1888 = vmatmul.mubr.f32.gmra.mxu0 %v1819
        %v1889 = vpop.f32.mrf.mxu0
        %v1890 = vadd.f32 %v719, %v1889
        %v1891 = vpop.f32.mrf.mxu0
        %1892 = vdwg.mxu0
        %v1893 = vsel %vm724, %v1890, -inf
        %1894 = vmax.xlane.f32.xlu0 %v1893
        %v1895 = vpop.xlane.xlu0 %1894
        %v1896 = vsub.f32 %v1890, %v1895
        %v1897 = vmul.f32 %v1896, 1.442695
        %v1898 = vpow.pop %v1897
        %v1899 = vsel %vm724, %v1898, 0.0
        %1900 = vadd.xlane.f32.xlu0 %v1899
        %v1901 = vpop.xlane.xlu0 %1900
        %v1902 = vrcp.pop %v1901
        %v1903 = vmul.f32 %v1898, %v1902
        %1904 = vrot.lane.b32.xlu0 %v1811, 64
        %v1905 = vpop.permute.xlu0 %1904
        %v1908 = vsel %vm724, %v1903, 0
        %1910 = vmatprep.subr.mxu0 0.0
        %1911 = vmatpush1.msra.mxu0 0.0
        %1912 = vmatprep.subr.mxu0 0.0
        %1913 = vmatpush1.msra.mxu0 0.0
        %1914 = vmatprep.subr.mxu0 0.0
        %1915 = vmatpush1.msra.mxu0 0.0
        %1916 = vmatprep.subr.mxu0 0.0
        %1917 = vmatpush1.msra.mxu0 0.0
        %1918 = vmatprep.subr.mxu0 0.0
        %1919 = vmatpush1.msra.mxu0 0.0
        %1920 = vmatprep.subr.mxu0 0.0
        %1921 = vmatpush1.msra.mxu0 0.0
        %1922 = vmatprep.subr.mxu0 0.0
        %1923 = vmatpush1.msra.mxu0 0.0
        %1924 = vmatprep.subr.mxu0 0.0
        %1925 = vmatpush1.msra.mxu0 0.0
        %1926 = vmatprep.subr.mxu0 0.0
        %1927 = vmatpush1.msra.mxu0 0.0
        %1928 = vmatprep.subr.mxu0 0.0
        %1929 = vmatpush1.msra.mxu0 0.0
        %1930 = vmatprep.subr.mxu0 0.0
        %1931 = vmatpush1.msra.mxu0 0.0
        %1932 = vmatprep.subr.mxu0 0.0
        %1933 = vmatpush1.msra.mxu0 0.0
        %1934 = vmatprep.subr.mxu0 0.0
        %1935 = vmatpush1.msra.mxu0 0.0
        %1936 = vmatprep.subr.mxu0 0.0
        %1937 = vmatpush1.msra.mxu0 0.0
        %1938 = vmatprep.subr.mxu0 0.0
        %1939 = vmatpush1.msra.mxu0 0.0
        %1940 = vmatprep.subr.mxu0 0.0
        %1941 = vmatpush1.msra.mxu0 %v1905
        %1942 = vmatprep.subr.mxu0 0.0
        %1943 = vmatpush2.msra.mxu0 0.0
        %1944 = vmatprep.subr.mxu0 0.0
        %1945 = vmatpush2.msra.mxu0 0.0
        %1946 = vmatprep.subr.mxu0 0.0
        %1947 = vmatpush2.msra.mxu0 0.0
        %1948 = vmatprep.subr.mxu0 0.0
        %1949 = vmatpush2.msra.mxu0 0.0
        %1950 = vmatprep.subr.mxu0 0.0
        %1951 = vmatpush2.msra.mxu0 0.0
        %1952 = vmatprep.subr.mxu0 0.0
        %1953 = vmatpush2.msra.mxu0 0.0
        %1954 = vmatprep.subr.mxu0 0.0
        %1955 = vmatpush2.msra.mxu0 0.0
        %1956 = vmatprep.subr.mxu0 0.0
        %1957 = vmatpush2.msra.mxu0 0.0
        %1958 = vmatprep.subr.mxu0 0.0
        %1959 = vmatpush2.msra.mxu0 0.0
        %1960 = vmatprep.subr.mxu0 0.0
        %1961 = vmatpush2.msra.mxu0 0.0
        %1962 = vmatprep.subr.mxu0 0.0
        %1963 = vmatpush2.msra.mxu0 0.0
        %1964 = vmatprep.subr.mxu0 0.0
        %1965 = vmatpush2.msra.mxu0 0.0
        %1966 = vmatprep.subr.mxu0 0.0
        %1967 = vmatpush2.msra.mxu0 0.0
        %1968 = vmatprep.subr.mxu0 0.0
        %1969 = vmatpush2.msra.mxu0 0.0
        %1970 = vmatprep.subr.mxu0 0.0
        %1971 = vmatpush2.msra.mxu0 0.0
        %1972 = vmatprep.subr.mxu0 0.0
        %1973 = vmatpush2.msra.mxu0 0.0
        %1974 = vmatprep.mubr.f32.mxu0 0.0
        %1975 = vmatmul.mubr.f32.gmra.mxu0 %v1908
        %v1976 = vpop.f32.mrf.mxu0
        %v1977 = vadd.f32 0.0, %v1976
        %v1978 = vpop.f32.mrf.mxu0
        %1979 = vdwg.mxu0
        %1980 = vst.msk [vmem:[#allocation2] sm:$0xff] %vm724, %v1977
        %1981 = vrot.lane.b32.xlu0 %v1814, 120
        %v1982 = vpop.permute.xlu0 %1981
        %1983 = vrot.lane.b32.xlu0 %v1811, 88
        %v1984 = vpop.permute.xlu0 %1983
        %v1985 = vsel %vm724, %v1982, 0
        %v1987 = vsel %vm724, %v1984, 0
        %1989 = vmatprep.subr.mxu0 0.0
        %1990 = vmatpush1.xpose.msra.mxu0 0.0
        %1991 = vmatprep.subr.mxu0 0.0
        %1992 = vmatpush1.xpose.msra.mxu0 0.0
        %1993 = vmatprep.subr.mxu0 0.0
        %1994 = vmatpush1.xpose.msra.mxu0 0.0
        %1995 = vmatprep.subr.mxu0 0.0
        %1996 = vmatpush1.xpose.msra.mxu0 0.0
        %1997 = vmatprep.subr.mxu0 0.0
        %1998 = vmatpush1.xpose.msra.mxu0 0.0
        %1999 = vmatprep.subr.mxu0 0.0
        %2000 = vmatpush1.xpose.msra.mxu0 0.0
        %2001 = vmatprep.subr.mxu0 0.0
        %2002 = vmatpush1.xpose.msra.mxu0 0.0
        %2003 = vmatprep.subr.mxu0 0.0
        %2004 = vmatpush1.xpose.msra.mxu0 0.0
        %2005 = vmatprep.subr.mxu0 0.0
        %2006 = vmatpush1.xpose.msra.mxu0 0.0
        %2007 = vmatprep.subr.mxu0 0.0
        %2008 = vmatpush1.xpose.msra.mxu0 0.0
        %2009 = vmatprep.subr.mxu0 0.0
        %2010 = vmatpush1.xpose.msra.mxu0 0.0
        %2011 = vmatprep.subr.mxu0 0.0
        %2012 = vmatpush1.xpose.msra.mxu0 0.0
        %2013 = vmatprep.subr.mxu0 0.0
        %2014 = vmatpush1.xpose.msra.mxu0 0.0
        %2015 = vmatprep.subr.mxu0 0.0
        %2016 = vmatpush1.xpose.msra.mxu0 0.0
        %2017 = vmatprep.subr.mxu0 0.0
        %2018 = vmatpush1.xpose.msra.mxu0 0.0
        %2019 = vmatprep.subr.mxu0 0.0
        %2020 = vmatpush1.xpose.msra.mxu0 %v1987
        %2021 = vmatprep.subr.mxu0 0.0
        %2022 = vmatpush2.xpose.msra.mxu0 0.0
        %2023 = vmatprep.subr.mxu0 0.0
        %2024 = vmatpush2.xpose.msra.mxu0 0.0
        %2025 = vmatprep.subr.mxu0 0.0
        %2026 = vmatpush2.xpose.msra.mxu0 0.0
        %2027 = vmatprep.subr.mxu0 0.0
        %2028 = vmatpush2.xpose.msra.mxu0 0.0
        %2029 = vmatprep.subr.mxu0 0.0
        %2030 = vmatpush2.xpose.msra.mxu0 0.0
        %2031 = vmatprep.subr.mxu0 0.0
        %2032 = vmatpush2.xpose.msra.mxu0 0.0
        %2033 = vmatprep.subr.mxu0 0.0
        %2034 = vmatpush2.xpose.msra.mxu0 0.0
        %2035 = vmatprep.subr.mxu0 0.0
        %2036 = vmatpush2.xpose.msra.mxu0 0.0
        %2037 = vmatprep.subr.mxu0 0.0
        %2038 = vmatpush2.xpose.msra.mxu0 0.0
        %2039 = vmatprep.subr.mxu0 0.0
        %2040 = vmatpush2.xpose.msra.mxu0 0.0
        %2041 = vmatprep.subr.mxu0 0.0
        %2042 = vmatpush2.xpose.msra.mxu0 0.0
        %2043 = vmatprep.subr.mxu0 0.0
        %2044 = vmatpush2.xpose.msra.mxu0 0.0
        %2045 = vmatprep.subr.mxu0 0.0
        %2046 = vmatpush2.xpose.msra.mxu0 0.0
        %2047 = vmatprep.subr.mxu0 0.0
        %2048 = vmatpush2.xpose.msra.mxu0 0.0
        %2049 = vmatprep.subr.mxu0 0.0
        %2050 = vmatpush2.xpose.msra.mxu0 0.0
        %2051 = vmatprep.subr.mxu0 0.0
        %2052 = vmatpush2.xpose.msra.mxu0 0.0
        %2053 = vmatprep.mubr.f32.mxu0 0.0
        %2054 = vmatmul.mubr.f32.gmra.mxu0 %v1985
        %v2055 = vpop.f32.mrf.mxu0
        %v2056 = vadd.f32 %v719, %v2055
        %v2057 = vpop.f32.mrf.mxu0
        %2058 = vdwg.mxu0
        %v2059 = vsel %vm724, %v2056, -inf
        %2060 = vmax.xlane.f32.xlu0 %v2059
        %v2061 = vpop.xlane.xlu0 %2060
        %v2062 = vsub.f32 %v2056, %v2061
        %v2063 = vmul.f32 %v2062, 1.442695
        %v2064 = vpow.pop %v2063
        %v2065 = vsel %vm724, %v2064, 0.0
        %2066 = vadd.xlane.f32.xlu0 %v2065
        %v2067 = vpop.xlane.xlu0 %2066
        %v2068 = vrcp.pop %v2067
        %v2069 = vmul.f32 %v2064, %v2068
        %2070 = vrot.lane.b32.xlu0 %v1811, 56
        %v2071 = vpop.permute.xlu0 %2070
        %v2074 = vsel %vm724, %v2069, 0
        %2076 = vmatprep.subr.mxu0 0.0
        %2077 = vmatpush1.msra.mxu0 0.0
        %2078 = vmatprep.subr.mxu0 0.0
        %2079 = vmatpush1.msra.mxu0 0.0
        %2080 = vmatprep.subr.mxu0 0.0
        %2081 = vmatpush1.msra.mxu0 0.0
        %2082 = vmatprep.subr.mxu0 0.0
        %2083 = vmatpush1.msra.mxu0 0.0
        %2084 = vmatprep.subr.mxu0 0.0
        %2085 = vmatpush1.msra.mxu0 0.0
        %2086 = vmatprep.subr.mxu0 0.0
        %2087 = vmatpush1.msra.mxu0 0.0
        %2088 = vmatprep.subr.mxu0 0.0
        %2089 = vmatpush1.msra.mxu0 0.0
        %2090 = vmatprep.subr.mxu0 0.0
        %2091 = vmatpush1.msra.mxu0 0.0
        %2092 = vmatprep.subr.mxu0 0.0
        %2093 = vmatpush1.msra.mxu0 0.0
        %2094 = vmatprep.subr.mxu0 0.0
        %2095 = vmatpush1.msra.mxu0 0.0
        %2096 = vmatprep.subr.mxu0 0.0
        %2097 = vmatpush1.msra.mxu0 0.0
        %2098 = vmatprep.subr.mxu0 0.0
        %2099 = vmatpush1.msra.mxu0 0.0
        %2100 = vmatprep.subr.mxu0 0.0
        %2101 = vmatpush1.msra.mxu0 0.0
        %2102 = vmatprep.subr.mxu0 0.0
        %2103 = vmatpush1.msra.mxu0 0.0
        %2104 = vmatprep.subr.mxu0 0.0
        %2105 = vmatpush1.msra.mxu0 0.0
        %2106 = vmatprep.subr.mxu0 0.0
        %2107 = vmatpush1.msra.mxu0 %v2071
        %2108 = vmatprep.subr.mxu0 0.0
        %2109 = vmatpush2.msra.mxu0 0.0
        %2110 = vmatprep.subr.mxu0 0.0
        %2111 = vmatpush2.msra.mxu0 0.0
        %2112 = vmatprep.subr.mxu0 0.0
        %2113 = vmatpush2.msra.mxu0 0.0
        %2114 = vmatprep.subr.mxu0 0.0
        %2115 = vmatpush2.msra.mxu0 0.0
        %2116 = vmatprep.subr.mxu0 0.0
        %2117 = vmatpush2.msra.mxu0 0.0
        %2118 = vmatprep.subr.mxu0 0.0
        %2119 = vmatpush2.msra.mxu0 0.0
        %2120 = vmatprep.subr.mxu0 0.0
        %2121 = vmatpush2.msra.mxu0 0.0
        %2122 = vmatprep.subr.mxu0 0.0
        %2123 = vmatpush2.msra.mxu0 0.0
        %2124 = vmatprep.subr.mxu0 0.0
        %2125 = vmatpush2.msra.mxu0 0.0
        %2126 = vmatprep.subr.mxu0 0.0
        %2127 = vmatpush2.msra.mxu0 0.0
        %2128 = vmatprep.subr.mxu0 0.0
        %2129 = vmatpush2.msra.mxu0 0.0
        %2130 = vmatprep.subr.mxu0 0.0
        %2131 = vmatpush2.msra.mxu0 0.0
        %2132 = vmatprep.subr.mxu0 0.0
        %2133 = vmatpush2.msra.mxu0 0.0
        %2134 = vmatprep.subr.mxu0 0.0
        %2135 = vmatpush2.msra.mxu0 0.0
        %2136 = vmatprep.subr.mxu0 0.0
        %2137 = vmatpush2.msra.mxu0 0.0
        %2138 = vmatprep.subr.mxu0 0.0
        %2139 = vmatpush2.msra.mxu0 0.0
        %2140 = vmatprep.mubr.f32.mxu0 0.0
        %2141 = vmatmul.mubr.f32.gmra.mxu0 %v2074
        %v2142 = vpop.f32.mrf.mxu0
        %v2143 = vadd.f32 0.0, %v2142
        %v2144 = vpop.f32.mrf.mxu0
        %2145 = vdwg.mxu0
        %2147 = vrot.lane.b32.xlu0 %v2143, 8
        %v2148 = vpop.permute.xlu0 %2147
        %2150 = vst.msk [vmem:[#allocation2] sm:$0xff] %vm1057, %v2148
        %2151 = vrot.lane.b32.xlu0 %v1814, 112
        %v2152 = vpop.permute.xlu0 %2151
        %2153 = vrot.lane.b32.xlu0 %v1811, 80
        %v2154 = vpop.permute.xlu0 %2153
        %v2155 = vsel %vm724, %v2152, 0
        %v2157 = vsel %vm724, %v2154, 0
        %2159 = vmatprep.subr.mxu0 0.0
        %2160 = vmatpush1.xpose.msra.mxu0 0.0
        %2161 = vmatprep.subr.mxu0 0.0
        %2162 = vmatpush1.xpose.msra.mxu0 0.0
        %2163 = vmatprep.subr.mxu0 0.0
        %2164 = vmatpush1.xpose.msra.mxu0 0.0
        %2165 = vmatprep.subr.mxu0 0.0
        %2166 = vmatpush1.xpose.msra.mxu0 0.0
        %2167 = vmatprep.subr.mxu0 0.0
        %2168 = vmatpush1.xpose.msra.mxu0 0.0
        %2169 = vmatprep.subr.mxu0 0.0
        %2170 = vmatpush1.xpose.msra.mxu0 0.0
        %2171 = vmatprep.subr.mxu0 0.0
        %2172 = vmatpush1.xpose.msra.mxu0 0.0
        %2173 = vmatprep.subr.mxu0 0.0
        %2174 = vmatpush1.xpose.msra.mxu0 0.0
        %2175 = vmatprep.subr.mxu0 0.0
        %2176 = vmatpush1.xpose.msra.mxu0 0.0
        %2177 = vmatprep.subr.mxu0 0.0
        %2178 = vmatpush1.xpose.msra.mxu0 0.0
        %2179 = vmatprep.subr.mxu0 0.0
        %2180 = vmatpush1.xpose.msra.mxu0 0.0
        %2181 = vmatprep.subr.mxu0 0.0
        %2182 = vmatpush1.xpose.msra.mxu0 0.0
        %2183 = vmatprep.subr.mxu0 0.0
        %2184 = vmatpush1.xpose.msra.mxu0 0.0
        %2185 = vmatprep.subr.mxu0 0.0
        %2186 = vmatpush1.xpose.msra.mxu0 0.0
        %2187 = vmatprep.subr.mxu0 0.0
        %2188 = vmatpush1.xpose.msra.mxu0 0.0
        %2189 = vmatprep.subr.mxu0 0.0
        %2190 = vmatpush1.xpose.msra.mxu0 %v2157
        %2191 = vmatprep.subr.mxu0 0.0
        %2192 = vmatpush2.xpose.msra.mxu0 0.0
        %2193 = vmatprep.subr.mxu0 0.0
        %2194 = vmatpush2.xpose.msra.mxu0 0.0
        %2195 = vmatprep.subr.mxu0 0.0
        %2196 = vmatpush2.xpose.msra.mxu0 0.0
        %2197 = vmatprep.subr.mxu0 0.0
        %2198 = vmatpush2.xpose.msra.mxu0 0.0
        %2199 = vmatprep.subr.mxu0 0.0
        %2200 = vmatpush2.xpose.msra.mxu0 0.0
        %2201 = vmatprep.subr.mxu0 0.0
        %2202 = vmatpush2.xpose.msra.mxu0 0.0
        %2203 = vmatprep.subr.mxu0 0.0
        %2204 = vmatpush2.xpose.msra.mxu0 0.0
        %2205 = vmatprep.subr.mxu0 0.0
        %2206 = vmatpush2.xpose.msra.mxu0 0.0
        %2207 = vmatprep.subr.mxu0 0.0
        %2208 = vmatpush2.xpose.msra.mxu0 0.0
        %2209 = vmatprep.subr.mxu0 0.0
        %2210 = vmatpush2.xpose.msra.mxu0 0.0
        %2211 = vmatprep.subr.mxu0 0.0
        %2212 = vmatpush2.xpose.msra.mxu0 0.0
        %2213 = vmatprep.subr.mxu0 0.0
        %2214 = vmatpush2.xpose.msra.mxu0 0.0
        %2215 = vmatprep.subr.mxu0 0.0
        %2216 = vmatpush2.xpose.msra.mxu0 0.0
        %2217 = vmatprep.subr.mxu0 0.0
        %2218 = vmatpush2.xpose.msra.mxu0 0.0
        %2219 = vmatprep.subr.mxu0 0.0
        %2220 = vmatpush2.xpose.msra.mxu0 0.0
        %2221 = vmatprep.subr.mxu0 0.0
        %2222 = vmatpush2.xpose.msra.mxu0 0.0
        %2223 = vmatprep.mubr.f32.mxu0 0.0
        %2224 = vmatmul.mubr.f32.gmra.mxu0 %v2155
        %v2225 = vpop.f32.mrf.mxu0
        %v2226 = vadd.f32 %v719, %v2225
        %v2227 = vpop.f32.mrf.mxu0
        %2228 = vdwg.mxu0
        %v2229 = vsel %vm724, %v2226, -inf
        %2230 = vmax.xlane.f32.xlu0 %v2229
        %v2231 = vpop.xlane.xlu0 %2230
        %v2232 = vsub.f32 %v2226, %v2231
        %v2233 = vmul.f32 %v2232, 1.442695
        %v2234 = vpow.pop %v2233
        %v2235 = vsel %vm724, %v2234, 0.0
        %2236 = vadd.xlane.f32.xlu0 %v2235
        %v2237 = vpop.xlane.xlu0 %2236
        %v2238 = vrcp.pop %v2237
        %v2239 = vmul.f32 %v2234, %v2238
        %2240 = vrot.lane.b32.xlu0 %v1811, 48
        %v2241 = vpop.permute.xlu0 %2240
        %v2244 = vsel %vm724, %v2239, 0
        %2246 = vmatprep.subr.mxu0 0.0
        %2247 = vmatpush1.msra.mxu0 0.0
        %2248 = vmatprep.subr.mxu0 0.0
        %2249 = vmatpush1.msra.mxu0 0.0
        %2250 = vmatprep.subr.mxu0 0.0
        %2251 = vmatpush1.msra.mxu0 0.0
        %2252 = vmatprep.subr.mxu0 0.0
        %2253 = vmatpush1.msra.mxu0 0.0
        %2254 = vmatprep.subr.mxu0 0.0
        %2255 = vmatpush1.msra.mxu0 0.0
        %2256 = vmatprep.subr.mxu0 0.0
        %2257 = vmatpush1.msra.mxu0 0.0
        %2258 = vmatprep.subr.mxu0 0.0
        %2259 = vmatpush1.msra.mxu0 0.0
        %2260 = vmatprep.subr.mxu0 0.0
        %2261 = vmatpush1.msra.mxu0 0.0
        %2262 = vmatprep.subr.mxu0 0.0
        %2263 = vmatpush1.msra.mxu0 0.0
        %2264 = vmatprep.subr.mxu0 0.0
        %2265 = vmatpush1.msra.mxu0 0.0
        %2266 = vmatprep.subr.mxu0 0.0
        %2267 = vmatpush1.msra.mxu0 0.0
        %2268 = vmatprep.subr.mxu0 0.0
        %2269 = vmatpush1.msra.mxu0 0.0
        %2270 = vmatprep.subr.mxu0 0.0
        %2271 = vmatpush1.msra.mxu0 0.0
        %2272 = vmatprep.subr.mxu0 0.0
        %2273 = vmatpush1.msra.mxu0 0.0
        %2274 = vmatprep.subr.mxu0 0.0
        %2275 = vmatpush1.msra.mxu0 0.0
        %2276 = vmatprep.subr.mxu0 0.0
        %2277 = vmatpush1.msra.mxu0 %v2241
        %2278 = vmatprep.subr.mxu0 0.0
        %2279 = vmatpush2.msra.mxu0 0.0
        %2280 = vmatprep.subr.mxu0 0.0
        %2281 = vmatpush2.msra.mxu0 0.0
        %2282 = vmatprep.subr.mxu0 0.0
        %2283 = vmatpush2.msra.mxu0 0.0
        %2284 = vmatprep.subr.mxu0 0.0
        %2285 = vmatpush2.msra.mxu0 0.0
        %2286 = vmatprep.subr.mxu0 0.0
        %2287 = vmatpush2.msra.mxu0 0.0
        %2288 = vmatprep.subr.mxu0 0.0
        %2289 = vmatpush2.msra.mxu0 0.0
        %2290 = vmatprep.subr.mxu0 0.0
        %2291 = vmatpush2.msra.mxu0 0.0
        %2292 = vmatprep.subr.mxu0 0.0
        %2293 = vmatpush2.msra.mxu0 0.0
        %2294 = vmatprep.subr.mxu0 0.0
        %2295 = vmatpush2.msra.mxu0 0.0
        %2296 = vmatprep.subr.mxu0 0.0
        %2297 = vmatpush2.msra.mxu0 0.0
        %2298 = vmatprep.subr.mxu0 0.0
        %2299 = vmatpush2.msra.mxu0 0.0
        %2300 = vmatprep.subr.mxu0 0.0
        %2301 = vmatpush2.msra.mxu0 0.0
        %2302 = vmatprep.subr.mxu0 0.0
        %2303 = vmatpush2.msra.mxu0 0.0
        %2304 = vmatprep.subr.mxu0 0.0
        %2305 = vmatpush2.msra.mxu0 0.0
        %2306 = vmatprep.subr.mxu0 0.0
        %2307 = vmatpush2.msra.mxu0 0.0
        %2308 = vmatprep.subr.mxu0 0.0
        %2309 = vmatpush2.msra.mxu0 0.0
        %2310 = vmatprep.mubr.f32.mxu0 0.0
        %2311 = vmatmul.mubr.f32.gmra.mxu0 %v2244
        %v2312 = vpop.f32.mrf.mxu0
        %v2313 = vadd.f32 0.0, %v2312
        %v2314 = vpop.f32.mrf.mxu0
        %2315 = vdwg.mxu0
        %2317 = vrot.lane.b32.xlu0 %v2313, 16
        %v2318 = vpop.permute.xlu0 %2317
        %2320 = vst.msk [vmem:[#allocation2] sm:$0xff] %vm1228, %v2318
        %2321 = vrot.lane.b32.xlu0 %v1814, 104
        %v2322 = vpop.permute.xlu0 %2321
        %2323 = vrot.lane.b32.xlu0 %v1811, 72
        %v2324 = vpop.permute.xlu0 %2323
        %v2325 = vsel %vm724, %v2322, 0
        %v2327 = vsel %vm724, %v2324, 0
        %2329 = vmatprep.subr.mxu0 0.0
        %2330 = vmatpush1.xpose.msra.mxu0 0.0
        %2331 = vmatprep.subr.mxu0 0.0
        %2332 = vmatpush1.xpose.msra.mxu0 0.0
        %2333 = vmatprep.subr.mxu0 0.0
        %2334 = vmatpush1.xpose.msra.mxu0 0.0
        %2335 = vmatprep.subr.mxu0 0.0
        %2336 = vmatpush1.xpose.msra.mxu0 0.0
        %2337 = vmatprep.subr.mxu0 0.0
        %2338 = vmatpush1.xpose.msra.mxu0 0.0
        %2339 = vmatprep.subr.mxu0 0.0
        %2340 = vmatpush1.xpose.msra.mxu0 0.0
        %2341 = vmatprep.subr.mxu0 0.0
        %2342 = vmatpush1.xpose.msra.mxu0 0.0
        %2343 = vmatprep.subr.mxu0 0.0
        %2344 = vmatpush1.xpose.msra.mxu0 0.0
        %2345 = vmatprep.subr.mxu0 0.0
        %2346 = vmatpush1.xpose.msra.mxu0 0.0
        %2347 = vmatprep.subr.mxu0 0.0
        %2348 = vmatpush1.xpose.msra.mxu0 0.0
        %2349 = vmatprep.subr.mxu0 0.0
        %2350 = vmatpush1.xpose.msra.mxu0 0.0
        %2351 = vmatprep.subr.mxu0 0.0
        %2352 = vmatpush1.xpose.msra.mxu0 0.0
        %2353 = vmatprep.subr.mxu0 0.0
        %2354 = vmatpush1.xpose.msra.mxu0 0.0
        %2355 = vmatprep.subr.mxu0 0.0
        %2356 = vmatpush1.xpose.msra.mxu0 0.0
        %2357 = vmatprep.subr.mxu0 0.0
        %2358 = vmatpush1.xpose.msra.mxu0 0.0
        %2359 = vmatprep.subr.mxu0 0.0
        %2360 = vmatpush1.xpose.msra.mxu0 %v2327
        %2361 = vmatprep.subr.mxu0 0.0
        %2362 = vmatpush2.xpose.msra.mxu0 0.0
        %2363 = vmatprep.subr.mxu0 0.0
        %2364 = vmatpush2.xpose.msra.mxu0 0.0
        %2365 = vmatprep.subr.mxu0 0.0
        %2366 = vmatpush2.xpose.msra.mxu0 0.0
        %2367 = vmatprep.subr.mxu0 0.0
        %2368 = vmatpush2.xpose.msra.mxu0 0.0
        %2369 = vmatprep.subr.mxu0 0.0
        %2370 = vmatpush2.xpose.msra.mxu0 0.0
        %2371 = vmatprep.subr.mxu0 0.0
        %2372 = vmatpush2.xpose.msra.mxu0 0.0
        %2373 = vmatprep.subr.mxu0 0.0
        %2374 = vmatpush2.xpose.msra.mxu0 0.0
        %2375 = vmatprep.subr.mxu0 0.0
        %2376 = vmatpush2.xpose.msra.mxu0 0.0
        %2377 = vmatprep.subr.mxu0 0.0
        %2378 = vmatpush2.xpose.msra.mxu0 0.0
        %2379 = vmatprep.subr.mxu0 0.0
        %2380 = vmatpush2.xpose.msra.mxu0 0.0
        %2381 = vmatprep.subr.mxu0 0.0
        %2382 = vmatpush2.xpose.msra.mxu0 0.0
        %2383 = vmatprep.subr.mxu0 0.0
        %2384 = vmatpush2.xpose.msra.mxu0 0.0
        %2385 = vmatprep.subr.mxu0 0.0
        %2386 = vmatpush2.xpose.msra.mxu0 0.0
        %2387 = vmatprep.subr.mxu0 0.0
        %2388 = vmatpush2.xpose.msra.mxu0 0.0
        %2389 = vmatprep.subr.mxu0 0.0
        %2390 = vmatpush2.xpose.msra.mxu0 0.0
        %2391 = vmatprep.subr.mxu0 0.0
        %2392 = vmatpush2.xpose.msra.mxu0 0.0
        %2393 = vmatprep.mubr.f32.mxu0 0.0
        %2394 = vmatmul.mubr.f32.gmra.mxu0 %v2325
        %v2395 = vpop.f32.mrf.mxu0
        %v2396 = vadd.f32 %v719, %v2395
        %v2397 = vpop.f32.mrf.mxu0
        %2398 = vdwg.mxu0
        %v2399 = vsel %vm724, %v2396, -inf
        %2400 = vmax.xlane.f32.xlu0 %v2399
        %v2401 = vpop.xlane.xlu0 %2400
        %v2402 = vsub.f32 %v2396, %v2401
        %v2403 = vmul.f32 %v2402, 1.442695
        %v2404 = vpow.pop %v2403
        %v2405 = vsel %vm724, %v2404, 0.0
        %2406 = vadd.xlane.f32.xlu0 %v2405
        %v2407 = vpop.xlane.xlu0 %2406
        %v2408 = vrcp.pop %v2407
        %v2409 = vmul.f32 %v2404, %v2408
        %2410 = vrot.lane.b32.xlu0 %v1811, 40
        %v2411 = vpop.permute.xlu0 %2410
        %v2414 = vsel %vm724, %v2409, 0
        %2416 = vmatprep.subr.mxu0 0.0
        %2417 = vmatpush1.msra.mxu0 0.0
        %2418 = vmatprep.subr.mxu0 0.0
        %2419 = vmatpush1.msra.mxu0 0.0
        %2420 = vmatprep.subr.mxu0 0.0
        %2421 = vmatpush1.msra.mxu0 0.0
        %2422 = vmatprep.subr.mxu0 0.0
        %2423 = vmatpush1.msra.mxu0 0.0
        %2424 = vmatprep.subr.mxu0 0.0
        %2425 = vmatpush1.msra.mxu0 0.0
        %2426 = vmatprep.subr.mxu0 0.0
        %2427 = vmatpush1.msra.mxu0 0.0
        %2428 = vmatprep.subr.mxu0 0.0
        %2429 = vmatpush1.msra.mxu0 0.0
        %2430 = vmatprep.subr.mxu0 0.0
        %2431 = vmatpush1.msra.mxu0 0.0
        %2432 = vmatprep.subr.mxu0 0.0
        %2433 = vmatpush1.msra.mxu0 0.0
        %2434 = vmatprep.subr.mxu0 0.0
        %2435 = vmatpush1.msra.mxu0 0.0
        %2436 = vmatprep.subr.mxu0 0.0
        %2437 = vmatpush1.msra.mxu0 0.0
        %2438 = vmatprep.subr.mxu0 0.0
        %2439 = vmatpush1.msra.mxu0 0.0
        %2440 = vmatprep.subr.mxu0 0.0
        %2441 = vmatpush1.msra.mxu0 0.0
        %2442 = vmatprep.subr.mxu0 0.0
        %2443 = vmatpush1.msra.mxu0 0.0
        %2444 = vmatprep.subr.mxu0 0.0
        %2445 = vmatpush1.msra.mxu0 0.0
        %2446 = vmatprep.subr.mxu0 0.0
        %2447 = vmatpush1.msra.mxu0 %v2411
        %2448 = vmatprep.subr.mxu0 0.0
        %2449 = vmatpush2.msra.mxu0 0.0
        %2450 = vmatprep.subr.mxu0 0.0
        %2451 = vmatpush2.msra.mxu0 0.0
        %2452 = vmatprep.subr.mxu0 0.0
        %2453 = vmatpush2.msra.mxu0 0.0
        %2454 = vmatprep.subr.mxu0 0.0
        %2455 = vmatpush2.msra.mxu0 0.0
        %2456 = vmatprep.subr.mxu0 0.0
        %2457 = vmatpush2.msra.mxu0 0.0
        %2458 = vmatprep.subr.mxu0 0.0
        %2459 = vmatpush2.msra.mxu0 0.0
        %2460 = vmatprep.subr.mxu0 0.0
        %2461 = vmatpush2.msra.mxu0 0.0
        %2462 = vmatprep.subr.mxu0 0.0
        %2463 = vmatpush2.msra.mxu0 0.0
        %2464 = vmatprep.subr.mxu0 0.0
        %2465 = vmatpush2.msra.mxu0 0.0
        %2466 = vmatprep.subr.mxu0 0.0
        %2467 = vmatpush2.msra.mxu0 0.0
        %2468 = vmatprep.subr.mxu0 0.0
        %2469 = vmatpush2.msra.mxu0 0.0
        %2470 = vmatprep.subr.mxu0 0.0
        %2471 = vmatpush2.msra.mxu0 0.0
        %2472 = vmatprep.subr.mxu0 0.0
        %2473 = vmatpush2.msra.mxu0 0.0
        %2474 = vmatprep.subr.mxu0 0.0
        %2475 = vmatpush2.msra.mxu0 0.0
        %2476 = vmatprep.subr.mxu0 0.0
        %2477 = vmatpush2.msra.mxu0 0.0
        %2478 = vmatprep.subr.mxu0 0.0
        %2479 = vmatpush2.msra.mxu0 0.0
        %2480 = vmatprep.mubr.f32.mxu0 0.0
        %2481 = vmatmul.mubr.f32.gmra.mxu0 %v2414
        %v2482 = vpop.f32.mrf.mxu0
        %v2483 = vadd.f32 0.0, %v2482
        %v2484 = vpop.f32.mrf.mxu0
        %2485 = vdwg.mxu0
        %2487 = vrot.lane.b32.xlu0 %v2483, 24
        %v2488 = vpop.permute.xlu0 %2487
        %2490 = vst.msk [vmem:[#allocation2] sm:$0xff] %vm1399, %v2488
        %v2491 = vld [vmem:[#allocation2] sm:$0xff]
        %s2492 = scalar_lea.vmem %s6, 32
        %v2493 = vld [vmem:[%s2492] sm:$0xff]
        %v2494 = vld [vmem:[%s2492 + $0x8] sm:$0xff]
        %v2495 = vld [vmem:[%s2492 + $0x10] sm:$0xff]
        %v2496 = vld [vmem:[%s2492 + $0x18] sm:$0xff]
        %s2497 = scalar_lea.vmem %s7, 1
        %v2498 = vld [vmem:[%s2497] sm:$0x1]
        %v2500 = vlaneseq
        %v2501 = vshrl.u32 %v2500, 7
        %v2502 = vsub.s32 0, %v2501
        %v2503 = vrot.slane %v2498, %v2502
        %v2506 = vsel %vm598, %v2491, 0
        %2508 = vmatprep.subr.mxu0 0.0
        %2509 = vmatpush1.msra.mxu0 0.0
        %2510 = vmatprep.subr.mxu0 0.0
        %2511 = vmatpush1.msra.mxu0 0.0
        %2512 = vmatprep.subr.mxu0 0.0
        %2513 = vmatpush1.msra.mxu0 0.0
        %2514 = vmatprep.subr.mxu0 0.0
        %2515 = vmatpush1.msra.mxu0 0.0
        %2516 = vmatprep.subr.mxu0 0.0
        %2517 = vmatpush1.msra.mxu0 0.0
        %2518 = vmatprep.subr.mxu0 0.0
        %2519 = vmatpush1.msra.mxu0 0.0
        %2520 = vmatprep.subr.mxu0 0.0
        %2521 = vmatpush1.msra.mxu0 0.0
        %2522 = vmatprep.subr.mxu0 0.0
        %2523 = vmatpush1.msra.mxu0 0.0
        %2524 = vmatprep.subr.mxu0 0.0
        %2525 = vmatpush1.msra.mxu0 0.0
        %2526 = vmatprep.subr.mxu0 0.0
        %2527 = vmatpush1.msra.mxu0 0.0
        %2528 = vmatprep.subr.mxu0 0.0
        %2529 = vmatpush1.msra.mxu0 0.0
        %2530 = vmatprep.subr.mxu0 0.0
        %2531 = vmatpush1.msra.mxu0 0.0
        %2532 = vmatprep.subr.mxu0 0.0
        %2533 = vmatpush1.msra.mxu0 %v2496
        %2534 = vmatprep.subr.mxu0 0.0
        %2535 = vmatpush1.msra.mxu0 %v2495
        %2536 = vmatprep.subr.mxu0 0.0
        %2537 = vmatpush1.msra.mxu0 %v2494
        %2538 = vmatprep.subr.mxu0 0.0
        %2539 = vmatpush1.msra.mxu0 %v2493
        %2540 = vmatprep.subr.mxu0 0.0
        %2541 = vmatpush2.msra.mxu0 0.0
        %2542 = vmatprep.subr.mxu0 0.0
        %2543 = vmatpush2.msra.mxu0 0.0
        %2544 = vmatprep.subr.mxu0 0.0
        %2545 = vmatpush2.msra.mxu0 0.0
        %2546 = vmatprep.subr.mxu0 0.0
        %2547 = vmatpush2.msra.mxu0 0.0
        %2548 = vmatprep.subr.mxu0 0.0
        %2549 = vmatpush2.msra.mxu0 0.0
        %2550 = vmatprep.subr.mxu0 0.0
        %2551 = vmatpush2.msra.mxu0 0.0
        %2552 = vmatprep.subr.mxu0 0.0
        %2553 = vmatpush2.msra.mxu0 0.0
        %2554 = vmatprep.subr.mxu0 0.0
        %2555 = vmatpush2.msra.mxu0 0.0
        %2556 = vmatprep.subr.mxu0 0.0
        %2557 = vmatpush2.msra.mxu0 0.0
        %2558 = vmatprep.subr.mxu0 0.0
        %2559 = vmatpush2.msra.mxu0 0.0
        %2560 = vmatprep.subr.mxu0 0.0
        %2561 = vmatpush2.msra.mxu0 0.0
        %2562 = vmatprep.subr.mxu0 0.0
        %2563 = vmatpush2.msra.mxu0 0.0
        %2564 = vmatprep.subr.mxu0 0.0
        %2565 = vmatpush2.msra.mxu0 0.0
        %2566 = vmatprep.subr.mxu0 0.0
        %2567 = vmatpush2.msra.mxu0 0.0
        %2568 = vmatprep.subr.mxu0 0.0
        %2569 = vmatpush2.msra.mxu0 0.0
        %2570 = vmatprep.subr.mxu0 0.0
        %2571 = vmatpush2.msra.mxu0 0.0
        %2572 = vmatprep.mubr.f32.mxu0 0.0
        %2573 = vmatmul.mubr.f32.gmra.mxu0 %v2506
        %v2574 = vpop.f32.mrf.mxu0
        %v2575 = vadd.f32 %v2503, %v2574
        %v2576 = vpop.f32.mrf.mxu0
        %2577 = vdwg.mxu0
        %v2578 = vadd.f32 %v2575, %v1727
        %s2579 = scalar_lea.vmem %s8, 1
        %v2580 = vld [vmem:[%s2579] sm:$0x1]
        %s2581 = scalar_lea.vmem %s9, 1
        %v2582 = vld [vmem:[%s2581] sm:$0x1]
        %v2583 = vsel %vm598, %v2578, 0.0
        %2584 = vadd.xlane.f32.xlu0 %v2583
        %v2585 = vpop.xlane.xlu0 %2584
        %v2586 = vmul.f32 %v2585, %v602
        %v2587 = vsub.f32 %v2578, %v2586
        %v2588 = vmul.f32 %v2587, %v2587
        %v2589 = vsel %vm598, %v2588, 0.0
        %2590 = vadd.xlane.f32.xlu0 %v2589
        %v2591 = vpop.xlane.xlu0 %2590
        %v2592 = vmul.f32 %v2591, %v602
        %v2593 = vadd.f32 %v2592, 1e-12
        %v2594 = vrsqrt.pop %v2593
        %v2595 = vmul.f32 %v2587, %v2594
        %v2597 = vlaneseq
        %v2598 = vshrl.u32 %v2597, 7
        %v2599 = vsub.s32 0, %v2598
        %v2600 = vrot.slane %v2580, %v2599
        %v2602 = vmul.f32 %v2595, %v2600
        %v2604 = vlaneseq
        %v2605 = vshrl.u32 %v2604, 7
        %v2606 = vsub.s32 0, %v2605
        %v2607 = vrot.slane %v2582, %v2606
        %v2609 = vadd.f32 %v2602, %v2607
        %s2610 = scalar_lea.vmem %s10, 32
        %v2611 = vld [vmem:[%s2610] sm:$0xff]
        %v2612 = vld [vmem:[%s2610 + $0x8] sm:$0xff]
        %v2613 = vld [vmem:[%s2610 + $0x10] sm:$0xff]
        %v2614 = vld [vmem:[%s2610 + $0x18] sm:$0xff]
        %s2615 = scalar_lea.vmem %s11, 1
        %v2616 = vld [vmem:[%s2615] sm:$0x1]
        %v2618 = vlaneseq
        %v2619 = vshrl.u32 %v2618, 7
        %v2620 = vsub.s32 0, %v2619
        %v2621 = vrot.slane %v2616, %v2620
        %v2624 = vsel %vm598, %v2609, 0
        %2626 = vmatprep.subr.mxu0 0.0
        %2627 = vmatpush1.msra.mxu0 0.0
        %2628 = vmatprep.subr.mxu0 0.0
        %2629 = vmatpush1.msra.mxu0 0.0
        %2630 = vmatprep.subr.mxu0 0.0
        %2631 = vmatpush1.msra.mxu0 0.0
        %2632 = vmatprep.subr.mxu0 0.0
        %2633 = vmatpush1.msra.mxu0 0.0
        %2634 = vmatprep.subr.mxu0 0.0
        %2635 = vmatpush1.msra.mxu0 0.0
        %2636 = vmatprep.subr.mxu0 0.0
        %2637 = vmatpush1.msra.mxu0 0.0
        %2638 = vmatprep.subr.mxu0 0.0
        %2639 = vmatpush1.msra.mxu0 0.0
        %2640 = vmatprep.subr.mxu0 0.0
        %2641 = vmatpush1.msra.mxu0 0.0
        %2642 = vmatprep.subr.mxu0 0.0
        %2643 = vmatpush1.msra.mxu0 0.0
        %2644 = vmatprep.subr.mxu0 0.0
        %2645 = vmatpush1.msra.mxu0 0.0
        %2646 = vmatprep.subr.mxu0 0.0
        %2647 = vmatpush1.msra.mxu0 0.0
        %2648 = vmatprep.subr.mxu0 0.0
        %2649 = vmatpush1.msra.mxu0 0.0
        %2650 = vmatprep.subr.mxu0 0.0
        %2651 = vmatpush1.msra.mxu0 %v2614
        %2652 = vmatprep.subr.mxu0 0.0
        %2653 = vmatpush1.msra.mxu0 %v2613
        %2654 = vmatprep.subr.mxu0 0.0
        %2655 = vmatpush1.msra.mxu0 %v2612
        %2656 = vmatprep.subr.mxu0 0.0
        %2657 = vmatpush1.msra.mxu0 %v2611
        %2658 = vmatprep.subr.mxu0 0.0
        %2659 = vmatpush2.msra.mxu0 0.0
        %2660 = vmatprep.subr.mxu0 0.0
        %2661 = vmatpush2.msra.mxu0 0.0
        %2662 = vmatprep.subr.mxu0 0.0
        %2663 = vmatpush2.msra.mxu0 0.0
        %2664 = vmatprep.subr.mxu0 0.0
        %2665 = vmatpush2.msra.mxu0 0.0
        %2666 = vmatprep.subr.mxu0 0.0
        %2667 = vmatpush2.msra.mxu0 0.0
        %2668 = vmatprep.subr.mxu0 0.0
        %2669 = vmatpush2.msra.mxu0 0.0
        %2670 = vmatprep.subr.mxu0 0.0
        %2671 = vmatpush2.msra.mxu0 0.0
        %2672 = vmatprep.subr.mxu0 0.0
        %2673 = vmatpush2.msra.mxu0 0.0
        %2674 = vmatprep.subr.mxu0 0.0
        %2675 = vmatpush2.msra.mxu0 0.0
        %2676 = vmatprep.subr.mxu0 0.0
        %2677 = vmatpush2.msra.mxu0 0.0
        %2678 = vmatprep.subr.mxu0 0.0
        %2679 = vmatpush2.msra.mxu0 0.0
        %2680 = vmatprep.subr.mxu0 0.0
        %2681 = vmatpush2.msra.mxu0 0.0
        %2682 = vmatprep.subr.mxu0 0.0
        %2683 = vmatpush2.msra.mxu0 0.0
        %2684 = vmatprep.subr.mxu0 0.0
        %2685 = vmatpush2.msra.mxu0 0.0
        %2686 = vmatprep.subr.mxu0 0.0
        %2687 = vmatpush2.msra.mxu0 0.0
        %2688 = vmatprep.subr.mxu0 0.0
        %2689 = vmatpush2.msra.mxu0 0.0
        %2690 = vmatprep.mubr.f32.mxu0 0.0
        %2691 = vmatmul.mubr.f32.gmra.mxu0 %v2624
        %v2692 = vpop.f32.mrf.mxu0
        %v2693 = vadd.f32 %v2621, %v2692
        %v2694 = vpop.f32.mrf.mxu0
        %2695 = vdwg.mxu0
        %v2696 = vmul.f32 %v2693, %v2693
        %v2697 = vmul.f32 %v2693, %v2696
        %v2698 = vmul.f32 %v2697, 0.044715
        %v2699 = vadd.f32 %v2693, %v2698
        %v2700 = vmul.f32 %v2699, 0.7978846
        %v2701 = vtanh.pop %v2700
        %v2702 = vadd.f32 %v2701, 1.0
        %v2703 = vmul.f32 %v2702, 0.5
        %v2704 = vmul.f32 %v2693, %v2703
        %s2705 = scalar_lea.vmem %s12, 64
        %v2706 = vld [vmem:[%s2705] sm:$0xff]
        %v2707 = vld [vmem:[%s2705 + $0x8] sm:$0xff]
        %v2708 = vld [vmem:[%s2705 + $0x10] sm:$0xff]
        %v2709 = vld [vmem:[%s2705 + $0x18] sm:$0xff]
        %v2710 = vld [vmem:[%s2705 + $0x20] sm:$0xff]
        %v2711 = vld [vmem:[%s2705 + $0x28] sm:$0xff]
        %v2712 = vld [vmem:[%s2705 + $0x30] sm:$0xff]
        %v2713 = vld [vmem:[%s2705 + $0x38] sm:$0xff]
        %s2714 = scalar_lea.vmem %s13, 1
        %v2715 = vld [vmem:[%s2714] sm:$0x1]
        %v2717 = vlaneseq
        %v2718 = vshrl.u32 %v2717, 7
        %v2719 = vsub.s32 0, %v2718
        %v2720 = vrot.slane %v2715, %v2719
        %v2723 = vsel %vm1624, %v2704, 0
        %2725 = vmatprep.subr.mxu0 0.0
        %2726 = vmatpush1.msra.mxu0 0.0
        %2727 = vmatprep.subr.mxu0 0.0
        %2728 = vmatpush1.msra.mxu0 0.0
        %2729 = vmatprep.subr.mxu0 0.0
        %2730 = vmatpush1.msra.mxu0 0.0
        %2731 = vmatprep.subr.mxu0 0.0
        %2732 = vmatpush1.msra.mxu0 0.0
        %2733 = vmatprep.subr.mxu0 0.0
        %2734 = vmatpush1.msra.mxu0 0.0
        %2735 = vmatprep.subr.mxu0 0.0
        %2736 = vmatpush1.msra.mxu0 0.0
        %2737 = vmatprep.subr.mxu0 0.0
        %2738 = vmatpush1.msra.mxu0 0.0
        %2739 = vmatprep.subr.mxu0 0.0
        %2740 = vmatpush1.msra.mxu0 0.0
        %2741 = vmatprep.subr.mxu0 0.0
        %2742 = vmatpush1.msra.mxu0 %v2713
        %2743 = vmatprep.subr.mxu0 0.0
        %2744 = vmatpush1.msra.mxu0 %v2712
        %2745 = vmatprep.subr.mxu0 0.0
        %2746 = vmatpush1.msra.mxu0 %v2711
        %2747 = vmatprep.subr.mxu0 0.0
        %2748 = vmatpush1.msra.mxu0 %v2710
        %2749 = vmatprep.subr.mxu0 0.0
        %2750 = vmatpush1.msra.mxu0 %v2709
        %2751 = vmatprep.subr.mxu0 0.0
        %2752 = vmatpush1.msra.mxu0 %v2708
        %2753 = vmatprep.subr.mxu0 0.0
        %2754 = vmatpush1.msra.mxu0 %v2707
        %2755 = vmatprep.subr.mxu0 0.0
        %2756 = vmatpush1.msra.mxu0 %v2706
        %2757 = vmatprep.subr.mxu0 0.0
        %2758 = vmatpush2.msra.mxu0 0.0
        %2759 = vmatprep.subr.mxu0 0.0
        %2760 = vmatpush2.msra.mxu0 0.0
        %2761 = vmatprep.subr.mxu0 0.0
        %2762 = vmatpush2.msra.mxu0 0.0
        %2763 = vmatprep.subr.mxu0 0.0
        %2764 = vmatpush2.msra.mxu0 0.0
        %2765 = vmatprep.subr.mxu0 0.0
        %2766 = vmatpush2.msra.mxu0 0.0
        %2767 = vmatprep.subr.mxu0 0.0
        %2768 = vmatpush2.msra.mxu0 0.0
        %2769 = vmatprep.subr.mxu0 0.0
        %2770 = vmatpush2.msra.mxu0 0.0
        %2771 = vmatprep.subr.mxu0 0.0
        %2772 = vmatpush2.msra.mxu0 0.0
        %2773 = vmatprep.subr.mxu0 0.0
        %2774 = vmatpush2.msra.mxu0 0.0
        %2775 = vmatprep.subr.mxu0 0.0
        %2776 = vmatpush2.msra.mxu0 0.0
        %2777 = vmatprep.subr.mxu0 0.0
        %2778 = vmatpush2.msra.mxu0 0.0
        %2779 = vmatprep.subr.mxu0 0.0
        %2780 = vmatpush2.msra.mxu0 0.0
        %2781 = vmatprep.subr.mxu0 0.0
        %2782 = vmatpush2.msra.mxu0 0.0
        %2783 = vmatprep.subr.mxu0 0.0
        %2784 = vmatpush2.msra.mxu0 0.0
        %2785 = vmatprep.subr.mxu0 0.0
        %2786 = vmatpush2.msra.mxu0 0.0
        %2787 = vmatprep.subr.mxu0 0.0
        %2788 = vmatpush2.msra.mxu0 0.0
        %2789 = vmatprep.mubr.f32.mxu0 0.0
        %2790 = vmatmul.mubr.f32.gmra.mxu0 %v2723
        %v2791 = vpop.f32.mrf.mxu0
        %v2792 = vadd.f32 %v2720, %v2791
        %v2793 = vpop.f32.mrf.mxu0
        %2794 = vdwg.mxu0
        %v2795 = vadd.f32 %v2792, %v2609
        %s2796 = scalar_lea.vmem %s14, 1
        %v2797 = vld [vmem:[%s2796] sm:$0x1]
        %s2798 = scalar_lea.vmem %s15, 1
        %v2799 = vld [vmem:[%s2798] sm:$0x1]
        %v2800 = vsel %vm598, %v2795, 0.0
        %2801 = vadd.xlane.f32.xlu0 %v2800
        %v2802 = vpop.xlane.xlu0 %2801
        %v2803 = vmul.f32 %v2802, %v602
        %v2804 = vsub.f32 %v2795, %v2803
        %v2805 = vmul.f32 %v2804, %v2804
        %v2806 = vsel %vm598, %v2805, 0.0
        %2807 = vadd.xlane.f32.xlu0 %v2806
        %v2808 = vpop.xlane.xlu0 %2807
        %v2809 = vmul.f32 %v2808, %v602
        %v2810 = vadd.f32 %v2809, 1e-12
        %v2811 = vrsqrt.pop %v2810
        %v2812 = vmul.f32 %v2804, %v2811
        %v2814 = vlaneseq
        %v2815 = vshrl.u32 %v2814, 7
        %v2816 = vsub.s32 0, %v2815
        %v2817 = vrot.slane %v2797, %v2816
        %v2819 = vmul.f32 %v2812, %v2817
        %v2821 = vlaneseq
        %v2822 = vshrl.u32 %v2821, 7
        %v2823 = vsub.s32 0, %v2822
        %v2824 = vrot.slane %v2799, %v2823
        %v2826 = vadd.f32 %v2819, %v2824
        %vm2827 = vcmask 253952
        %2828 = vst.msk [vmem:[%s594] sm:$0x1] %vm2827, %v2826
        %s2829 = sand.u32 %s391, 1
        %s2830 = scalar_lea.sflag [#allocation5], %s2829
        %s2831 = sand.u32 %s391, 1
        %s2832 = scalar_lea.vmem [#allocation11], %s2831
        // Predicated region
        $region101: #{tpu_custom_call.1} parent=83 // pred_check
          %p2833 = pneg %p401
        $region102: #{tpu_custom_call.1} parent=83 // pred_check_branch
          %2835 = sbr.rel (%p2833) target = $region104
        $region103: #{tpu_custom_call.1} parent=83 // pred_region
          %s2837 = ssub.s32 16, 16
          %2838 = vsyncadd %s2830, %s2837
          %s2839 = smul.addr %s37, 16
          %s2840 = scalar_lea.hbm %s16, %s2839
          %s2842 = sshll.u32 %s2832, 4
          %s2843 = int_to_ptr.vmem [resolvable:$true] %s2842
          %2845 = dma.vmem_to_hbm [thread:$0]  %s2843, 16, %s2840, %s2830
        $region104: #{tpu_custom_call.1} parent=83 // pred_fallthru
          _
      $region84: #{tpu_custom_call.1} parent=5 // pred_fallthru
        _
      %p2846 = scmp.le.s32.totalorder 2, %s32
      // Predicated region
      $region105: #{tpu_custom_call.1} parent=5 // pred_check
        %p2847 = pneg %p2846
      $region106: #{tpu_custom_call.1} parent=5 // pred_check_branch
        %2849 = sbr.rel (%p2847) target = $region108
      $region107: #{tpu_custom_call.1} parent=5 // pred_region
        %s2850 = ssub.s32 %s32, 2
        // Predicated region
        $region109: #{tpu_custom_call.1} parent=107 // pred_check
          %p2851 = pneg %p407
        $region110: #{tpu_custom_call.1} parent=107 // pred_check_branch
          %2853 = sbr.rel (%p2851) target = $region112
        $region111: #{tpu_custom_call.1} parent=107 // pred_region
          %s2854 = sand.u32 %s392, 1
          %s2855 = scalar_lea.sflag [#allocation5], %s2854
          %s2856 = sand.u32 %s392, 1
          %s2857 = scalar_lea.vmem [#allocation11], %s2856
          %2858 = dma.done %s2855, 16
        $region112: #{tpu_custom_call.1} parent=107 // pred_fallthru
          _
      $region108: #{tpu_custom_call.1} parent=5 // pred_fallthru
        _
    $region6: #{tpu_custom_call.1} parent=1 // loop_footer
      %s36 = sadd.s32 1, %s32
    $region7: #{tpu_custom_call.1} parent=1 // loop_footer_branch
      %31 = sbr.rel target = $region3
    $region8: #{tpu_custom_call.1} parent=1 // loop_exit
      _
    %2859 = vsyncpa [#allocation4], 1
    %s2860 = scalar_lea.sflag [#allocation4], 1
    %2861 = vsyncpa %s2860, 1
    %2862 = vsyncpa [#allocation7], 1
    %s2863 = scalar_lea.sflag [#allocation7], 1
    %2864 = vsyncpa %s2863, 1
    %2865 = vsyncpa [#allocation10], 1
    %2866 = vsyncpa [#allocation5], 1
    %s2867 = scalar_lea.sflag [#allocation5], 1
    %2868 = vsyncpa %s2867, 1

</llo_original>
